<compile_context>
chip_gen: v7x
topology: tpu7x:2x2x1
jax: 0.10.0
libtpu: 0.0.40
codegen_flags: <defaults>
</compile_context>

<pallas_src>
import functools

import jax
import jax.numpy as jnp
from jax.experimental import pallas as pl
from jax.experimental.pallas import tpu as pltpu

CHUNK = 8  # decode steps per grid iteration (one (8,128) output block)


def _round_up(x, m):
    return ((x + m - 1) // m) * m


def attn_decoder_decode_kernel(tok_ref, h0_ref, enc_ref, emb_ref, w1_ref,
                               wca_ref, w2_ref, w3_ref, out_ref,
                               h_scr, enc_comb_scr,
                               *, H, V, L, chunk, out_w, off_gh, off_pc):
    f32 = jnp.float32
    c = pl.program_id(0)

    # One-time init: hidden carry + hoisted encoder projection (enc @ Wc_attn).
    @pl.when(c == 0)
    def _():
        h_scr[...] = h0_ref[...]
        enc_comb_scr[...] = jnp.dot(enc_ref[...], wca_ref[...],
                                    preferred_element_type=f32)

    h = h_scr[...]                       # (1, H) carried hidden state
    enc_comb = enc_comb_scr[...]         # (L, H)
    w1 = w1_ref[...]                     # (2H+1, off_pc+H)
    w2 = w2_ref[...]                     # (H+1, 3H)
    w3 = w3_ref[...]                     # (H+1, V)
    one = jnp.ones((1, 1), f32)
    pad = out_w - (V + H + L)

    rows = []
    for s in range(chunk):               # unrolled; 8 steps per output block
        tok = tok_ref[c * chunk + s]     # scalar from SMEM (prefetched tokens)
        emb = emb_ref[tok]               # (1, H) in-kernel embedding gather

        # --- matmul #1: [emb | h | 1] @ [attn | gru_hh(pad) | comb_emb] ------
        a1 = jnp.concatenate([emb, h, one], axis=-1)                  # (1, 2H+1)
        g1 = jnp.dot(a1, w1, preferred_element_type=f32)
        scores = g1[:, :L]                                            # attn logits
        gh = g1[:, off_gh:off_gh + 3 * H]                             # h@W_hh.T + b_hh
        pc = g1[:, off_pc:off_pc + H]                                 # emb part of attn_combine

        # --- softmax (exact reciprocal; attn_w is a returned output) ---------
        m = jnp.max(scores, axis=-1, keepdims=True)
        e = jnp.exp(scores - m)
        attn_w = e / jnp.sum(e, axis=-1, keepdims=True)               # (1, L)

        # --- matmul #2: attn_combine via pre-projected encoder outputs -------
        x = jnp.maximum(
            pc + jnp.dot(attn_w, enc_comb, preferred_element_type=f32), 0.0)

        # --- matmul #3: GRU input path; hh path already in gh (matmul #1) ----
        gi = jnp.dot(jnp.concatenate([x, one], axis=-1), w2,
                     preferred_element_type=f32)                      # (1, 3H)
        r = jax.nn.sigmoid(gi[:, :H] + gh[:, :H])
        z = jax.nn.sigmoid(gi[:, H:2 * H] + gh[:, H:2 * H])
        n = jnp.tanh(gi[:, 2 * H:] + r * gh[:, 2 * H:])
        h = (1.0 - z) * n + z * h                                     # (1, H)

        # --- matmul #4: output projection + log_softmax ----------------------
        logits = jnp.dot(jnp.concatenate([h, one], axis=-1), w3,
                         preferred_element_type=f32)                  # (1, V)
        lm = jnp.max(logits, axis=-1, keepdims=True)
        sh = logits - lm
        lse = jnp.log(jnp.sum(jnp.exp(sh), axis=-1, keepdims=True))
        logp = sh - lse

        pieces = [logp, h, attn_w]
        if pad:
            pieces.append(jnp.zeros((1, pad), f32))
        rows.append(jnp.concatenate(pieces, axis=-1))                 # (1, out_w)

    h_scr[...] = h                                # carry hidden to next chunk
    out_ref[...] = jnp.concatenate(rows, axis=0)  # one unmasked (chunk, out_w) store


def make_params(hidden_size, output_size, max_length, key):
    """Deterministic synthetic parameters, PyTorch layouts."""
    H, V, L = hidden_size, output_size, max_length
    ks = jax.random.split(key, 12)
    s = 0.1
    return {
        "embedding": s * jax.random.normal(ks[0], (V, H), jnp.float32),
        # nn.Linear stores (out, in)
        "attn_w": s * jax.random.normal(ks[1], (L, 2 * H), jnp.float32),
        "attn_b": s * jax.random.normal(ks[2], (L,), jnp.float32),
        "comb_w": s * jax.random.normal(ks[3], (H, 2 * H), jnp.float32),
        "comb_b": s * jax.random.normal(ks[4], (H,), jnp.float32),
        # nn.GRU: weight_ih_l0 (3H, H), rows [r; z; n]; same for hh
        "w_ih": s * jax.random.normal(ks[5], (3 * H, H), jnp.float32),
        "b_ih": s * jax.random.normal(ks[6], (3 * H,), jnp.float32),
        "w_hh": s * jax.random.normal(ks[7], (3 * H, H), jnp.float32),
        "b_hh": s * jax.random.normal(ks[8], (3 * H,), jnp.float32),
        "out_w": s * jax.random.normal(ks[9], (V, H), jnp.float32),
        "out_b": s * jax.random.normal(ks[10], (V,), jnp.float32),
    }


def prepare_params(params, H, V, L):
    """One-time re-layout into the fused kernel format (hoisted off the hot path).

    W1 (2H+1, *) column segments (128-lane aligned, biases on the last row):
      [0:L]               attn linear       ([w_attn.T ; b_attn])
      [off_gh:off_gh+3H]  GRU hh path       ([0 ; w_hh.T ; b_hh])
      [off_pc:off_pc+H]   attn_combine emb  ([w_comb.T[:H] ; 0 ; comb_b])
    """
    f32 = jnp.float32
    off_gh = _round_up(L, 128)
    off_pc = off_gh + _round_up(3 * H, 128)
    w1_cols = off_pc + H

    attn_wT = params["attn_w"].T.astype(f32)     # (2H, L)
    comb_wT = params["comb_w"].T.astype(f32)     # (2H, H)
    w_hhT = params["w_hh"].T.astype(f32)         # (H, 3H) cols [r|z|n]
    w_ihT = params["w_ih"].T.astype(f32)         # (H, 3H)
    out_wT = params["out_w"].T.astype(f32)       # (H, V)

    w1 = jnp.zeros((2 * H + 1, w1_cols), f32)
    w1 = w1.at[:2 * H, :L].set(attn_wT)
    w1 = w1.at[2 * H, :L].set(params["attn_b"].astype(f32))
    w1 = w1.at[H:2 * H, off_gh:off_gh + 3 * H].set(w_hhT)
    w1 = w1.at[2 * H, off_gh:off_gh + 3 * H].set(params["b_hh"].astype(f32))
    w1 = w1.at[:H, off_pc:off_pc + H].set(comb_wT[:H])
    w1 = w1.at[2 * H, off_pc:off_pc + H].set(params["comb_b"].astype(f32))

    w2 = jnp.concatenate([w_ihT, params["b_ih"].astype(f32)[None, :]], axis=0)
    w3 = jnp.concatenate([out_wT, params["out_b"].astype(f32)[None, :]], axis=0)
    wca = comb_wT[H:]                             # (H, H) attn-applied half
    emb3 = params["embedding"].astype(f32).reshape(V, 1, H)
    return {"emb": emb3, "w1": w1, "wca": wca, "w2": w2, "w3": w3}


@jax.jit
def attn_decoder_decode(tokens, hidden, encoder_outputs, fused):
    """Run T decode steps fully inside one Pallas kernel.

    tokens: (T,) int32; hidden: (1,1,H); encoder_outputs: (L,H).
    Returns (log_probs (T,V), final hidden (1,1,H), attn_weights (T,L)).
    """
    V, _, H = fused["emb"].shape
    L = encoder_outputs.shape[0]
    T = tokens.shape[0]
    Tp = _round_up(max(T, 1), CHUNK)
    out_w = _round_up(V + H + L, 128)
    off_gh = _round_up(L, 128)
    off_pc = off_gh + _round_up(3 * H, 128)

    toks = jnp.zeros((Tp,), jnp.int32).at[:T].set(tokens.astype(jnp.int32))
    h0 = hidden.reshape(1, H).astype(jnp.float32)
    enc = encoder_outputs.astype(jnp.float32)

    kernel = functools.partial(attn_decoder_decode_kernel, H=H, V=V, L=L,
                               chunk=CHUNK, out_w=out_w,
                               off_gh=off_gh, off_pc=off_pc)
    const2 = lambda c, tok: (0, 0)                 # weights: resident, DMA'd once
    grid_spec = pltpu.PrefetchScalarGridSpec(
        num_scalar_prefetch=1,
        grid=(Tp // CHUNK,),
        in_specs=[
            pl.BlockSpec((1, H), const2),                       # hidden init
            pl.BlockSpec((L, H), const2),                       # encoder outputs
            pl.BlockSpec((V, 1, H), lambda c, tok: (0, 0, 0)),  # embedding table
            pl.BlockSpec(fused["w1"].shape, const2),            # packed matmul #1
            pl.BlockSpec((H, H), const2),                       # w_comb attn half
            pl.BlockSpec((H + 1, 3 * H), const2),               # GRU ih (+bias row)
            pl.BlockSpec((H + 1, V), const2),                   # out (+bias row)
        ],
        out_specs=pl.BlockSpec((CHUNK, out_w), lambda c, tok: (c, 0)),
        scratch_shapes=[pltpu.VMEM((1, H), jnp.float32),        # hidden carry
                        pltpu.VMEM((L, H), jnp.float32)],       # enc @ Wc_attn
    )
    packed = pl.pallas_call(
        kernel,
        out_shape=jax.ShapeDtypeStruct((Tp, out_w), jnp.float32),
        grid_spec=grid_spec,
        compiler_params=pltpu.CompilerParams(
            dimension_semantics=("arbitrary",)),   # time recurrence: sequential
    )(toks, h0, enc, fused["emb"], fused["w1"], fused["wca"],
      fused["w2"], fused["w3"])

    log_probs = packed[:T, :V]
    h_final = packed[T - 1, V:V + H].reshape(1, 1, H)
    attn_w = packed[:T, V + H:V + H + L]
    return log_probs, h_final, attn_w


def attn_decoder_forward(token, hidden, encoder_outputs, fused):
    """Single-step call matching the PyTorch module interface/shapes."""
    tokens = jnp.asarray(token, jnp.int32).reshape(1)
    logp, h, attn = attn_decoder_decode(tokens, hidden, encoder_outputs, fused)
    return logp, h, attn                      # (1,V), (1,1,H), (1,L)


# ----------------------------- pure-JAX reference -----------------------------

def reference_step(token, h, encoder_outputs, params, H):
    emb = params["embedding"][token].reshape(1, H)
    cat1 = jnp.concatenate([emb, h], axis=1)
    scores = cat1 @ params["attn_w"].T + params["attn_b"]
    attn_w = jax.nn.softmax(scores, axis=1)
    attn_applied = attn_w @ encoder_outputs
    cat2 = jnp.concatenate([emb, attn_applied], axis=1)
    x = jax.nn.relu(cat2 @ params["comb_w"].T + params["comb_b"])
    gi = x @ params["w_ih"].T + params["b_ih"]
    gh = h @ params["w_hh"].T + params["b_hh"]
    r = jax.nn.sigmoid(gi[:, :H] + gh[:, :H])
    z = jax.nn.sigmoid(gi[:, H:2 * H] + gh[:, H:2 * H])
    n = jnp.tanh(gi[:, 2 * H:] + r * gh[:, 2 * H:])
    h_new = (1 - z) * n + z * h
    logits = h_new @ params["out_w"].T + params["out_b"]
    return jax.nn.log_softmax(logits, axis=1), h_new, attn_w


def reference_decode(tokens, hidden, encoder_outputs, params, H):
    h = hidden.reshape(1, H)
    lps, aws = [], []
    for t in range(tokens.shape[0]):
        lp, h, aw = reference_step(int(tokens[t]), h, encoder_outputs, params, H)
        lps.append(lp)
        aws.append(aw)
    return (jnp.concatenate(lps, 0), h.reshape(1, 1, H),
            jnp.concatenate(aws, 0))


if __name__ == "__main__":
    HIDDEN, VOCAB, MAXLEN, STEPS = 32, 40, 16, 12

    key = jax.random.PRNGKey(0)
    kp, ke, kh, kt = jax.random.split(key, 4)
    params = make_params(HIDDEN, VOCAB, MAXLEN, kp)
    fused = prepare_params(params, HIDDEN, VOCAB, MAXLEN)   # one-time re-layout

    tokens = jax.random.randint(kt, (STEPS,), 0, VOCAB, jnp.int32)
    hidden = 0.1 * jax.random.normal(kh, (1, 1, HIDDEN), jnp.float32)
    encoder_outputs = 0.1 * jax.random.normal(ke, (MAXLEN, HIDDEN), jnp.float32)

    # Multi-step decode (time loop inside the kernel).
    out = attn_decoder_decode(tokens, hidden, encoder_outputs, fused)
    out = jax.block_until_ready(out)
    ref = reference_decode(tokens, hidden, encoder_outputs, params, HIDDEN)
    for a, b in zip(out, ref):
        assert a.shape == b.shape, (a.shape, b.shape)
        assert jnp.allclose(a, b, atol=1e-4, rtol=1e-3), float(jnp.abs(a - b).max())

    # Single-step path matching the PyTorch module interface.
    out1 = attn_decoder_forward(jnp.int32(5), hidden, encoder_outputs, fused)
    out1 = jax.block_until_ready(out1)
    lp1, h1, aw1 = reference_step(5, hidden.reshape(1, HIDDEN), encoder_outputs,
                                  params, HIDDEN)
    ref1 = (lp1, h1.reshape(1, 1, HIDDEN), aw1)
    for a, b in zip(out1, ref1):
        assert a.shape == b.shape, (a.shape, b.shape)
        assert jnp.allclose(a, b, atol=1e-4, rtol=1e-3), float(jnp.abs(a - b).max())

    print("KERNEL_OK")
</pallas_src>

<mosaic_0001>
module attributes {stable_mosaic.version = 11 : i64} {
  func.func @attn_decoder_decode_kernel(%arg0: i32, %arg1: memref<16xi32, #tpu.memory_space<smem>>, %arg2: memref<1x32xf32, #tpu.memory_space<vmem>>, %arg3: memref<16x32xf32, #tpu.memory_space<vmem>>, %arg4: memref<40x1x32xf32, #tpu.memory_space<vmem>>, %arg5: memref<65x288xf32, #tpu.memory_space<vmem>>, %arg6: memref<32x32xf32, #tpu.memory_space<vmem>>, %arg7: memref<33x96xf32, #tpu.memory_space<vmem>>, %arg8: memref<33x40xf32, #tpu.memory_space<vmem>>, %arg9: memref<8x128xf32, #tpu.memory_space<vmem>>, %arg10: memref<1x32xf32, #tpu.memory_space<vmem>>, %arg11: memref<16x32xf32, #tpu.memory_space<vmem>>) attributes {dimension_semantics = [#tpu.dimension_semantics<arbitrary>], iteration_bounds = array<i64: 2>, scalar_prefetch = 1 : i64, scratch_operands = 2 : i64, tpu.core_type = #tpu.core_type<tc>, window_params = [{pipeline_mode = #tpu.pipeline_mode<synchronous>, transform_indices = @transform_0, window_bounds = array<i64: 1, 32>}, {pipeline_mode = #tpu.pipeline_mode<synchronous>, transform_indices = @transform_1, window_bounds = array<i64: 16, 32>}, {pipeline_mode = #tpu.pipeline_mode<synchronous>, transform_indices = @transform_2, window_bounds = array<i64: 40, 1, 32>}, {pipeline_mode = #tpu.pipeline_mode<synchronous>, transform_indices = @transform_3, window_bounds = array<i64: 65, 288>}, {pipeline_mode = #tpu.pipeline_mode<synchronous>, transform_indices = @transform_4, window_bounds = array<i64: 32, 32>}, {pipeline_mode = #tpu.pipeline_mode<synchronous>, transform_indices = @transform_5, window_bounds = array<i64: 33, 96>}, {pipeline_mode = #tpu.pipeline_mode<synchronous>, transform_indices = @transform_6, window_bounds = array<i64: 33, 40>}, {transform_indices = @transform_7, window_bounds = array<i64: 8, 128>}]} {
    %c0_i32 = arith.constant 0 : i32
    %0 = arith.cmpi eq, %arg0, %c0_i32 : i32
    %1 = arith.extui %0 : i1 to i32
    %c0_i32_0 = arith.constant 0 : i32
    %2 = arith.cmpi ne, %1, %c0_i32_0 : i32
    scf.if %2 {
      %c0_142 = arith.constant 0 : index
      %c0_143 = arith.constant 0 : index
      %548 = vector.load %arg2[%c0_142, %c0_143] : memref<1x32xf32, #tpu.memory_space<vmem>>, vector<1x32xf32>
      %c0_144 = arith.constant 0 : index
      %c0_145 = arith.constant 0 : index
      %549 = vector.load %arg10[%c0_144, %c0_145] : memref<1x32xf32, #tpu.memory_space<vmem>>, vector<1x32xf32>
      tpu.vector_store %arg10[%c0_144, %c0_145], %548 {strides = array<i32>} : memref<1x32xf32, #tpu.memory_space<vmem>>, vector<1x32xf32>,
      %c0_146 = arith.constant 0 : index
      %c0_147 = arith.constant 0 : index
      %550 = vector.load %arg3[%c0_146, %c0_147] : memref<16x32xf32, #tpu.memory_space<vmem>>, vector<16x32xf32>
      %c0_148 = arith.constant 0 : index
      %c0_149 = arith.constant 0 : index
      %551 = vector.load %arg6[%c0_148, %c0_149] : memref<32x32xf32, #tpu.memory_space<vmem>>, vector<32x32xf32>
      %cst_150 = arith.constant dense<0.000000e+00> : vector<16x32xf32>
      %552 = tpu.matmul %550, %551, %cst_150 {dimension_numbers = #tpu.dot_dimension_numbers<[1], [0], [0], [1], [0, 0, 1, 1], [], []>} : vector<16x32xf32>, vector<32x32xf32>, vector<16x32xf32> -> vector<16x32xf32>
      %c0_151 = arith.constant 0 : index
      %c0_152 = arith.constant 0 : index
      %553 = vector.load %arg11[%c0_151, %c0_152] : memref<16x32xf32, #tpu.memory_space<vmem>>, vector<16x32xf32>
      tpu.vector_store %arg11[%c0_151, %c0_152], %552 {strides = array<i32>} : memref<16x32xf32, #tpu.memory_space<vmem>>, vector<16x32xf32>,
    } else {
    }
    %c0 = arith.constant 0 : index
    %c0_1 = arith.constant 0 : index
    %3 = vector.load %arg10[%c0, %c0_1] : memref<1x32xf32, #tpu.memory_space<vmem>>, vector<1x32xf32>
    %c0_2 = arith.constant 0 : index
    %c0_3 = arith.constant 0 : index
    %4 = vector.load %arg11[%c0_2, %c0_3] : memref<16x32xf32, #tpu.memory_space<vmem>>, vector<16x32xf32>
    %c0_4 = arith.constant 0 : index
    %c0_5 = arith.constant 0 : index
    %5 = vector.load %arg5[%c0_4, %c0_5] : memref<65x288xf32, #tpu.memory_space<vmem>>, vector<65x288xf32>
    %c0_6 = arith.constant 0 : index
    %c0_7 = arith.constant 0 : index
    %6 = vector.load %arg7[%c0_6, %c0_7] : memref<33x96xf32, #tpu.memory_space<vmem>>, vector<33x96xf32>
    %c0_8 = arith.constant 0 : index
    %c0_9 = arith.constant 0 : index
    %7 = vector.load %arg8[%c0_8, %c0_9] : memref<33x40xf32, #tpu.memory_space<vmem>>, vector<33x40xf32>
    %cst = arith.constant 1.000000e+00 : f32
    %8 = vector.broadcast %cst : f32 to vector<1x1xf32>
    %c8_i32 = arith.constant 8 : i32
    %9 = arith.muli %arg0, %c8_i32 : i32
    %c0_i32_10 = arith.constant 0 : i32
    %10 = arith.addi %9, %c0_i32_10 : i32
    %11 = arith.index_cast %10 : i32 to index
    %12 = memref.load %arg1[%11] : memref<16xi32, #tpu.memory_space<smem>>
    %13 = arith.index_cast %12 : i32 to index
    %c0_11 = arith.constant 0 : index
    %c0_12 = arith.constant 0 : index
    %14 = vector.load %arg4[%13, %c0_11, %c0_12] : memref<40x1x32xf32, #tpu.memory_space<vmem>>, vector<1x1x32xf32>
    %15 = vector.shape_cast %14 : vector<1x1x32xf32> to vector<1x32xf32>
    %16 = tpu.concatenate %15, %3, %8 in 1 : vector<1x32xf32>, vector<1x32xf32>, vector<1x1xf32> -> vector<1x65xf32>
    %cst_13 = arith.constant dense<0.000000e+00> : vector<1x288xf32>
    %17 = tpu.matmul %16, %5, %cst_13 {dimension_numbers = #tpu.dot_dimension_numbers<[1], [0], [0], [1], [0, 0, 1, 1], [], []>} : vector<1x65xf32>, vector<65x288xf32>, vector<1x288xf32> -> vector<1x288xf32>
    %18 = vector.extract_strided_slice %17 {offsets = [0, 0], sizes = [1, 16], strides = [1, 1]} : vector<1x288xf32> to vector<1x16xf32>
    %19 = vector.extract_strided_slice %17 {offsets = [0, 128], sizes = [1, 96], strides = [1, 1]} : vector<1x288xf32> to vector<1x96xf32>
    %20 = vector.extract_strided_slice %17 {offsets = [0, 256], sizes = [1, 32], strides = [1, 1]} : vector<1x288xf32> to vector<1x32xf32>
    %cst_14 = arith.constant dense<0xFF800000> : vector<1xf32>
    %21 = vector.multi_reduction <maximumf>, %18, %cst_14 [1] : vector<1x16xf32> to vector<1xf32>
    %22 = vector.shape_cast %21 : vector<1xf32> to vector<1x1xf32>
    %23 = vector.broadcast %22 : vector<1x1xf32> to vector<1x16xf32>
    %24 = arith.subf %18, %23 : vector<1x16xf32>
    %25 = math.exp %24 : vector<1x16xf32>
    %cst_15 = arith.constant dense<0.000000e+00> : vector<1xf32>
    %26 = vector.multi_reduction <add>, %25, %cst_15 [1] : vector<1x16xf32> to vector<1xf32>
    %27 = vector.shape_cast %26 : vector<1xf32> to vector<1x1xf32>
    %28 = vector.broadcast %27 : vector<1x1xf32> to vector<1x16xf32>
    %29 = arith.divf %25, %28 : vector<1x16xf32>
    %cst_16 = arith.constant dense<0.000000e+00> : vector<1x32xf32>
    %30 = tpu.matmul %29, %4, %cst_16 {dimension_numbers = #tpu.dot_dimension_numbers<[1], [0], [0], [1], [0, 0, 1, 1], [], []>} : vector<1x16xf32>, vector<16x32xf32>, vector<1x32xf32> -> vector<1x32xf32>
    %31 = arith.addf %20, %30 : vector<1x32xf32>
    %cst_17 = arith.constant 0.000000e+00 : f32
    %32 = vector.broadcast %cst_17 : f32 to vector<1x32xf32>
    %33 = arith.maximumf %31, %32 : vector<1x32xf32>
    %34 = tpu.concatenate %33, %8 in 1 : vector<1x32xf32>, vector<1x1xf32> -> vector<1x33xf32>
    %cst_18 = arith.constant dense<0.000000e+00> : vector<1x96xf32>
    %35 = tpu.matmul %34, %6, %cst_18 {dimension_numbers = #tpu.dot_dimension_numbers<[1], [0], [0], [1], [0, 0, 1, 1], [], []>} : vector<1x33xf32>, vector<33x96xf32>, vector<1x96xf32> -> vector<1x96xf32>
    %36 = vector.extract_strided_slice %35 {offsets = [0, 0], sizes = [1, 32], strides = [1, 1]} : vector<1x96xf32> to vector<1x32xf32>
    %37 = vector.extract_strided_slice %19 {offsets = [0, 0], sizes = [1, 32], strides = [1, 1]} : vector<1x96xf32> to vector<1x32xf32>
    %38 = arith.addf %36, %37 : vector<1x32xf32>
    %39 = arith.negf %38 : vector<1x32xf32>
    %40 = math.exp %39 : vector<1x32xf32>
    %cst_19 = arith.constant 1.000000e+00 : f32
    %41 = vector.broadcast %cst_19 : f32 to vector<1x32xf32>
    %42 = arith.addf %41, %40 : vector<1x32xf32>
    %43 = arith.divf %41, %42 : vector<1x32xf32>
    %44 = vector.extract_strided_slice %35 {offsets = [0, 32], sizes = [1, 32], strides = [1, 1]} : vector<1x96xf32> to vector<1x32xf32>
    %45 = vector.extract_strided_slice %19 {offsets = [0, 32], sizes = [1, 32], strides = [1, 1]} : vector<1x96xf32> to vector<1x32xf32>
    %46 = arith.addf %44, %45 : vector<1x32xf32>
    %47 = arith.negf %46 : vector<1x32xf32>
    %48 = math.exp %47 : vector<1x32xf32>
    %cst_20 = arith.constant 1.000000e+00 : f32
    %49 = vector.broadcast %cst_20 : f32 to vector<1x32xf32>
    %50 = arith.addf %49, %48 : vector<1x32xf32>
    %51 = arith.divf %49, %50 : vector<1x32xf32>
    %52 = vector.extract_strided_slice %35 {offsets = [0, 64], sizes = [1, 32], strides = [1, 1]} : vector<1x96xf32> to vector<1x32xf32>
    %53 = vector.extract_strided_slice %19 {offsets = [0, 64], sizes = [1, 32], strides = [1, 1]} : vector<1x96xf32> to vector<1x32xf32>
    %54 = arith.mulf %43, %53 : vector<1x32xf32>
    %55 = arith.addf %52, %54 : vector<1x32xf32>
    %56 = math.tanh %55 : vector<1x32xf32>
    %cst_21 = arith.constant 1.000000e+00 : f32
    %57 = vector.broadcast %cst_21 : f32 to vector<1x32xf32>
    %58 = arith.subf %57, %51 : vector<1x32xf32>
    %59 = arith.mulf %58, %56 : vector<1x32xf32>
    %60 = arith.mulf %51, %3 : vector<1x32xf32>
    %61 = arith.addf %59, %60 : vector<1x32xf32>
    %62 = tpu.concatenate %61, %8 in 1 : vector<1x32xf32>, vector<1x1xf32> -> vector<1x33xf32>
    %cst_22 = arith.constant dense<0.000000e+00> : vector<1x40xf32>
    %63 = tpu.matmul %62, %7, %cst_22 {dimension_numbers = #tpu.dot_dimension_numbers<[1], [0], [0], [1], [0, 0, 1, 1], [], []>} : vector<1x33xf32>, vector<33x40xf32>, vector<1x40xf32> -> vector<1x40xf32>
    %cst_23 = arith.constant dense<0xFF800000> : vector<1xf32>
    %64 = vector.multi_reduction <maximumf>, %63, %cst_23 [1] : vector<1x40xf32> to vector<1xf32>
    %65 = vector.shape_cast %64 : vector<1xf32> to vector<1x1xf32>
    %66 = vector.broadcast %65 : vector<1x1xf32> to vector<1x40xf32>
    %67 = arith.subf %63, %66 : vector<1x40xf32>
    %68 = math.exp %67 : vector<1x40xf32>
    %cst_24 = arith.constant dense<0.000000e+00> : vector<1xf32>
    %69 = vector.multi_reduction <add>, %68, %cst_24 [1] : vector<1x40xf32> to vector<1xf32>
    %70 = vector.shape_cast %69 : vector<1xf32> to vector<1x1xf32>
    %71 = math.log %70 : vector<1x1xf32>
    %72 = vector.broadcast %71 : vector<1x1xf32> to vector<1x40xf32>
    %73 = arith.subf %67, %72 : vector<1x40xf32>
    %cst_25 = arith.constant 0.000000e+00 : f32
    %74 = vector.broadcast %cst_25 : f32 to vector<1x40xf32>
    %75 = tpu.concatenate %73, %61, %29, %74 in 1 : vector<1x40xf32>, vector<1x32xf32>, vector<1x16xf32>, vector<1x40xf32> -> vector<1x128xf32>
    %c8_i32_26 = arith.constant 8 : i32
    %76 = arith.muli %arg0, %c8_i32_26 : i32
    %c1_i32 = arith.constant 1 : i32
    %77 = arith.addi %76, %c1_i32 : i32
    %78 = arith.index_cast %77 : i32 to index
    %79 = memref.load %arg1[%78] : memref<16xi32, #tpu.memory_space<smem>>
    %80 = arith.index_cast %79 : i32 to index
    %c0_27 = arith.constant 0 : index
    %c0_28 = arith.constant 0 : index
    %81 = vector.load %arg4[%80, %c0_27, %c0_28] : memref<40x1x32xf32, #tpu.memory_space<vmem>>, vector<1x1x32xf32>
    %82 = vector.shape_cast %81 : vector<1x1x32xf32> to vector<1x32xf32>
    %83 = tpu.concatenate %82, %61, %8 in 1 : vector<1x32xf32>, vector<1x32xf32>, vector<1x1xf32> -> vector<1x65xf32>
    %cst_29 = arith.constant dense<0.000000e+00> : vector<1x288xf32>
    %84 = tpu.matmul %83, %5, %cst_29 {dimension_numbers = #tpu.dot_dimension_numbers<[1], [0], [0], [1], [0, 0, 1, 1], [], []>} : vector<1x65xf32>, vector<65x288xf32>, vector<1x288xf32> -> vector<1x288xf32>
    %85 = vector.extract_strided_slice %84 {offsets = [0, 0], sizes = [1, 16], strides = [1, 1]} : vector<1x288xf32> to vector<1x16xf32>
    %86 = vector.extract_strided_slice %84 {offsets = [0, 128], sizes = [1, 96], strides = [1, 1]} : vector<1x288xf32> to vector<1x96xf32>
    %87 = vector.extract_strided_slice %84 {offsets = [0, 256], sizes = [1, 32], strides = [1, 1]} : vector<1x288xf32> to vector<1x32xf32>
    %cst_30 = arith.constant dense<0xFF800000> : vector<1xf32>
    %88 = vector.multi_reduction <maximumf>, %85, %cst_30 [1] : vector<1x16xf32> to vector<1xf32>
    %89 = vector.shape_cast %88 : vector<1xf32> to vector<1x1xf32>
    %90 = vector.broadcast %89 : vector<1x1xf32> to vector<1x16xf32>
    %91 = arith.subf %85, %90 : vector<1x16xf32>
    %92 = math.exp %91 : vector<1x16xf32>
    %cst_31 = arith.constant dense<0.000000e+00> : vector<1xf32>
    %93 = vector.multi_reduction <add>, %92, %cst_31 [1] : vector<1x16xf32> to vector<1xf32>
    %94 = vector.shape_cast %93 : vector<1xf32> to vector<1x1xf32>
    %95 = vector.broadcast %94 : vector<1x1xf32> to vector<1x16xf32>
    %96 = arith.divf %92, %95 : vector<1x16xf32>
    %cst_32 = arith.constant dense<0.000000e+00> : vector<1x32xf32>
    %97 = tpu.matmul %96, %4, %cst_32 {dimension_numbers = #tpu.dot_dimension_numbers<[1], [0], [0], [1], [0, 0, 1, 1], [], []>} : vector<1x16xf32>, vector<16x32xf32>, vector<1x32xf32> -> vector<1x32xf32>
    %98 = arith.addf %87, %97 : vector<1x32xf32>
    %cst_33 = arith.constant 0.000000e+00 : f32
    %99 = vector.broadcast %cst_33 : f32 to vector<1x32xf32>
    %100 = arith.maximumf %98, %99 : vector<1x32xf32>
    %101 = tpu.concatenate %100, %8 in 1 : vector<1x32xf32>, vector<1x1xf32> -> vector<1x33xf32>
    %cst_34 = arith.constant dense<0.000000e+00> : vector<1x96xf32>
    %102 = tpu.matmul %101, %6, %cst_34 {dimension_numbers = #tpu.dot_dimension_numbers<[1], [0], [0], [1], [0, 0, 1, 1], [], []>} : vector<1x33xf32>, vector<33x96xf32>, vector<1x96xf32> -> vector<1x96xf32>
    %103 = vector.extract_strided_slice %102 {offsets = [0, 0], sizes = [1, 32], strides = [1, 1]} : vector<1x96xf32> to vector<1x32xf32>
    %104 = vector.extract_strided_slice %86 {offsets = [0, 0], sizes = [1, 32], strides = [1, 1]} : vector<1x96xf32> to vector<1x32xf32>
    %105 = arith.addf %103, %104 : vector<1x32xf32>
    %106 = arith.negf %105 : vector<1x32xf32>
    %107 = math.exp %106 : vector<1x32xf32>
    %cst_35 = arith.constant 1.000000e+00 : f32
    %108 = vector.broadcast %cst_35 : f32 to vector<1x32xf32>
    %109 = arith.addf %108, %107 : vector<1x32xf32>
    %110 = arith.divf %108, %109 : vector<1x32xf32>
    %111 = vector.extract_strided_slice %102 {offsets = [0, 32], sizes = [1, 32], strides = [1, 1]} : vector<1x96xf32> to vector<1x32xf32>
    %112 = vector.extract_strided_slice %86 {offsets = [0, 32], sizes = [1, 32], strides = [1, 1]} : vector<1x96xf32> to vector<1x32xf32>
    %113 = arith.addf %111, %112 : vector<1x32xf32>
    %114 = arith.negf %113 : vector<1x32xf32>
    %115 = math.exp %114 : vector<1x32xf32>
    %cst_36 = arith.constant 1.000000e+00 : f32
    %116 = vector.broadcast %cst_36 : f32 to vector<1x32xf32>
    %117 = arith.addf %116, %115 : vector<1x32xf32>
    %118 = arith.divf %116, %117 : vector<1x32xf32>
    %119 = vector.extract_strided_slice %102 {offsets = [0, 64], sizes = [1, 32], strides = [1, 1]} : vector<1x96xf32> to vector<1x32xf32>
    %120 = vector.extract_strided_slice %86 {offsets = [0, 64], sizes = [1, 32], strides = [1, 1]} : vector<1x96xf32> to vector<1x32xf32>
    %121 = arith.mulf %110, %120 : vector<1x32xf32>
    %122 = arith.addf %119, %121 : vector<1x32xf32>
    %123 = math.tanh %122 : vector<1x32xf32>
    %cst_37 = arith.constant 1.000000e+00 : f32
    %124 = vector.broadcast %cst_37 : f32 to vector<1x32xf32>
    %125 = arith.subf %124, %118 : vector<1x32xf32>
    %126 = arith.mulf %125, %123 : vector<1x32xf32>
    %127 = arith.mulf %118, %61 : vector<1x32xf32>
    %128 = arith.addf %126, %127 : vector<1x32xf32>
    %129 = tpu.concatenate %128, %8 in 1 : vector<1x32xf32>, vector<1x1xf32> -> vector<1x33xf32>
    %cst_38 = arith.constant dense<0.000000e+00> : vector<1x40xf32>
    %130 = tpu.matmul %129, %7, %cst_38 {dimension_numbers = #tpu.dot_dimension_numbers<[1], [0], [0], [1], [0, 0, 1, 1], [], []>} : vector<1x33xf32>, vector<33x40xf32>, vector<1x40xf32> -> vector<1x40xf32>
    %cst_39 = arith.constant dense<0xFF800000> : vector<1xf32>
    %131 = vector.multi_reduction <maximumf>, %130, %cst_39 [1] : vector<1x40xf32> to vector<1xf32>
    %132 = vector.shape_cast %131 : vector<1xf32> to vector<1x1xf32>
    %133 = vector.broadcast %132 : vector<1x1xf32> to vector<1x40xf32>
    %134 = arith.subf %130, %133 : vector<1x40xf32>
    %135 = math.exp %134 : vector<1x40xf32>
    %cst_40 = arith.constant dense<0.000000e+00> : vector<1xf32>
    %136 = vector.multi_reduction <add>, %135, %cst_40 [1] : vector<1x40xf32> to vector<1xf32>
    %137 = vector.shape_cast %136 : vector<1xf32> to vector<1x1xf32>
    %138 = math.log %137 : vector<1x1xf32>
    %139 = vector.broadcast %138 : vector<1x1xf32> to vector<1x40xf32>
    %140 = arith.subf %134, %139 : vector<1x40xf32>
    %cst_41 = arith.constant 0.000000e+00 : f32
    %141 = vector.broadcast %cst_41 : f32 to vector<1x40xf32>
    %142 = tpu.concatenate %140, %128, %96, %141 in 1 : vector<1x40xf32>, vector<1x32xf32>, vector<1x16xf32>, vector<1x40xf32> -> vector<1x128xf32>
    %c8_i32_42 = arith.constant 8 : i32
    %143 = arith.muli %arg0, %c8_i32_42 : i32
    %c2_i32 = arith.constant 2 : i32
    %144 = arith.addi %143, %c2_i32 : i32
    %145 = arith.index_cast %144 : i32 to index
    %146 = memref.load %arg1[%145] : memref<16xi32, #tpu.memory_space<smem>>
    %147 = arith.index_cast %146 : i32 to index
    %c0_43 = arith.constant 0 : index
    %c0_44 = arith.constant 0 : index
    %148 = vector.load %arg4[%147, %c0_43, %c0_44] : memref<40x1x32xf32, #tpu.memory_space<vmem>>, vector<1x1x32xf32>
    %149 = vector.shape_cast %148 : vector<1x1x32xf32> to vector<1x32xf32>
    %150 = tpu.concatenate %149, %128, %8 in 1 : vector<1x32xf32>, vector<1x32xf32>, vector<1x1xf32> -> vector<1x65xf32>
    %cst_45 = arith.constant dense<0.000000e+00> : vector<1x288xf32>
    %151 = tpu.matmul %150, %5, %cst_45 {dimension_numbers = #tpu.dot_dimension_numbers<[1], [0], [0], [1], [0, 0, 1, 1], [], []>} : vector<1x65xf32>, vector<65x288xf32>, vector<1x288xf32> -> vector<1x288xf32>
    %152 = vector.extract_strided_slice %151 {offsets = [0, 0], sizes = [1, 16], strides = [1, 1]} : vector<1x288xf32> to vector<1x16xf32>
    %153 = vector.extract_strided_slice %151 {offsets = [0, 128], sizes = [1, 96], strides = [1, 1]} : vector<1x288xf32> to vector<1x96xf32>
    %154 = vector.extract_strided_slice %151 {offsets = [0, 256], sizes = [1, 32], strides = [1, 1]} : vector<1x288xf32> to vector<1x32xf32>
    %cst_46 = arith.constant dense<0xFF800000> : vector<1xf32>
    %155 = vector.multi_reduction <maximumf>, %152, %cst_46 [1] : vector<1x16xf32> to vector<1xf32>
    %156 = vector.shape_cast %155 : vector<1xf32> to vector<1x1xf32>
    %157 = vector.broadcast %156 : vector<1x1xf32> to vector<1x16xf32>
    %158 = arith.subf %152, %157 : vector<1x16xf32>
    %159 = math.exp %158 : vector<1x16xf32>
    %cst_47 = arith.constant dense<0.000000e+00> : vector<1xf32>
    %160 = vector.multi_reduction <add>, %159, %cst_47 [1] : vector<1x16xf32> to vector<1xf32>
    %161 = vector.shape_cast %160 : vector<1xf32> to vector<1x1xf32>
    %162 = vector.broadcast %161 : vector<1x1xf32> to vector<1x16xf32>
    %163 = arith.divf %159, %162 : vector<1x16xf32>
    %cst_48 = arith.constant dense<0.000000e+00> : vector<1x32xf32>
    %164 = tpu.matmul %163, %4, %cst_48 {dimension_numbers = #tpu.dot_dimension_numbers<[1], [0], [0], [1], [0, 0, 1, 1], [], []>} : vector<1x16xf32>, vector<16x32xf32>, vector<1x32xf32> -> vector<1x32xf32>
    %165 = arith.addf %154, %164 : vector<1x32xf32>
    %cst_49 = arith.constant 0.000000e+00 : f32
    %166 = vector.broadcast %cst_49 : f32 to vector<1x32xf32>
    %167 = arith.maximumf %165, %166 : vector<1x32xf32>
    %168 = tpu.concatenate %167, %8 in 1 : vector<1x32xf32>, vector<1x1xf32> -> vector<1x33xf32>
    %cst_50 = arith.constant dense<0.000000e+00> : vector<1x96xf32>
    %169 = tpu.matmul %168, %6, %cst_50 {dimension_numbers = #tpu.dot_dimension_numbers<[1], [0], [0], [1], [0, 0, 1, 1], [], []>} : vector<1x33xf32>, vector<33x96xf32>, vector<1x96xf32> -> vector<1x96xf32>
    %170 = vector.extract_strided_slice %169 {offsets = [0, 0], sizes = [1, 32], strides = [1, 1]} : vector<1x96xf32> to vector<1x32xf32>
    %171 = vector.extract_strided_slice %153 {offsets = [0, 0], sizes = [1, 32], strides = [1, 1]} : vector<1x96xf32> to vector<1x32xf32>
    %172 = arith.addf %170, %171 : vector<1x32xf32>
    %173 = arith.negf %172 : vector<1x32xf32>
    %174 = math.exp %173 : vector<1x32xf32>
    %cst_51 = arith.constant 1.000000e+00 : f32
    %175 = vector.broadcast %cst_51 : f32 to vector<1x32xf32>
    %176 = arith.addf %175, %174 : vector<1x32xf32>
    %177 = arith.divf %175, %176 : vector<1x32xf32>
    %178 = vector.extract_strided_slice %169 {offsets = [0, 32], sizes = [1, 32], strides = [1, 1]} : vector<1x96xf32> to vector<1x32xf32>
    %179 = vector.extract_strided_slice %153 {offsets = [0, 32], sizes = [1, 32], strides = [1, 1]} : vector<1x96xf32> to vector<1x32xf32>
    %180 = arith.addf %178, %179 : vector<1x32xf32>
    %181 = arith.negf %180 : vector<1x32xf32>
    %182 = math.exp %181 : vector<1x32xf32>
    %cst_52 = arith.constant 1.000000e+00 : f32
    %183 = vector.broadcast %cst_52 : f32 to vector<1x32xf32>
    %184 = arith.addf %183, %182 : vector<1x32xf32>
    %185 = arith.divf %183, %184 : vector<1x32xf32>
    %186 = vector.extract_strided_slice %169 {offsets = [0, 64], sizes = [1, 32], strides = [1, 1]} : vector<1x96xf32> to vector<1x32xf32>
    %187 = vector.extract_strided_slice %153 {offsets = [0, 64], sizes = [1, 32], strides = [1, 1]} : vector<1x96xf32> to vector<1x32xf32>
    %188 = arith.mulf %177, %187 : vector<1x32xf32>
    %189 = arith.addf %186, %188 : vector<1x32xf32>
    %190 = math.tanh %189 : vector<1x32xf32>
    %cst_53 = arith.constant 1.000000e+00 : f32
    %191 = vector.broadcast %cst_53 : f32 to vector<1x32xf32>
    %192 = arith.subf %191, %185 : vector<1x32xf32>
    %193 = arith.mulf %192, %190 : vector<1x32xf32>
    %194 = arith.mulf %185, %128 : vector<1x32xf32>
    %195 = arith.addf %193, %194 : vector<1x32xf32>
    %196 = tpu.concatenate %195, %8 in 1 : vector<1x32xf32>, vector<1x1xf32> -> vector<1x33xf32>
    %cst_54 = arith.constant dense<0.000000e+00> : vector<1x40xf32>
    %197 = tpu.matmul %196, %7, %cst_54 {dimension_numbers = #tpu.dot_dimension_numbers<[1], [0], [0], [1], [0, 0, 1, 1], [], []>} : vector<1x33xf32>, vector<33x40xf32>, vector<1x40xf32> -> vector<1x40xf32>
    %cst_55 = arith.constant dense<0xFF800000> : vector<1xf32>
    %198 = vector.multi_reduction <maximumf>, %197, %cst_55 [1] : vector<1x40xf32> to vector<1xf32>
    %199 = vector.shape_cast %198 : vector<1xf32> to vector<1x1xf32>
    %200 = vector.broadcast %199 : vector<1x1xf32> to vector<1x40xf32>
    %201 = arith.subf %197, %200 : vector<1x40xf32>
    %202 = math.exp %201 : vector<1x40xf32>
    %cst_56 = arith.constant dense<0.000000e+00> : vector<1xf32>
    %203 = vector.multi_reduction <add>, %202, %cst_56 [1] : vector<1x40xf32> to vector<1xf32>
    %204 = vector.shape_cast %203 : vector<1xf32> to vector<1x1xf32>
    %205 = math.log %204 : vector<1x1xf32>
    %206 = vector.broadcast %205 : vector<1x1xf32> to vector<1x40xf32>
    %207 = arith.subf %201, %206 : vector<1x40xf32>
    %cst_57 = arith.constant 0.000000e+00 : f32
    %208 = vector.broadcast %cst_57 : f32 to vector<1x40xf32>
    %209 = tpu.concatenate %207, %195, %163, %208 in 1 : vector<1x40xf32>, vector<1x32xf32>, vector<1x16xf32>, vector<1x40xf32> -> vector<1x128xf32>
    %c8_i32_58 = arith.constant 8 : i32
    %210 = arith.muli %arg0, %c8_i32_58 : i32
    %c3_i32 = arith.constant 3 : i32
    %211 = arith.addi %210, %c3_i32 : i32
    %212 = arith.index_cast %211 : i32 to index
    %213 = memref.load %arg1[%212] : memref<16xi32, #tpu.memory_space<smem>>
    %214 = arith.index_cast %213 : i32 to index
    %c0_59 = arith.constant 0 : index
    %c0_60 = arith.constant 0 : index
    %215 = vector.load %arg4[%214, %c0_59, %c0_60] : memref<40x1x32xf32, #tpu.memory_space<vmem>>, vector<1x1x32xf32>
    %216 = vector.shape_cast %215 : vector<1x1x32xf32> to vector<1x32xf32>
    %217 = tpu.concatenate %216, %195, %8 in 1 : vector<1x32xf32>, vector<1x32xf32>, vector<1x1xf32> -> vector<1x65xf32>
    %cst_61 = arith.constant dense<0.000000e+00> : vector<1x288xf32>
    %218 = tpu.matmul %217, %5, %cst_61 {dimension_numbers = #tpu.dot_dimension_numbers<[1], [0], [0], [1], [0, 0, 1, 1], [], []>} : vector<1x65xf32>, vector<65x288xf32>, vector<1x288xf32> -> vector<1x288xf32>
    %219 = vector.extract_strided_slice %218 {offsets = [0, 0], sizes = [1, 16], strides = [1, 1]} : vector<1x288xf32> to vector<1x16xf32>
    %220 = vector.extract_strided_slice %218 {offsets = [0, 128], sizes = [1, 96], strides = [1, 1]} : vector<1x288xf32> to vector<1x96xf32>
    %221 = vector.extract_strided_slice %218 {offsets = [0, 256], sizes = [1, 32], strides = [1, 1]} : vector<1x288xf32> to vector<1x32xf32>
    %cst_62 = arith.constant dense<0xFF800000> : vector<1xf32>
    %222 = vector.multi_reduction <maximumf>, %219, %cst_62 [1] : vector<1x16xf32> to vector<1xf32>
    %223 = vector.shape_cast %222 : vector<1xf32> to vector<1x1xf32>
    %224 = vector.broadcast %223 : vector<1x1xf32> to vector<1x16xf32>
    %225 = arith.subf %219, %224 : vector<1x16xf32>
    %226 = math.exp %225 : vector<1x16xf32>
    %cst_63 = arith.constant dense<0.000000e+00> : vector<1xf32>
    %227 = vector.multi_reduction <add>, %226, %cst_63 [1] : vector<1x16xf32> to vector<1xf32>
    %228 = vector.shape_cast %227 : vector<1xf32> to vector<1x1xf32>
    %229 = vector.broadcast %228 : vector<1x1xf32> to vector<1x16xf32>
    %230 = arith.divf %226, %229 : vector<1x16xf32>
    %cst_64 = arith.constant dense<0.000000e+00> : vector<1x32xf32>
    %231 = tpu.matmul %230, %4, %cst_64 {dimension_numbers = #tpu.dot_dimension_numbers<[1], [0], [0], [1], [0, 0, 1, 1], [], []>} : vector<1x16xf32>, vector<16x32xf32>, vector<1x32xf32> -> vector<1x32xf32>
    %232 = arith.addf %221, %231 : vector<1x32xf32>
    %cst_65 = arith.constant 0.000000e+00 : f32
    %233 = vector.broadcast %cst_65 : f32 to vector<1x32xf32>
    %234 = arith.maximumf %232, %233 : vector<1x32xf32>
    %235 = tpu.concatenate %234, %8 in 1 : vector<1x32xf32>, vector<1x1xf32> -> vector<1x33xf32>
    %cst_66 = arith.constant dense<0.000000e+00> : vector<1x96xf32>
    %236 = tpu.matmul %235, %6, %cst_66 {dimension_numbers = #tpu.dot_dimension_numbers<[1], [0], [0], [1], [0, 0, 1, 1], [], []>} : vector<1x33xf32>, vector<33x96xf32>, vector<1x96xf32> -> vector<1x96xf32>
    %237 = vector.extract_strided_slice %236 {offsets = [0, 0], sizes = [1, 32], strides = [1, 1]} : vector<1x96xf32> to vector<1x32xf32>
    %238 = vector.extract_strided_slice %220 {offsets = [0, 0], sizes = [1, 32], strides = [1, 1]} : vector<1x96xf32> to vector<1x32xf32>
    %239 = arith.addf %237, %238 : vector<1x32xf32>
    %240 = arith.negf %239 : vector<1x32xf32>
    %241 = math.exp %240 : vector<1x32xf32>
    %cst_67 = arith.constant 1.000000e+00 : f32
    %242 = vector.broadcast %cst_67 : f32 to vector<1x32xf32>
    %243 = arith.addf %242, %241 : vector<1x32xf32>
    %244 = arith.divf %242, %243 : vector<1x32xf32>
    %245 = vector.extract_strided_slice %236 {offsets = [0, 32], sizes = [1, 32], strides = [1, 1]} : vector<1x96xf32> to vector<1x32xf32>
    %246 = vector.extract_strided_slice %220 {offsets = [0, 32], sizes = [1, 32], strides = [1, 1]} : vector<1x96xf32> to vector<1x32xf32>
    %247 = arith.addf %245, %246 : vector<1x32xf32>
    %248 = arith.negf %247 : vector<1x32xf32>
    %249 = math.exp %248 : vector<1x32xf32>
    %cst_68 = arith.constant 1.000000e+00 : f32
    %250 = vector.broadcast %cst_68 : f32 to vector<1x32xf32>
    %251 = arith.addf %250, %249 : vector<1x32xf32>
    %252 = arith.divf %250, %251 : vector<1x32xf32>
    %253 = vector.extract_strided_slice %236 {offsets = [0, 64], sizes = [1, 32], strides = [1, 1]} : vector<1x96xf32> to vector<1x32xf32>
    %254 = vector.extract_strided_slice %220 {offsets = [0, 64], sizes = [1, 32], strides = [1, 1]} : vector<1x96xf32> to vector<1x32xf32>
    %255 = arith.mulf %244, %254 : vector<1x32xf32>
    %256 = arith.addf %253, %255 : vector<1x32xf32>
    %257 = math.tanh %256 : vector<1x32xf32>
    %cst_69 = arith.constant 1.000000e+00 : f32
    %258 = vector.broadcast %cst_69 : f32 to vector<1x32xf32>
    %259 = arith.subf %258, %252 : vector<1x32xf32>
    %260 = arith.mulf %259, %257 : vector<1x32xf32>
    %261 = arith.mulf %252, %195 : vector<1x32xf32>
    %262 = arith.addf %260, %261 : vector<1x32xf32>
    %263 = tpu.concatenate %262, %8 in 1 : vector<1x32xf32>, vector<1x1xf32> -> vector<1x33xf32>
    %cst_70 = arith.constant dense<0.000000e+00> : vector<1x40xf32>
    %264 = tpu.matmul %263, %7, %cst_70 {dimension_numbers = #tpu.dot_dimension_numbers<[1], [0], [0], [1], [0, 0, 1, 1], [], []>} : vector<1x33xf32>, vector<33x40xf32>, vector<1x40xf32> -> vector<1x40xf32>
    %cst_71 = arith.constant dense<0xFF800000> : vector<1xf32>
    %265 = vector.multi_reduction <maximumf>, %264, %cst_71 [1] : vector<1x40xf32> to vector<1xf32>
    %266 = vector.shape_cast %265 : vector<1xf32> to vector<1x1xf32>
    %267 = vector.broadcast %266 : vector<1x1xf32> to vector<1x40xf32>
    %268 = arith.subf %264, %267 : vector<1x40xf32>
    %269 = math.exp %268 : vector<1x40xf32>
    %cst_72 = arith.constant dense<0.000000e+00> : vector<1xf32>
    %270 = vector.multi_reduction <add>, %269, %cst_72 [1] : vector<1x40xf32> to vector<1xf32>
    %271 = vector.shape_cast %270 : vector<1xf32> to vector<1x1xf32>
    %272 = math.log %271 : vector<1x1xf32>
    %273 = vector.broadcast %272 : vector<1x1xf32> to vector<1x40xf32>
    %274 = arith.subf %268, %273 : vector<1x40xf32>
    %cst_73 = arith.constant 0.000000e+00 : f32
    %275 = vector.broadcast %cst_73 : f32 to vector<1x40xf32>
    %276 = tpu.concatenate %274, %262, %230, %275 in 1 : vector<1x40xf32>, vector<1x32xf32>, vector<1x16xf32>, vector<1x40xf32> -> vector<1x128xf32>
    %c8_i32_74 = arith.constant 8 : i32
    %277 = arith.muli %arg0, %c8_i32_74 : i32
    %c4_i32 = arith.constant 4 : i32
    %278 = arith.addi %277, %c4_i32 : i32
    %279 = arith.index_cast %278 : i32 to index
    %280 = memref.load %arg1[%279] : memref<16xi32, #tpu.memory_space<smem>>
    %281 = arith.index_cast %280 : i32 to index
    %c0_75 = arith.constant 0 : index
    %c0_76 = arith.constant 0 : index
    %282 = vector.load %arg4[%281, %c0_75, %c0_76] : memref<40x1x32xf32, #tpu.memory_space<vmem>>, vector<1x1x32xf32>
    %283 = vector.shape_cast %282 : vector<1x1x32xf32> to vector<1x32xf32>
    %284 = tpu.concatenate %283, %262, %8 in 1 : vector<1x32xf32>, vector<1x32xf32>, vector<1x1xf32> -> vector<1x65xf32>
    %cst_77 = arith.constant dense<0.000000e+00> : vector<1x288xf32>
    %285 = tpu.matmul %284, %5, %cst_77 {dimension_numbers = #tpu.dot_dimension_numbers<[1], [0], [0], [1], [0, 0, 1, 1], [], []>} : vector<1x65xf32>, vector<65x288xf32>, vector<1x288xf32> -> vector<1x288xf32>
    %286 = vector.extract_strided_slice %285 {offsets = [0, 0], sizes = [1, 16], strides = [1, 1]} : vector<1x288xf32> to vector<1x16xf32>
    %287 = vector.extract_strided_slice %285 {offsets = [0, 128], sizes = [1, 96], strides = [1, 1]} : vector<1x288xf32> to vector<1x96xf32>
    %288 = vector.extract_strided_slice %285 {offsets = [0, 256], sizes = [1, 32], strides = [1, 1]} : vector<1x288xf32> to vector<1x32xf32>
    %cst_78 = arith.constant dense<0xFF800000> : vector<1xf32>
    %289 = vector.multi_reduction <maximumf>, %286, %cst_78 [1] : vector<1x16xf32> to vector<1xf32>
    %290 = vector.shape_cast %289 : vector<1xf32> to vector<1x1xf32>
    %291 = vector.broadcast %290 : vector<1x1xf32> to vector<1x16xf32>
    %292 = arith.subf %286, %291 : vector<1x16xf32>
    %293 = math.exp %292 : vector<1x16xf32>
    %cst_79 = arith.constant dense<0.000000e+00> : vector<1xf32>
    %294 = vector.multi_reduction <add>, %293, %cst_79 [1] : vector<1x16xf32> to vector<1xf32>
    %295 = vector.shape_cast %294 : vector<1xf32> to vector<1x1xf32>
    %296 = vector.broadcast %295 : vector<1x1xf32> to vector<1x16xf32>
    %297 = arith.divf %293, %296 : vector<1x16xf32>
    %cst_80 = arith.constant dense<0.000000e+00> : vector<1x32xf32>
    %298 = tpu.matmul %297, %4, %cst_80 {dimension_numbers = #tpu.dot_dimension_numbers<[1], [0], [0], [1], [0, 0, 1, 1], [], []>} : vector<1x16xf32>, vector<16x32xf32>, vector<1x32xf32> -> vector<1x32xf32>
    %299 = arith.addf %288, %298 : vector<1x32xf32>
    %cst_81 = arith.constant 0.000000e+00 : f32
    %300 = vector.broadcast %cst_81 : f32 to vector<1x32xf32>
    %301 = arith.maximumf %299, %300 : vector<1x32xf32>
    %302 = tpu.concatenate %301, %8 in 1 : vector<1x32xf32>, vector<1x1xf32> -> vector<1x33xf32>
    %cst_82 = arith.constant dense<0.000000e+00> : vector<1x96xf32>
    %303 = tpu.matmul %302, %6, %cst_82 {dimension_numbers = #tpu.dot_dimension_numbers<[1], [0], [0], [1], [0, 0, 1, 1], [], []>} : vector<1x33xf32>, vector<33x96xf32>, vector<1x96xf32> -> vector<1x96xf32>
    %304 = vector.extract_strided_slice %303 {offsets = [0, 0], sizes = [1, 32], strides = [1, 1]} : vector<1x96xf32> to vector<1x32xf32>
    %305 = vector.extract_strided_slice %287 {offsets = [0, 0], sizes = [1, 32], strides = [1, 1]} : vector<1x96xf32> to vector<1x32xf32>
    %306 = arith.addf %304, %305 : vector<1x32xf32>
    %307 = arith.negf %306 : vector<1x32xf32>
    %308 = math.exp %307 : vector<1x32xf32>
    %cst_83 = arith.constant 1.000000e+00 : f32
    %309 = vector.broadcast %cst_83 : f32 to vector<1x32xf32>
    %310 = arith.addf %309, %308 : vector<1x32xf32>
    %311 = arith.divf %309, %310 : vector<1x32xf32>
    %312 = vector.extract_strided_slice %303 {offsets = [0, 32], sizes = [1, 32], strides = [1, 1]} : vector<1x96xf32> to vector<1x32xf32>
    %313 = vector.extract_strided_slice %287 {offsets = [0, 32], sizes = [1, 32], strides = [1, 1]} : vector<1x96xf32> to vector<1x32xf32>
    %314 = arith.addf %312, %313 : vector<1x32xf32>
    %315 = arith.negf %314 : vector<1x32xf32>
    %316 = math.exp %315 : vector<1x32xf32>
    %cst_84 = arith.constant 1.000000e+00 : f32
    %317 = vector.broadcast %cst_84 : f32 to vector<1x32xf32>
    %318 = arith.addf %317, %316 : vector<1x32xf32>
    %319 = arith.divf %317, %318 : vector<1x32xf32>
    %320 = vector.extract_strided_slice %303 {offsets = [0, 64], sizes = [1, 32], strides = [1, 1]} : vector<1x96xf32> to vector<1x32xf32>
    %321 = vector.extract_strided_slice %287 {offsets = [0, 64], sizes = [1, 32], strides = [1, 1]} : vector<1x96xf32> to vector<1x32xf32>
    %322 = arith.mulf %311, %321 : vector<1x32xf32>
    %323 = arith.addf %320, %322 : vector<1x32xf32>
    %324 = math.tanh %323 : vector<1x32xf32>
    %cst_85 = arith.constant 1.000000e+00 : f32
    %325 = vector.broadcast %cst_85 : f32 to vector<1x32xf32>
    %326 = arith.subf %325, %319 : vector<1x32xf32>
    %327 = arith.mulf %326, %324 : vector<1x32xf32>
    %328 = arith.mulf %319, %262 : vector<1x32xf32>
    %329 = arith.addf %327, %328 : vector<1x32xf32>
    %330 = tpu.concatenate %329, %8 in 1 : vector<1x32xf32>, vector<1x1xf32> -> vector<1x33xf32>
    %cst_86 = arith.constant dense<0.000000e+00> : vector<1x40xf32>
    %331 = tpu.matmul %330, %7, %cst_86 {dimension_numbers = #tpu.dot_dimension_numbers<[1], [0], [0], [1], [0, 0, 1, 1], [], []>} : vector<1x33xf32>, vector<33x40xf32>, vector<1x40xf32> -> vector<1x40xf32>
    %cst_87 = arith.constant dense<0xFF800000> : vector<1xf32>
    %332 = vector.multi_reduction <maximumf>, %331, %cst_87 [1] : vector<1x40xf32> to vector<1xf32>
    %333 = vector.shape_cast %332 : vector<1xf32> to vector<1x1xf32>
    %334 = vector.broadcast %333 : vector<1x1xf32> to vector<1x40xf32>
    %335 = arith.subf %331, %334 : vector<1x40xf32>
    %336 = math.exp %335 : vector<1x40xf32>
    %cst_88 = arith.constant dense<0.000000e+00> : vector<1xf32>
    %337 = vector.multi_reduction <add>, %336, %cst_88 [1] : vector<1x40xf32> to vector<1xf32>
    %338 = vector.shape_cast %337 : vector<1xf32> to vector<1x1xf32>
    %339 = math.log %338 : vector<1x1xf32>
    %340 = vector.broadcast %339 : vector<1x1xf32> to vector<1x40xf32>
    %341 = arith.subf %335, %340 : vector<1x40xf32>
    %cst_89 = arith.constant 0.000000e+00 : f32
    %342 = vector.broadcast %cst_89 : f32 to vector<1x40xf32>
    %343 = tpu.concatenate %341, %329, %297, %342 in 1 : vector<1x40xf32>, vector<1x32xf32>, vector<1x16xf32>, vector<1x40xf32> -> vector<1x128xf32>
    %c8_i32_90 = arith.constant 8 : i32
    %344 = arith.muli %arg0, %c8_i32_90 : i32
    %c5_i32 = arith.constant 5 : i32
    %345 = arith.addi %344, %c5_i32 : i32
    %346 = arith.index_cast %345 : i32 to index
    %347 = memref.load %arg1[%346] : memref<16xi32, #tpu.memory_space<smem>>
    %348 = arith.index_cast %347 : i32 to index
    %c0_91 = arith.constant 0 : index
    %c0_92 = arith.constant 0 : index
    %349 = vector.load %arg4[%348, %c0_91, %c0_92] : memref<40x1x32xf32, #tpu.memory_space<vmem>>, vector<1x1x32xf32>
    %350 = vector.shape_cast %349 : vector<1x1x32xf32> to vector<1x32xf32>
    %351 = tpu.concatenate %350, %329, %8 in 1 : vector<1x32xf32>, vector<1x32xf32>, vector<1x1xf32> -> vector<1x65xf32>
    %cst_93 = arith.constant dense<0.000000e+00> : vector<1x288xf32>
    %352 = tpu.matmul %351, %5, %cst_93 {dimension_numbers = #tpu.dot_dimension_numbers<[1], [0], [0], [1], [0, 0, 1, 1], [], []>} : vector<1x65xf32>, vector<65x288xf32>, vector<1x288xf32> -> vector<1x288xf32>
    %353 = vector.extract_strided_slice %352 {offsets = [0, 0], sizes = [1, 16], strides = [1, 1]} : vector<1x288xf32> to vector<1x16xf32>
    %354 = vector.extract_strided_slice %352 {offsets = [0, 128], sizes = [1, 96], strides = [1, 1]} : vector<1x288xf32> to vector<1x96xf32>
    %355 = vector.extract_strided_slice %352 {offsets = [0, 256], sizes = [1, 32], strides = [1, 1]} : vector<1x288xf32> to vector<1x32xf32>
    %cst_94 = arith.constant dense<0xFF800000> : vector<1xf32>
    %356 = vector.multi_reduction <maximumf>, %353, %cst_94 [1] : vector<1x16xf32> to vector<1xf32>
    %357 = vector.shape_cast %356 : vector<1xf32> to vector<1x1xf32>
    %358 = vector.broadcast %357 : vector<1x1xf32> to vector<1x16xf32>
    %359 = arith.subf %353, %358 : vector<1x16xf32>
    %360 = math.exp %359 : vector<1x16xf32>
    %cst_95 = arith.constant dense<0.000000e+00> : vector<1xf32>
    %361 = vector.multi_reduction <add>, %360, %cst_95 [1] : vector<1x16xf32> to vector<1xf32>
    %362 = vector.shape_cast %361 : vector<1xf32> to vector<1x1xf32>
    %363 = vector.broadcast %362 : vector<1x1xf32> to vector<1x16xf32>
    %364 = arith.divf %360, %363 : vector<1x16xf32>
    %cst_96 = arith.constant dense<0.000000e+00> : vector<1x32xf32>
    %365 = tpu.matmul %364, %4, %cst_96 {dimension_numbers = #tpu.dot_dimension_numbers<[1], [0], [0], [1], [0, 0, 1, 1], [], []>} : vector<1x16xf32>, vector<16x32xf32>, vector<1x32xf32> -> vector<1x32xf32>
    %366 = arith.addf %355, %365 : vector<1x32xf32>
    %cst_97 = arith.constant 0.000000e+00 : f32
    %367 = vector.broadcast %cst_97 : f32 to vector<1x32xf32>
    %368 = arith.maximumf %366, %367 : vector<1x32xf32>
    %369 = tpu.concatenate %368, %8 in 1 : vector<1x32xf32>, vector<1x1xf32> -> vector<1x33xf32>
    %cst_98 = arith.constant dense<0.000000e+00> : vector<1x96xf32>
    %370 = tpu.matmul %369, %6, %cst_98 {dimension_numbers = #tpu.dot_dimension_numbers<[1], [0], [0], [1], [0, 0, 1, 1], [], []>} : vector<1x33xf32>, vector<33x96xf32>, vector<1x96xf32> -> vector<1x96xf32>
    %371 = vector.extract_strided_slice %370 {offsets = [0, 0], sizes = [1, 32], strides = [1, 1]} : vector<1x96xf32> to vector<1x32xf32>
    %372 = vector.extract_strided_slice %354 {offsets = [0, 0], sizes = [1, 32], strides = [1, 1]} : vector<1x96xf32> to vector<1x32xf32>
    %373 = arith.addf %371, %372 : vector<1x32xf32>
    %374 = arith.negf %373 : vector<1x32xf32>
    %375 = math.exp %374 : vector<1x32xf32>
    %cst_99 = arith.constant 1.000000e+00 : f32
    %376 = vector.broadcast %cst_99 : f32 to vector<1x32xf32>
    %377 = arith.addf %376, %375 : vector<1x32xf32>
    %378 = arith.divf %376, %377 : vector<1x32xf32>
    %379 = vector.extract_strided_slice %370 {offsets = [0, 32], sizes = [1, 32], strides = [1, 1]} : vector<1x96xf32> to vector<1x32xf32>
    %380 = vector.extract_strided_slice %354 {offsets = [0, 32], sizes = [1, 32], strides = [1, 1]} : vector<1x96xf32> to vector<1x32xf32>
    %381 = arith.addf %379, %380 : vector<1x32xf32>
    %382 = arith.negf %381 : vector<1x32xf32>
    %383 = math.exp %382 : vector<1x32xf32>
    %cst_100 = arith.constant 1.000000e+00 : f32
    %384 = vector.broadcast %cst_100 : f32 to vector<1x32xf32>
    %385 = arith.addf %384, %383 : vector<1x32xf32>
    %386 = arith.divf %384, %385 : vector<1x32xf32>
    %387 = vector.extract_strided_slice %370 {offsets = [0, 64], sizes = [1, 32], strides = [1, 1]} : vector<1x96xf32> to vector<1x32xf32>
    %388 = vector.extract_strided_slice %354 {offsets = [0, 64], sizes = [1, 32], strides = [1, 1]} : vector<1x96xf32> to vector<1x32xf32>
    %389 = arith.mulf %378, %388 : vector<1x32xf32>
    %390 = arith.addf %387, %389 : vector<1x32xf32>
    %391 = math.tanh %390 : vector<1x32xf32>
    %cst_101 = arith.constant 1.000000e+00 : f32
    %392 = vector.broadcast %cst_101 : f32 to vector<1x32xf32>
    %393 = arith.subf %392, %386 : vector<1x32xf32>
    %394 = arith.mulf %393, %391 : vector<1x32xf32>
    %395 = arith.mulf %386, %329 : vector<1x32xf32>
    %396 = arith.addf %394, %395 : vector<1x32xf32>
    %397 = tpu.concatenate %396, %8 in 1 : vector<1x32xf32>, vector<1x1xf32> -> vector<1x33xf32>
    %cst_102 = arith.constant dense<0.000000e+00> : vector<1x40xf32>
    %398 = tpu.matmul %397, %7, %cst_102 {dimension_numbers = #tpu.dot_dimension_numbers<[1], [0], [0], [1], [0, 0, 1, 1], [], []>} : vector<1x33xf32>, vector<33x40xf32>, vector<1x40xf32> -> vector<1x40xf32>
    %cst_103 = arith.constant dense<0xFF800000> : vector<1xf32>
    %399 = vector.multi_reduction <maximumf>, %398, %cst_103 [1] : vector<1x40xf32> to vector<1xf32>
    %400 = vector.shape_cast %399 : vector<1xf32> to vector<1x1xf32>
    %401 = vector.broadcast %400 : vector<1x1xf32> to vector<1x40xf32>
    %402 = arith.subf %398, %401 : vector<1x40xf32>
    %403 = math.exp %402 : vector<1x40xf32>
    %cst_104 = arith.constant dense<0.000000e+00> : vector<1xf32>
    %404 = vector.multi_reduction <add>, %403, %cst_104 [1] : vector<1x40xf32> to vector<1xf32>
    %405 = vector.shape_cast %404 : vector<1xf32> to vector<1x1xf32>
    %406 = math.log %405 : vector<1x1xf32>
    %407 = vector.broadcast %406 : vector<1x1xf32> to vector<1x40xf32>
    %408 = arith.subf %402, %407 : vector<1x40xf32>
    %cst_105 = arith.constant 0.000000e+00 : f32
    %409 = vector.broadcast %cst_105 : f32 to vector<1x40xf32>
    %410 = tpu.concatenate %408, %396, %364, %409 in 1 : vector<1x40xf32>, vector<1x32xf32>, vector<1x16xf32>, vector<1x40xf32> -> vector<1x128xf32>
    %c8_i32_106 = arith.constant 8 : i32
    %411 = arith.muli %arg0, %c8_i32_106 : i32
    %c6_i32 = arith.constant 6 : i32
    %412 = arith.addi %411, %c6_i32 : i32
    %413 = arith.index_cast %412 : i32 to index
    %414 = memref.load %arg1[%413] : memref<16xi32, #tpu.memory_space<smem>>
    %415 = arith.index_cast %414 : i32 to index
    %c0_107 = arith.constant 0 : index
    %c0_108 = arith.constant 0 : index
    %416 = vector.load %arg4[%415, %c0_107, %c0_108] : memref<40x1x32xf32, #tpu.memory_space<vmem>>, vector<1x1x32xf32>
    %417 = vector.shape_cast %416 : vector<1x1x32xf32> to vector<1x32xf32>
    %418 = tpu.concatenate %417, %396, %8 in 1 : vector<1x32xf32>, vector<1x32xf32>, vector<1x1xf32> -> vector<1x65xf32>
    %cst_109 = arith.constant dense<0.000000e+00> : vector<1x288xf32>
    %419 = tpu.matmul %418, %5, %cst_109 {dimension_numbers = #tpu.dot_dimension_numbers<[1], [0], [0], [1], [0, 0, 1, 1], [], []>} : vector<1x65xf32>, vector<65x288xf32>, vector<1x288xf32> -> vector<1x288xf32>
    %420 = vector.extract_strided_slice %419 {offsets = [0, 0], sizes = [1, 16], strides = [1, 1]} : vector<1x288xf32> to vector<1x16xf32>
    %421 = vector.extract_strided_slice %419 {offsets = [0, 128], sizes = [1, 96], strides = [1, 1]} : vector<1x288xf32> to vector<1x96xf32>
    %422 = vector.extract_strided_slice %419 {offsets = [0, 256], sizes = [1, 32], strides = [1, 1]} : vector<1x288xf32> to vector<1x32xf32>
    %cst_110 = arith.constant dense<0xFF800000> : vector<1xf32>
    %423 = vector.multi_reduction <maximumf>, %420, %cst_110 [1] : vector<1x16xf32> to vector<1xf32>
    %424 = vector.shape_cast %423 : vector<1xf32> to vector<1x1xf32>
    %425 = vector.broadcast %424 : vector<1x1xf32> to vector<1x16xf32>
    %426 = arith.subf %420, %425 : vector<1x16xf32>
    %427 = math.exp %426 : vector<1x16xf32>
    %cst_111 = arith.constant dense<0.000000e+00> : vector<1xf32>
    %428 = vector.multi_reduction <add>, %427, %cst_111 [1] : vector<1x16xf32> to vector<1xf32>
    %429 = vector.shape_cast %428 : vector<1xf32> to vector<1x1xf32>
    %430 = vector.broadcast %429 : vector<1x1xf32> to vector<1x16xf32>
    %431 = arith.divf %427, %430 : vector<1x16xf32>
    %cst_112 = arith.constant dense<0.000000e+00> : vector<1x32xf32>
    %432 = tpu.matmul %431, %4, %cst_112 {dimension_numbers = #tpu.dot_dimension_numbers<[1], [0], [0], [1], [0, 0, 1, 1], [], []>} : vector<1x16xf32>, vector<16x32xf32>, vector<1x32xf32> -> vector<1x32xf32>
    %433 = arith.addf %422, %432 : vector<1x32xf32>
    %cst_113 = arith.constant 0.000000e+00 : f32
    %434 = vector.broadcast %cst_113 : f32 to vector<1x32xf32>
    %435 = arith.maximumf %433, %434 : vector<1x32xf32>
    %436 = tpu.concatenate %435, %8 in 1 : vector<1x32xf32>, vector<1x1xf32> -> vector<1x33xf32>
    %cst_114 = arith.constant dense<0.000000e+00> : vector<1x96xf32>
    %437 = tpu.matmul %436, %6, %cst_114 {dimension_numbers = #tpu.dot_dimension_numbers<[1], [0], [0], [1], [0, 0, 1, 1], [], []>} : vector<1x33xf32>, vector<33x96xf32>, vector<1x96xf32> -> vector<1x96xf32>
    %438 = vector.extract_strided_slice %437 {offsets = [0, 0], sizes = [1, 32], strides = [1, 1]} : vector<1x96xf32> to vector<1x32xf32>
    %439 = vector.extract_strided_slice %421 {offsets = [0, 0], sizes = [1, 32], strides = [1, 1]} : vector<1x96xf32> to vector<1x32xf32>
    %440 = arith.addf %438, %439 : vector<1x32xf32>
    %441 = arith.negf %440 : vector<1x32xf32>
    %442 = math.exp %441 : vector<1x32xf32>
    %cst_115 = arith.constant 1.000000e+00 : f32
    %443 = vector.broadcast %cst_115 : f32 to vector<1x32xf32>
    %444 = arith.addf %443, %442 : vector<1x32xf32>
    %445 = arith.divf %443, %444 : vector<1x32xf32>
    %446 = vector.extract_strided_slice %437 {offsets = [0, 32], sizes = [1, 32], strides = [1, 1]} : vector<1x96xf32> to vector<1x32xf32>
    %447 = vector.extract_strided_slice %421 {offsets = [0, 32], sizes = [1, 32], strides = [1, 1]} : vector<1x96xf32> to vector<1x32xf32>
    %448 = arith.addf %446, %447 : vector<1x32xf32>
    %449 = arith.negf %448 : vector<1x32xf32>
    %450 = math.exp %449 : vector<1x32xf32>
    %cst_116 = arith.constant 1.000000e+00 : f32
    %451 = vector.broadcast %cst_116 : f32 to vector<1x32xf32>
    %452 = arith.addf %451, %450 : vector<1x32xf32>
    %453 = arith.divf %451, %452 : vector<1x32xf32>
    %454 = vector.extract_strided_slice %437 {offsets = [0, 64], sizes = [1, 32], strides = [1, 1]} : vector<1x96xf32> to vector<1x32xf32>
    %455 = vector.extract_strided_slice %421 {offsets = [0, 64], sizes = [1, 32], strides = [1, 1]} : vector<1x96xf32> to vector<1x32xf32>
    %456 = arith.mulf %445, %455 : vector<1x32xf32>
    %457 = arith.addf %454, %456 : vector<1x32xf32>
    %458 = math.tanh %457 : vector<1x32xf32>
    %cst_117 = arith.constant 1.000000e+00 : f32
    %459 = vector.broadcast %cst_117 : f32 to vector<1x32xf32>
    %460 = arith.subf %459, %453 : vector<1x32xf32>
    %461 = arith.mulf %460, %458 : vector<1x32xf32>
    %462 = arith.mulf %453, %396 : vector<1x32xf32>
    %463 = arith.addf %461, %462 : vector<1x32xf32>
    %464 = tpu.concatenate %463, %8 in 1 : vector<1x32xf32>, vector<1x1xf32> -> vector<1x33xf32>
    %cst_118 = arith.constant dense<0.000000e+00> : vector<1x40xf32>
    %465 = tpu.matmul %464, %7, %cst_118 {dimension_numbers = #tpu.dot_dimension_numbers<[1], [0], [0], [1], [0, 0, 1, 1], [], []>} : vector<1x33xf32>, vector<33x40xf32>, vector<1x40xf32> -> vector<1x40xf32>
    %cst_119 = arith.constant dense<0xFF800000> : vector<1xf32>
    %466 = vector.multi_reduction <maximumf>, %465, %cst_119 [1] : vector<1x40xf32> to vector<1xf32>
    %467 = vector.shape_cast %466 : vector<1xf32> to vector<1x1xf32>
    %468 = vector.broadcast %467 : vector<1x1xf32> to vector<1x40xf32>
    %469 = arith.subf %465, %468 : vector<1x40xf32>
    %470 = math.exp %469 : vector<1x40xf32>
    %cst_120 = arith.constant dense<0.000000e+00> : vector<1xf32>
    %471 = vector.multi_reduction <add>, %470, %cst_120 [1] : vector<1x40xf32> to vector<1xf32>
    %472 = vector.shape_cast %471 : vector<1xf32> to vector<1x1xf32>
    %473 = math.log %472 : vector<1x1xf32>
    %474 = vector.broadcast %473 : vector<1x1xf32> to vector<1x40xf32>
    %475 = arith.subf %469, %474 : vector<1x40xf32>
    %cst_121 = arith.constant 0.000000e+00 : f32
    %476 = vector.broadcast %cst_121 : f32 to vector<1x40xf32>
    %477 = tpu.concatenate %475, %463, %431, %476 in 1 : vector<1x40xf32>, vector<1x32xf32>, vector<1x16xf32>, vector<1x40xf32> -> vector<1x128xf32>
    %c8_i32_122 = arith.constant 8 : i32
    %478 = arith.muli %arg0, %c8_i32_122 : i32
    %c7_i32 = arith.constant 7 : i32
    %479 = arith.addi %478, %c7_i32 : i32
    %480 = arith.index_cast %479 : i32 to index
    %481 = memref.load %arg1[%480] : memref<16xi32, #tpu.memory_space<smem>>
    %482 = arith.index_cast %481 : i32 to index
    %c0_123 = arith.constant 0 : index
    %c0_124 = arith.constant 0 : index
    %483 = vector.load %arg4[%482, %c0_123, %c0_124] : memref<40x1x32xf32, #tpu.memory_space<vmem>>, vector<1x1x32xf32>
    %484 = vector.shape_cast %483 : vector<1x1x32xf32> to vector<1x32xf32>
    %485 = tpu.concatenate %484, %463, %8 in 1 : vector<1x32xf32>, vector<1x32xf32>, vector<1x1xf32> -> vector<1x65xf32>
    %cst_125 = arith.constant dense<0.000000e+00> : vector<1x288xf32>
    %486 = tpu.matmul %485, %5, %cst_125 {dimension_numbers = #tpu.dot_dimension_numbers<[1], [0], [0], [1], [0, 0, 1, 1], [], []>} : vector<1x65xf32>, vector<65x288xf32>, vector<1x288xf32> -> vector<1x288xf32>
    %487 = vector.extract_strided_slice %486 {offsets = [0, 0], sizes = [1, 16], strides = [1, 1]} : vector<1x288xf32> to vector<1x16xf32>
    %488 = vector.extract_strided_slice %486 {offsets = [0, 128], sizes = [1, 96], strides = [1, 1]} : vector<1x288xf32> to vector<1x96xf32>
    %489 = vector.extract_strided_slice %486 {offsets = [0, 256], sizes = [1, 32], strides = [1, 1]} : vector<1x288xf32> to vector<1x32xf32>
    %cst_126 = arith.constant dense<0xFF800000> : vector<1xf32>
    %490 = vector.multi_reduction <maximumf>, %487, %cst_126 [1] : vector<1x16xf32> to vector<1xf32>
    %491 = vector.shape_cast %490 : vector<1xf32> to vector<1x1xf32>
    %492 = vector.broadcast %491 : vector<1x1xf32> to vector<1x16xf32>
    %493 = arith.subf %487, %492 : vector<1x16xf32>
    %494 = math.exp %493 : vector<1x16xf32>
    %cst_127 = arith.constant dense<0.000000e+00> : vector<1xf32>
    %495 = vector.multi_reduction <add>, %494, %cst_127 [1] : vector<1x16xf32> to vector<1xf32>
    %496 = vector.shape_cast %495 : vector<1xf32> to vector<1x1xf32>
    %497 = vector.broadcast %496 : vector<1x1xf32> to vector<1x16xf32>
    %498 = arith.divf %494, %497 : vector<1x16xf32>
    %cst_128 = arith.constant dense<0.000000e+00> : vector<1x32xf32>
    %499 = tpu.matmul %498, %4, %cst_128 {dimension_numbers = #tpu.dot_dimension_numbers<[1], [0], [0], [1], [0, 0, 1, 1], [], []>} : vector<1x16xf32>, vector<16x32xf32>, vector<1x32xf32> -> vector<1x32xf32>
    %500 = arith.addf %489, %499 : vector<1x32xf32>
    %cst_129 = arith.constant 0.000000e+00 : f32
    %501 = vector.broadcast %cst_129 : f32 to vector<1x32xf32>
    %502 = arith.maximumf %500, %501 : vector<1x32xf32>
    %503 = tpu.concatenate %502, %8 in 1 : vector<1x32xf32>, vector<1x1xf32> -> vector<1x33xf32>
    %cst_130 = arith.constant dense<0.000000e+00> : vector<1x96xf32>
    %504 = tpu.matmul %503, %6, %cst_130 {dimension_numbers = #tpu.dot_dimension_numbers<[1], [0], [0], [1], [0, 0, 1, 1], [], []>} : vector<1x33xf32>, vector<33x96xf32>, vector<1x96xf32> -> vector<1x96xf32>
    %505 = vector.extract_strided_slice %504 {offsets = [0, 0], sizes = [1, 32], strides = [1, 1]} : vector<1x96xf32> to vector<1x32xf32>
    %506 = vector.extract_strided_slice %488 {offsets = [0, 0], sizes = [1, 32], strides = [1, 1]} : vector<1x96xf32> to vector<1x32xf32>
    %507 = arith.addf %505, %506 : vector<1x32xf32>
    %508 = arith.negf %507 : vector<1x32xf32>
    %509 = math.exp %508 : vector<1x32xf32>
    %cst_131 = arith.constant 1.000000e+00 : f32
    %510 = vector.broadcast %cst_131 : f32 to vector<1x32xf32>
    %511 = arith.addf %510, %509 : vector<1x32xf32>
    %512 = arith.divf %510, %511 : vector<1x32xf32>
    %513 = vector.extract_strided_slice %504 {offsets = [0, 32], sizes = [1, 32], strides = [1, 1]} : vector<1x96xf32> to vector<1x32xf32>
    %514 = vector.extract_strided_slice %488 {offsets = [0, 32], sizes = [1, 32], strides = [1, 1]} : vector<1x96xf32> to vector<1x32xf32>
    %515 = arith.addf %513, %514 : vector<1x32xf32>
    %516 = arith.negf %515 : vector<1x32xf32>
    %517 = math.exp %516 : vector<1x32xf32>
    %cst_132 = arith.constant 1.000000e+00 : f32
    %518 = vector.broadcast %cst_132 : f32 to vector<1x32xf32>
    %519 = arith.addf %518, %517 : vector<1x32xf32>
    %520 = arith.divf %518, %519 : vector<1x32xf32>
    %521 = vector.extract_strided_slice %504 {offsets = [0, 64], sizes = [1, 32], strides = [1, 1]} : vector<1x96xf32> to vector<1x32xf32>
    %522 = vector.extract_strided_slice %488 {offsets = [0, 64], sizes = [1, 32], strides = [1, 1]} : vector<1x96xf32> to vector<1x32xf32>
    %523 = arith.mulf %512, %522 : vector<1x32xf32>
    %524 = arith.addf %521, %523 : vector<1x32xf32>
    %525 = math.tanh %524 : vector<1x32xf32>
    %cst_133 = arith.constant 1.000000e+00 : f32
    %526 = vector.broadcast %cst_133 : f32 to vector<1x32xf32>
    %527 = arith.subf %526, %520 : vector<1x32xf32>
    %528 = arith.mulf %527, %525 : vector<1x32xf32>
    %529 = arith.mulf %520, %463 : vector<1x32xf32>
    %530 = arith.addf %528, %529 : vector<1x32xf32>
    %531 = tpu.concatenate %530, %8 in 1 : vector<1x32xf32>, vector<1x1xf32> -> vector<1x33xf32>
    %cst_134 = arith.constant dense<0.000000e+00> : vector<1x40xf32>
    %532 = tpu.matmul %531, %7, %cst_134 {dimension_numbers = #tpu.dot_dimension_numbers<[1], [0], [0], [1], [0, 0, 1, 1], [], []>} : vector<1x33xf32>, vector<33x40xf32>, vector<1x40xf32> -> vector<1x40xf32>
    %cst_135 = arith.constant dense<0xFF800000> : vector<1xf32>
    %533 = vector.multi_reduction <maximumf>, %532, %cst_135 [1] : vector<1x40xf32> to vector<1xf32>
    %534 = vector.shape_cast %533 : vector<1xf32> to vector<1x1xf32>
    %535 = vector.broadcast %534 : vector<1x1xf32> to vector<1x40xf32>
    %536 = arith.subf %532, %535 : vector<1x40xf32>
    %537 = math.exp %536 : vector<1x40xf32>
    %cst_136 = arith.constant dense<0.000000e+00> : vector<1xf32>
    %538 = vector.multi_reduction <add>, %537, %cst_136 [1] : vector<1x40xf32> to vector<1xf32>
    %539 = vector.shape_cast %538 : vector<1xf32> to vector<1x1xf32>
    %540 = math.log %539 : vector<1x1xf32>
    %541 = vector.broadcast %540 : vector<1x1xf32> to vector<1x40xf32>
    %542 = arith.subf %536, %541 : vector<1x40xf32>
    %cst_137 = arith.constant 0.000000e+00 : f32
    %543 = vector.broadcast %cst_137 : f32 to vector<1x40xf32>
    %544 = tpu.concatenate %542, %530, %498, %543 in 1 : vector<1x40xf32>, vector<1x32xf32>, vector<1x16xf32>, vector<1x40xf32> -> vector<1x128xf32>
    %c0_138 = arith.constant 0 : index
    %c0_139 = arith.constant 0 : index
    %545 = vector.load %arg10[%c0_138, %c0_139] : memref<1x32xf32, #tpu.memory_space<vmem>>, vector<1x32xf32>
    tpu.vector_store %arg10[%c0_138, %c0_139], %530 {strides = array<i32>} : memref<1x32xf32, #tpu.memory_space<vmem>>, vector<1x32xf32>,
    %546 = tpu.concatenate %75, %142, %209, %276, %343, %410, %477, %544 in 0 : vector<1x128xf32>, vector<1x128xf32>, vector<1x128xf32>, vector<1x128xf32>, vector<1x128xf32>, vector<1x128xf32>, vector<1x128xf32>, vector<1x128xf32> -> vector<8x128xf32>
    %c0_140 = arith.constant 0 : index
    %c0_141 = arith.constant 0 : index
    %547 = vector.load %arg9[%c0_140, %c0_141] : memref<8x128xf32, #tpu.memory_space<vmem>>, vector<8x128xf32>
    tpu.vector_store %arg9[%c0_140, %c0_141], %546 {strides = array<i32>} : memref<8x128xf32, #tpu.memory_space<vmem>>, vector<8x128xf32>,
    return
  }
  func.func @transform_0(%arg0: i32, %arg1: memref<16xi32, #tpu.memory_space<smem>>) -> (i32, i32) {
    %c0_i32 = arith.constant 0 : i32
    %c0_i32_0 = arith.constant 0 : i32
    %c0_i32_1 = arith.constant 0 : i32
    return %c0_i32, %c0_i32_0 : i32, i32
  }
  func.func @transform_1(%arg0: i32, %arg1: memref<16xi32, #tpu.memory_space<smem>>) -> (i32, i32) {
    %c0_i32 = arith.constant 0 : i32
    %c0_i32_0 = arith.constant 0 : i32
    %c0_i32_1 = arith.constant 0 : i32
    return %c0_i32, %c0_i32_0 : i32, i32
  }
  func.func @transform_2(%arg0: i32, %arg1: memref<16xi32, #tpu.memory_space<smem>>) -> (i32, i32, i32) {
    %c0_i32 = arith.constant 0 : i32
    %c0_i32_0 = arith.constant 0 : i32
    %c0_i32_1 = arith.constant 0 : i32
    %c0_i32_2 = arith.constant 0 : i32
    return %c0_i32, %c0_i32_0, %c0_i32_1 : i32, i32, i32
  }
  func.func @transform_3(%arg0: i32, %arg1: memref<16xi32, #tpu.memory_space<smem>>) -> (i32, i32) {
    %c0_i32 = arith.constant 0 : i32
    %c0_i32_0 = arith.constant 0 : i32
    %c0_i32_1 = arith.constant 0 : i32
    return %c0_i32, %c0_i32_0 : i32, i32
  }
  func.func @transform_4(%arg0: i32, %arg1: memref<16xi32, #tpu.memory_space<smem>>) -> (i32, i32) {
    %c0_i32 = arith.constant 0 : i32
    %c0_i32_0 = arith.constant 0 : i32
    %c0_i32_1 = arith.constant 0 : i32
    return %c0_i32, %c0_i32_0 : i32, i32
  }
  func.func @transform_5(%arg0: i32, %arg1: memref<16xi32, #tpu.memory_space<smem>>) -> (i32, i32) {
    %c0_i32 = arith.constant 0 : i32
    %c0_i32_0 = arith.constant 0 : i32
    %c0_i32_1 = arith.constant 0 : i32
    return %c0_i32, %c0_i32_0 : i32, i32
  }
  func.func @transform_6(%arg0: i32, %arg1: memref<16xi32, #tpu.memory_space<smem>>) -> (i32, i32) {
    %c0_i32 = arith.constant 0 : i32
    %c0_i32_0 = arith.constant 0 : i32
    %c0_i32_1 = arith.constant 0 : i32
    return %c0_i32, %c0_i32_0 : i32, i32
  }
  func.func @transform_7(%arg0: i32, %arg1: memref<16xi32, #tpu.memory_space<smem>>) -> (i32, i32) {
    %c0_i32 = arith.constant 0 : i32
    %c0_i32_0 = arith.constant 0 : i32
    return %arg0, %c0_i32 : i32, i32
  }
}

</mosaic_0001>

<llo_original>
// kernel: attn_decoder_decode.1
$region0: #{attn_decoder_decode.1}
  #allocation0 [shape = 'u32[]', space=smem, size = 0x4, offset = 0x4, fixed_abs, tag = 'smem constant byte address 0x4 - core index']
  #allocation1 [shape = 'u32[144,128]{1,0:T(1,128)}', space=vmem, size = 0x12000, scoped, tag = 'internal scratch']
  #allocation2 [shape = 'f32[1,32]{1,0:T(1,128)}', space=vmem, size = 0x200, scoped, tag = 'scratch operand']
  #allocation3 [shape = 'f32[16,32]{1,0:T(8,128)}', space=vmem, size = 0x2000, scoped, tag = 'scratch operand']
  #allocation4 [shape = 's32[1]{0}', space=sflag, size = 0x4, scoped, tag = 'scoped memory for attn_decoder_decode.1']
  #allocation5 [shape = 'u8[512]{0}', space=smem, size = 0x200, scoped, tag = 'prefetched SMEM operand 0']
  %s0 = inlined_call_operand.vmem [shape: s32[16], index: 0, kind: input, shape index: {}]
  %s1 = inlined_call_operand.vmem [shape: f32[1,32], index: 1, kind: input, shape index: {}]
  %s2 = inlined_call_operand.hbm [shape: f32[16,32], index: 2, kind: input, shape index: {}]
  %s3 = inlined_call_operand.vmem [shape: f32[40,1,32], index: 3, kind: input, shape index: {}]
  %s4 = inlined_call_operand.hbm [shape: f32[65,288], index: 4, kind: input, shape index: {}]
  %s5 = inlined_call_operand.hbm [shape: f32[32,32], index: 5, kind: input, shape index: {}]
  %s6 = inlined_call_operand.vmem [shape: f32[33,96], index: 6, kind: input, shape index: {}]
  %s7 = inlined_call_operand.vmem [shape: f32[33,40], index: 7, kind: input, shape index: {}]
  %s8 = inlined_call_operand.vmem [shape: f32[16,128], index: 8, kind: output, shape index: {}]
  %s9 = sld [smem:[#allocation0]]
  $region77: #{attn_decoder_decode.1} parent=0
    _
  %s11 = ssub.s32 1, %s9
  %s12 = scalar_select 0, %s11, %s9
  %s13 = sshll.u32 %s0, 4
  %s14 = int_to_ptr.vmem [resolvable:$true] %s13
  %16 = dma.vmem_to_smem %s14, 16, [#allocation5], [#allocation4]
  %17 = dma.done [#allocation4], 16
  %18 = sfence
  $region1: #{attn_decoder_decode.1} parent=0
    #allocation6 [shape = 'u8[8192]{0}', space=vmem, size = 0x2000, scoped, tag = 'input window, operand 2, single buffered']
    #allocation7 [shape = 's32[2]{0}', space=sflag, size = 0x8, scoped, tag = 'scoped memory for attn_decoder_decode.1']
    #allocation8 [shape = 'u8[110592]{0}', space=vmem, size = 0x1b000, scoped, tag = 'input window, operand 4, single buffered']
    #allocation9 [shape = 's32[1]{0}', space=sflag, size = 0x4, scoped, tag = 'scoped memory for attn_decoder_decode.1']
    #allocation10 [shape = 'u8[16384]{0}', space=vmem, size = 0x4000, scoped, tag = 'input window, operand 5, single buffered']
    %19 = vsyncpa [#allocation7], 0
    %20 = vsyncpa [#allocation9], 0
    loop: start=0, step=1, limit=4
    $region2: #{attn_decoder_decode.1} parent=1 // loop_pre_header
      _
    $region3: #{attn_decoder_decode.1} parent=1 // loop_header
      %s22 = sphi 0, %s26
      %p23 = scmp.ge.s32.totalorder %s22, 4
      %s30 = sphi 0, %s30
      %s32 = sphi 0, %s30
      %s33 = sphi 0, %s32
      %s47 = sphi 0, %s33
      %s51 = sphi 0, %s51
      %s53 = sphi 0, %s51
      %s54 = sphi 0, %s53
      %s68 = sphi 0, %s54
      %s72 = sphi 0, %s72
      %s74 = sphi 0, %s72
      %s75 = sphi 0, %s74
      %s89 = sphi 0, %s75
      %s93 = sphi 0, %s93
      %s95 = sphi 0, %s93
      %s96 = sphi 0, %s95
      %s110 = sphi 0, %s96
      %s114 = sphi 0, %s114
      %s116 = sphi 0, %s114
      %s117 = sphi 0, %s116
      %s131 = sphi 0, %s117
      %s135 = sphi 0, %s135
      %s137 = sphi 0, %s135
      %s138 = sphi 0, %s137
      %s152 = sphi 0, %s138
      %s156 = sphi 0, %s156
      %s158 = sphi 0, %s156
      %s159 = sphi 0, %s158
      %s173 = sphi 0, %s159
      %s179 = sphi 0, %s181
      %s182 = sphi 0, %s179
      %s183 = sphi 0, %s182
      %s199 = sphi 0, %s183
    $region4: #{attn_decoder_decode.1} parent=1 // loop_header_branch
      %25 = sbr.rel (%p23) target = $region8
    $region5: #{attn_decoder_decode.1} parent=1 // loop_body
      %s27 = ssub.s32 %s22, 1
      %s28 = ssub.s32 %s22, 2
      %s29 = sadd.s32 %s22, 1
      %s31 = sadd.s32 %s30, 1
      %p34 = scmp.eq.s32.totalorder %s22, 1
      %p35 = scmp.ne.s32.totalorder %s30, %s32
      %p36 = scmp.eq.s32.totalorder %s22, 0
      %p37 = por %p35, %p36
      %p38 = scmp.ne.s32.totalorder %s30, %s32
      %p39 = scmp.eq.s32.totalorder %s27, 1
      %p40 = por %p38, %p39
      %p41 = scmp.ne.s32.totalorder %s32, %s33
      %p42 = scmp.eq.s32.totalorder %s27, 0
      %p43 = por %p41, %p42
      %p44 = scmp.ne.s32.totalorder %s32, %s33
      %p45 = scmp.eq.s32.totalorder %s28, 1
      %p46 = por %p44, %p45
      %p48 = scmp.ne.s32.totalorder %s33, %s47
      %p49 = scmp.eq.s32.totalorder %s28, 0
      %p50 = por %p48, %p49
      %s52 = sadd.s32 %s51, 1
      %p55 = scmp.eq.s32.totalorder %s22, 1
      %p56 = scmp.ne.s32.totalorder %s51, %s53
      %p57 = scmp.eq.s32.totalorder %s22, 0
      %p58 = por %p56, %p57
      %p59 = scmp.ne.s32.totalorder %s51, %s53
      %p60 = scmp.eq.s32.totalorder %s27, 1
      %p61 = por %p59, %p60
      %p62 = scmp.ne.s32.totalorder %s53, %s54
      %p63 = scmp.eq.s32.totalorder %s27, 0
      %p64 = por %p62, %p63
      %p65 = scmp.ne.s32.totalorder %s53, %s54
      %p66 = scmp.eq.s32.totalorder %s28, 1
      %p67 = por %p65, %p66
      %p69 = scmp.ne.s32.totalorder %s54, %s68
      %p70 = scmp.eq.s32.totalorder %s28, 0
      %p71 = por %p69, %p70
      %s73 = sadd.s32 %s72, 1
      %p76 = scmp.eq.s32.totalorder %s22, 1
      %p77 = scmp.ne.s32.totalorder %s72, %s74
      %p78 = scmp.eq.s32.totalorder %s22, 0
      %p79 = por %p77, %p78
      %p80 = scmp.ne.s32.totalorder %s72, %s74
      %p81 = scmp.eq.s32.totalorder %s27, 1
      %p82 = por %p80, %p81
      %p83 = scmp.ne.s32.totalorder %s74, %s75
      %p84 = scmp.eq.s32.totalorder %s27, 0
      %p85 = por %p83, %p84
      %p86 = scmp.ne.s32.totalorder %s74, %s75
      %p87 = scmp.eq.s32.totalorder %s28, 1
      %p88 = por %p86, %p87
      %p90 = scmp.ne.s32.totalorder %s75, %s89
      %p91 = scmp.eq.s32.totalorder %s28, 0
      %p92 = por %p90, %p91
      %s94 = sadd.s32 %s93, 1
      %p97 = scmp.eq.s32.totalorder %s22, 1
      %p98 = scmp.ne.s32.totalorder %s93, %s95
      %p99 = scmp.eq.s32.totalorder %s22, 0
      %p100 = por %p98, %p99
      %p101 = scmp.ne.s32.totalorder %s93, %s95
      %p102 = scmp.eq.s32.totalorder %s27, 1
      %p103 = por %p101, %p102
      %p104 = scmp.ne.s32.totalorder %s95, %s96
      %p105 = scmp.eq.s32.totalorder %s27, 0
      %p106 = por %p104, %p105
      %p107 = scmp.ne.s32.totalorder %s95, %s96
      %p108 = scmp.eq.s32.totalorder %s28, 1
      %p109 = por %p107, %p108
      %p111 = scmp.ne.s32.totalorder %s96, %s110
      %p112 = scmp.eq.s32.totalorder %s28, 0
      %p113 = por %p111, %p112
      %s115 = sadd.s32 %s114, 1
      %p118 = scmp.eq.s32.totalorder %s22, 1
      %p119 = scmp.ne.s32.totalorder %s114, %s116
      %p120 = scmp.eq.s32.totalorder %s22, 0
      %p121 = por %p119, %p120
      %p122 = scmp.ne.s32.totalorder %s114, %s116
      %p123 = scmp.eq.s32.totalorder %s27, 1
      %p124 = por %p122, %p123
      %p125 = scmp.ne.s32.totalorder %s116, %s117
      %p126 = scmp.eq.s32.totalorder %s27, 0
      %p127 = por %p125, %p126
      %p128 = scmp.ne.s32.totalorder %s116, %s117
      %p129 = scmp.eq.s32.totalorder %s28, 1
      %p130 = por %p128, %p129
      %p132 = scmp.ne.s32.totalorder %s117, %s131
      %p133 = scmp.eq.s32.totalorder %s28, 0
      %p134 = por %p132, %p133
      %s136 = sadd.s32 %s135, 1
      %p139 = scmp.eq.s32.totalorder %s22, 1
      %p140 = scmp.ne.s32.totalorder %s135, %s137
      %p141 = scmp.eq.s32.totalorder %s22, 0
      %p142 = por %p140, %p141
      %p143 = scmp.ne.s32.totalorder %s135, %s137
      %p144 = scmp.eq.s32.totalorder %s27, 1
      %p145 = por %p143, %p144
      %p146 = scmp.ne.s32.totalorder %s137, %s138
      %p147 = scmp.eq.s32.totalorder %s27, 0
      %p148 = por %p146, %p147
      %p149 = scmp.ne.s32.totalorder %s137, %s138
      %p150 = scmp.eq.s32.totalorder %s28, 1
      %p151 = por %p149, %p150
      %p153 = scmp.ne.s32.totalorder %s138, %s152
      %p154 = scmp.eq.s32.totalorder %s28, 0
      %p155 = por %p153, %p154
      %s157 = sadd.s32 %s156, 1
      %p160 = scmp.eq.s32.totalorder %s22, 1
      %p161 = scmp.ne.s32.totalorder %s156, %s158
      %p162 = scmp.eq.s32.totalorder %s22, 0
      %p163 = por %p161, %p162
      %p164 = scmp.ne.s32.totalorder %s156, %s158
      %p165 = scmp.eq.s32.totalorder %s27, 1
      %p166 = por %p164, %p165
      %p167 = scmp.ne.s32.totalorder %s158, %s159
      %p168 = scmp.eq.s32.totalorder %s27, 0
      %p169 = por %p167, %p168
      %p170 = scmp.ne.s32.totalorder %s158, %s159
      %p171 = scmp.eq.s32.totalorder %s28, 1
      %p172 = por %p170, %p171
      %p174 = scmp.ne.s32.totalorder %s159, %s173
      %p175 = scmp.eq.s32.totalorder %s28, 0
      %p176 = por %p174, %p175
      %s177 = ssub.s32 %s22, %s29
      %p178 = scmp.eq.s32.totalorder %s177, 0
      %s180 = sadd.s32 %s179, 1
      %s181 = scalar_select %p178, %s179, %s180
      %p184 = pneg %p178
      %p185 = scmp.eq.s32.totalorder %s22, 1
      %p186 = por %p184, %p185
      %p187 = scmp.ne.s32.totalorder %s179, %s182
      %p188 = scmp.eq.s32.totalorder %s22, 0
      %p189 = por %p187, %p188
      %p190 = scmp.ne.s32.totalorder %s179, %s182
      %p191 = scmp.eq.s32.totalorder %s27, 1
      %p192 = por %p190, %p191
      %p193 = scmp.ne.s32.totalorder %s182, %s183
      %p194 = scmp.eq.s32.totalorder %s27, 0
      %p195 = por %p193, %p194
      %p196 = scmp.ne.s32.totalorder %s182, %s183
      %p197 = scmp.eq.s32.totalorder %s28, 1
      %p198 = por %p196, %p197
      %p200 = scmp.ne.s32.totalorder %s183, %s199
      %p201 = scmp.eq.s32.totalorder %s28, 0
      %p202 = por %p200, %p201
      %p203 = scmp.le.s32.totalorder 1, %s22
      %p204 = scmp.lt.s32.totalorder %s22, 3
      %p205 = pnand %p203, %p204
      %p206 = pneg %p205
      // Predicated region
      $region9: #{attn_decoder_decode.1} parent=5 // pred_check
        _
      $region10: #{attn_decoder_decode.1} parent=5 // pred_check_branch
        %208 = sbr.rel (%p205) target = $region12
      $region11: #{attn_decoder_decode.1} parent=5 // pred_region
        %s209 = ssub.s32 %s22, 1
        // Predicated region
        $region13: #{attn_decoder_decode.1} parent=11 // pred_check
          %p210 = pneg %p43
        $region14: #{attn_decoder_decode.1} parent=11 // pred_check_branch
          %212 = sbr.rel (%p210) target = $region16
        $region15: #{attn_decoder_decode.1} parent=11 // pred_region
          _
        $region16: #{attn_decoder_decode.1} parent=11 // pred_fallthru
          _
        // Predicated region
        $region17: #{attn_decoder_decode.1} parent=11 // pred_check
          %p213 = pneg %p64
        $region18: #{attn_decoder_decode.1} parent=11 // pred_check_branch
          %215 = sbr.rel (%p213) target = $region20
        $region19: #{attn_decoder_decode.1} parent=11 // pred_region
          %s217 = ssub.s32 256, 256
          %218 = vsyncadd [#allocation7], %s217
          %s219 = sshll.u32 [#allocation6], 4
          %s220 = int_to_ptr.vmem [resolvable:$true] %s219
          %225 = dma.hbm_to_vmem [thread:$0]  %s2, 256, %s220, [#allocation7], 128, 128, 8
        $region20: #{attn_decoder_decode.1} parent=11 // pred_fallthru
          _
        // Predicated region
        $region21: #{attn_decoder_decode.1} parent=11 // pred_check
          %p226 = pneg %p85
        $region22: #{attn_decoder_decode.1} parent=11 // pred_check_branch
          %228 = sbr.rel (%p226) target = $region24
        $region23: #{attn_decoder_decode.1} parent=11 // pred_region
          _
        $region24: #{attn_decoder_decode.1} parent=11 // pred_fallthru
          _
        // Predicated region
        $region25: #{attn_decoder_decode.1} parent=11 // pred_check
          %p229 = pneg %p106
        $region26: #{attn_decoder_decode.1} parent=11 // pred_check_branch
          %231 = sbr.rel (%p229) target = $region28
        $region27: #{attn_decoder_decode.1} parent=11 // pred_region
          %s233 = ssub.s32 3456, 3456
          %234 = vsyncadd [#allocation9], %s233
          %s235 = sshll.u32 [#allocation8], 4
          %s236 = int_to_ptr.vmem [resolvable:$true] %s235
          %241 = dma.hbm_to_vmem [thread:$0]  %s4, 3456, %s236, [#allocation9], 384, 384, 24
        $region28: #{attn_decoder_decode.1} parent=11 // pred_fallthru
          _
        // Predicated region
        $region29: #{attn_decoder_decode.1} parent=11 // pred_check
          %p242 = pneg %p127
        $region30: #{attn_decoder_decode.1} parent=11 // pred_check_branch
          %244 = sbr.rel (%p242) target = $region32
        $region31: #{attn_decoder_decode.1} parent=11 // pred_region
          %s246 = ssub.s32 512, 512
          %247 = vsyncadd [#allocation9], %s246
          %s248 = sshll.u32 [#allocation10], 4
          %s249 = int_to_ptr.vmem [resolvable:$true] %s248
          %254 = dma.hbm_to_vmem [thread:$0]  %s5, 512, %s249, [#allocation9], 128, 128, 8
        $region32: #{attn_decoder_decode.1} parent=11 // pred_fallthru
          _
        // Predicated region
        $region33: #{attn_decoder_decode.1} parent=11 // pred_check
          %p255 = pneg %p148
        $region34: #{attn_decoder_decode.1} parent=11 // pred_check_branch
          %257 = sbr.rel (%p255) target = $region36
        $region35: #{attn_decoder_decode.1} parent=11 // pred_region
          _
        $region36: #{attn_decoder_decode.1} parent=11 // pred_fallthru
          _
        // Predicated region
        $region37: #{attn_decoder_decode.1} parent=11 // pred_check
          %p258 = pneg %p169
        $region38: #{attn_decoder_decode.1} parent=11 // pred_check_branch
          %260 = sbr.rel (%p258) target = $region40
        $region39: #{attn_decoder_decode.1} parent=11 // pred_region
          _
        $region40: #{attn_decoder_decode.1} parent=11 // pred_fallthru
          _
      $region12: #{attn_decoder_decode.1} parent=5 // pred_fallthru
        _
      %p261 = scmp.lt.s32.totalorder %s22, 2
      // Predicated region
      $region41: #{attn_decoder_decode.1} parent=5 // pred_check
        %p262 = pneg %p261
      $region42: #{attn_decoder_decode.1} parent=5 // pred_check_branch
        %264 = sbr.rel (%p262) target = $region44
      $region43: #{attn_decoder_decode.1} parent=5 // pred_region
        _
      $region44: #{attn_decoder_decode.1} parent=5 // pred_fallthru
        _
      %p265 = scmp.le.s32.totalorder 1, %s22
      %p266 = scmp.lt.s32.totalorder %s22, 3
      %p267 = pnand %p265, %p266
      %p268 = pneg %p267
      // Predicated region
      $region45: #{attn_decoder_decode.1} parent=5 // pred_check
        _
      $region46: #{attn_decoder_decode.1} parent=5 // pred_check_branch
        %270 = sbr.rel (%p267) target = $region48
      $region47: #{attn_decoder_decode.1} parent=5 // pred_region
        %s271 = ssub.s32 %s22, 1
        // Predicated region
        $region49: #{attn_decoder_decode.1} parent=47 // pred_check
          %p272 = pneg %p64
        $region50: #{attn_decoder_decode.1} parent=47 // pred_check_branch
          %274 = sbr.rel (%p272) target = $region52
        $region51: #{attn_decoder_decode.1} parent=47 // pred_region
          %275 = dma.done [#allocation7], 256
        $region52: #{attn_decoder_decode.1} parent=47 // pred_fallthru
          _
        // Predicated region
        $region53: #{attn_decoder_decode.1} parent=47 // pred_check
          %p276 = pneg %p106
        $region54: #{attn_decoder_decode.1} parent=47 // pred_check_branch
          %278 = sbr.rel (%p276) target = $region56
        $region55: #{attn_decoder_decode.1} parent=47 // pred_region
          %279 = dma.done [#allocation9], 3456
        $region56: #{attn_decoder_decode.1} parent=47 // pred_fallthru
          _
        // Predicated region
        $region57: #{attn_decoder_decode.1} parent=47 // pred_check
          %p280 = pneg %p127
        $region58: #{attn_decoder_decode.1} parent=47 // pred_check_branch
          %282 = sbr.rel (%p280) target = $region60
        $region59: #{attn_decoder_decode.1} parent=47 // pred_region
          %283 = dma.done [#allocation9], 512
        $region60: #{attn_decoder_decode.1} parent=47 // pred_fallthru
          _
        %p284 = pneg %p43
        %p285 = pneg %p40
        %p286 = pneg %p64
        %p287 = pneg %p61
        %p288 = pneg %p85
        %p289 = pneg %p82
        %p290 = pneg %p106
        %p291 = pneg %p103
        %p292 = pneg %p127
        %p293 = pneg %p124
        %p294 = pneg %p148
        %p295 = pneg %p145
        %p296 = pneg %p169
        %p297 = pneg %p166
        %p298 = pneg %p195
        %p299 = pneg %p192
        %p300 = scmp.lt.s32.totalorder %s27, 1
        %s301 = scalar_select %p300, %s27, 1
        %s302 = smul.addr %s301, 8
        %s303 = scalar_lea.vmem %s8, %s302
        %p304 = scmp.lt.s32.totalorder %s27, 1
        %s305 = scalar_select %p304, %s27, 1
        %s306 = smul.addr %s305, 8
        %s307 = scalar_lea.vmem %s8, %s306
        %p308 = scmp.eq.s32.totalorder %s27, 0
        // Predicated region
        $region61: #{attn_decoder_decode.1} parent=47 // pred_check
          %p309 = pneg %p308
        $region62: #{attn_decoder_decode.1} parent=47 // pred_check_branch
          %311 = sbr.rel (%p309) target = $region64
        $region63: #{attn_decoder_decode.1} parent=47 // pred_region
          %v312 = vld [vmem:[%s1] sm:$0x1]
          %vm313 = vcmask 253952
          %314 = vst.msk [vmem:[#allocation2] sm:$0x1] %vm313, %v312
          %v315 = vld [vmem:[#allocation6] sm:$0xff]
          %v316 = vld [vmem:[#allocation6 + $0x8] sm:$0xff]
          %v317 = vld [vmem:[#allocation10] sm:$0xff]
          %v318 = vld [vmem:[#allocation10 + $0x8] sm:$0xff]
          %v319 = vld [vmem:[#allocation10 + $0x10] sm:$0xff]
          %v320 = vld [vmem:[#allocation10 + $0x18] sm:$0xff]
          %vm321 = vcmask 261120
          %v323 = vsel %vm321, %v315, 0
          %v326 = vsel %vm321, %v316, 0
          %328 = vmatprep.subr.mxu0 0.0
          %329 = vmatpush1.msra.mxu0 %v317
          %330 = vmatprep.subr.mxu0 0.0
          %331 = vmatpush1.msra.mxu0 %v318
          %332 = vmatprep.subr.mxu0 0.0
          %333 = vmatpush1.msra.mxu0 %v319
          %334 = vmatprep.subr.mxu0 0.0
          %335 = vmatpush1.msra.mxu0 %v320
          %336 = vmatprep.subr.mxu0 0.0
          %337 = vmatpush1.msra.mxu0 0.0
          %338 = vmatprep.subr.mxu0 0.0
          %339 = vmatpush1.msra.mxu0 0.0
          %340 = vmatprep.subr.mxu0 0.0
          %341 = vmatpush1.msra.mxu0 0.0
          %342 = vmatprep.subr.mxu0 0.0
          %343 = vmatpush1.msra.mxu0 0.0
          %344 = vmatprep.subr.mxu0 0.0
          %345 = vmatpush1.msra.mxu0 0.0
          %346 = vmatprep.subr.mxu0 0.0
          %347 = vmatpush1.msra.mxu0 0.0
          %348 = vmatprep.subr.mxu0 0.0
          %349 = vmatpush1.msra.mxu0 0.0
          %350 = vmatprep.subr.mxu0 0.0
          %351 = vmatpush1.msra.mxu0 0.0
          %352 = vmatprep.subr.mxu0 0.0
          %353 = vmatpush1.msra.mxu0 0.0
          %354 = vmatprep.subr.mxu0 0.0
          %355 = vmatpush1.msra.mxu0 0.0
          %356 = vmatprep.subr.mxu0 0.0
          %357 = vmatpush1.msra.mxu0 0.0
          %358 = vmatprep.subr.mxu0 0.0
          %359 = vmatpush1.msra.mxu0 0.0
          %360 = vmatprep.subr.mxu0 0.0
          %361 = vmatpush1.msra.mxu0 0.0
          %362 = vmatprep.subr.mxu0 0.0
          %363 = vmatpush1.msra.mxu0 0.0
          %364 = vmatprep.subr.mxu0 0.0
          %365 = vmatpush1.msra.mxu0 0.0
          %366 = vmatprep.subr.mxu0 0.0
          %367 = vmatpush1.msra.mxu0 0.0
          %368 = vmatprep.subr.mxu0 0.0
          %369 = vmatpush1.msra.mxu0 0.0
          %370 = vmatprep.subr.mxu0 0.0
          %371 = vmatpush1.msra.mxu0 0.0
          %372 = vmatprep.subr.mxu0 0.0
          %373 = vmatpush1.msra.mxu0 0.0
          %374 = vmatprep.subr.mxu0 0.0
          %375 = vmatpush1.msra.mxu0 0.0
          %376 = vmatprep.subr.mxu0 0.0
          %377 = vmatpush1.msra.mxu0 0.0
          %378 = vmatprep.subr.mxu0 0.0
          %379 = vmatpush1.msra.mxu0 0.0
          %380 = vmatprep.subr.mxu0 0.0
          %381 = vmatpush1.msra.mxu0 0.0
          %382 = vmatprep.subr.mxu0 0.0
          %383 = vmatpush1.msra.mxu0 0.0
          %384 = vmatprep.subr.mxu0 0.0
          %385 = vmatpush1.msra.mxu0 0.0
          %386 = vmatprep.subr.mxu0 0.0
          %387 = vmatpush1.msra.mxu0 0.0
          %388 = vmatprep.subr.mxu0 0.0
          %389 = vmatpush1.msra.mxu0 0.0
          %390 = vmatprep.subr.mxu0 0.0
          %391 = vmatpush1.msra.mxu0 0.0
          %392 = vmatprep.mubr.f32.mxu0 0.0
          %393 = vmatmul.mubr.f32.gmra.mrb[0].mxu0 %v323
          %v394 = vpop.f32.mrb[0].mxu0
          %v395 = vadd.f32 0.0, %v394
          %v396 = vpop.f32.mrb[0].mxu0
          %397 = vmatprep.mubr.f32.mxu0 0.0
          %398 = vmatmul.mubr.f32.gmra.mrb[0].mxu0 %v326
          %v399 = vpop.f32.mrb[0].mxu0
          %v400 = vadd.f32 0.0, %v399
          %v401 = vpop.f32.mrb[0].mxu0
          %402 = vdwg.mxu0
          %403 = vst.msk [vmem:[#allocation3] sm:$0xff] %vm321, %v395
          %404 = vst.msk [vmem:[#allocation3 + $0x8] sm:$0xff] %vm321, %v400
        $region64: #{attn_decoder_decode.1} parent=47 // pred_fallthru
          _
        %v405 = vld [vmem:[#allocation2] sm:$0x1]
        %v406 = vld [vmem:[#allocation3] sm:$0xff]
        %v407 = vld [vmem:[#allocation3 + $0x8] sm:$0xff]
        %v408 = vld [vmem:[#allocation8] sm:$0xff]
        %v409 = vld [vmem:[#allocation8 + $0x8] sm:$0xff]
        %v410 = vld [vmem:[#allocation8 + $0x10] sm:$0xff]
        %v411 = vld [vmem:[#allocation8 + $0x18] sm:$0xff]
        %v412 = vld [vmem:[#allocation8 + $0x20] sm:$0xff]
        %v413 = vld [vmem:[#allocation8 + $0x28] sm:$0xff]
        %v414 = vld [vmem:[#allocation8 + $0x30] sm:$0xff]
        %v415 = vld [vmem:[#allocation8 + $0x38] sm:$0xff]
        %v416 = vld [vmem:[#allocation8 + $0x40] sm:$0xff]
        %v417 = vld [vmem:[#allocation8 + $0x48] sm:$0xff]
        %v418 = vld [vmem:[#allocation8 + $0x50] sm:$0xff]
        %v419 = vld [vmem:[#allocation8 + $0x58] sm:$0xff]
        %v420 = vld [vmem:[#allocation8 + $0x60] sm:$0xff]
        %v421 = vld [vmem:[#allocation8 + $0x68] sm:$0xff]
        %v422 = vld [vmem:[#allocation8 + $0x70] sm:$0xff]
        %v423 = vld [vmem:[#allocation8 + $0x78] sm:$0xff]
        %v424 = vld [vmem:[#allocation8 + $0x80] sm:$0xff]
        %v425 = vld [vmem:[#allocation8 + $0x88] sm:$0xff]
        %v426 = vld [vmem:[#allocation8 + $0x90] sm:$0xff]
        %v427 = vld [vmem:[#allocation8 + $0x98] sm:$0xff]
        %v428 = vld [vmem:[#allocation8 + $0xa0] sm:$0xff]
        %v429 = vld [vmem:[#allocation8 + $0xa8] sm:$0xff]
        %v430 = vld [vmem:[#allocation8 + $0xb0] sm:$0xff]
        %v431 = vld [vmem:[#allocation8 + $0xb8] sm:$0xff]
        %v432 = vld [vmem:[#allocation8 + $0xc0] sm:$0x1]
        %v433 = vld [vmem:[#allocation8 + $0xc8] sm:$0x1]
        %v434 = vld [vmem:[#allocation8 + $0xd0] sm:$0x1]
        %v435 = vld [vmem:[%s6] sm:$0xff]
        %v436 = vld [vmem:[%s6 + $0x8] sm:$0xff]
        %v437 = vld [vmem:[%s6 + $0x10] sm:$0xff]
        %v438 = vld [vmem:[%s6 + $0x18] sm:$0xff]
        %v439 = vld [vmem:[%s6 + $0x20] sm:$0x1]
        %v440 = vld [vmem:[%s7] sm:$0xff]
        %v441 = vld [vmem:[%s7 + $0x8] sm:$0xff]
        %v442 = vld [vmem:[%s7 + $0x10] sm:$0xff]
        %v443 = vld [vmem:[%s7 + $0x18] sm:$0xff]
        %v444 = vld [vmem:[%s7 + $0x20] sm:$0x1]
        %s445 = smul.u32 %s27, 8
        %s446 = sld [smem:[#allocation5 + %s445]]
        %s447 = scalar_lea.vmem %s3, %s446
        %v448 = vld [vmem:[%s447] sm:$0x1]
        %v450 = vlaneseq
        %v451 = vshrl.u32 %v450, 7
        %v452 = vsub.s32 0, %v451
        %v453 = vrot.slane %v405, %v452
        %454 = vrot.lane.b32.xlu0 %v453, 32
        %v455 = vpop.permute.xlu0 %454
        %vm457 = vcmask 261120
        %v458 = vsel %vm457, %v448, %v455
        %vm459 = vcmask 523264
        %v460 = vsel %vm459, %v458, 1.0
        %vm461 = vcmask 531456
        %v463 = vsel %vm461, %v460, 0
        %vm465 = vcmask 1040384
        %v467 = vsel %vm465, %v432, 0
        %v470 = vsel %vm465, %v433, 0
        %v473 = vsel %vm465, %v434, 0
        %475 = vmatprep.subr.mxu0 %v409
        %476 = vmatpush1.msra.mxu0 %v408
        %477 = vmatprep.subr.mxu0 %v412
        %478 = vmatpush1.msra.mxu0 %v411
        %479 = vmatprep.subr.mxu0 %v415
        %480 = vmatpush1.msra.mxu0 %v414
        %481 = vmatprep.subr.mxu0 %v418
        %482 = vmatpush1.msra.mxu0 %v417
        %483 = vmatprep.subr.mxu0 %v421
        %484 = vmatpush1.msra.mxu0 %v420
        %485 = vmatprep.subr.mxu0 %v424
        %486 = vmatpush1.msra.mxu0 %v423
        %487 = vmatprep.subr.mxu0 %v427
        %488 = vmatpush1.msra.mxu0 %v426
        %489 = vmatprep.subr.mxu0 %v430
        %490 = vmatpush1.msra.mxu0 %v429
        %491 = vmatprep.subr.mxu0 %v470
        %492 = vmatpush1.msra.mxu0 %v467
        %493 = vmatprep.subr.mxu0 0.0
        %494 = vmatpush1.msra.mxu0 0.0
        %495 = vmatprep.subr.mxu0 0.0
        %496 = vmatpush1.msra.mxu0 0.0
        %497 = vmatprep.subr.mxu0 0.0
        %498 = vmatpush1.msra.mxu0 0.0
        %499 = vmatprep.subr.mxu0 0.0
        %500 = vmatpush1.msra.mxu0 0.0
        %501 = vmatprep.subr.mxu0 0.0
        %502 = vmatpush1.msra.mxu0 0.0
        %503 = vmatprep.subr.mxu0 0.0
        %504 = vmatpush1.msra.mxu0 0.0
        %505 = vmatprep.subr.mxu0 0.0
        %506 = vmatpush1.msra.mxu0 0.0
        %507 = vmatprep.subr.mxu0 0.0
        %508 = vmatpush1.msra.mxu0 0.0
        %509 = vmatprep.subr.mxu0 0.0
        %510 = vmatpush1.msra.mxu0 0.0
        %511 = vmatprep.subr.mxu0 0.0
        %512 = vmatpush1.msra.mxu0 0.0
        %513 = vmatprep.subr.mxu0 0.0
        %514 = vmatpush1.msra.mxu0 0.0
        %515 = vmatprep.subr.mxu0 0.0
        %516 = vmatpush1.msra.mxu0 0.0
        %517 = vmatprep.subr.mxu0 0.0
        %518 = vmatpush1.msra.mxu0 0.0
        %519 = vmatprep.subr.mxu0 0.0
        %520 = vmatpush1.msra.mxu0 0.0
        %521 = vmatprep.subr.mxu0 0.0
        %522 = vmatpush1.msra.mxu0 0.0
        %523 = vmatprep.subr.mxu0 0.0
        %524 = vmatpush1.msra.mxu0 0.0
        %525 = vmatprep.subr.mxu0 0.0
        %526 = vmatpush1.msra.mxu0 0.0
        %527 = vmatprep.subr.mxu0 0.0
        %528 = vmatpush1.msra.mxu0 0.0
        %529 = vmatprep.subr.mxu0 0.0
        %530 = vmatpush1.msra.mxu0 0.0
        %531 = vmatprep.subr.mxu0 0.0
        %532 = vmatpush1.msra.mxu0 0.0
        %533 = vmatprep.subr.mxu0 0.0
        %534 = vmatpush1.msra.mxu0 0.0
        %535 = vmatprep.subr.mxu0 0.0
        %536 = vmatpush1.msra.mxu0 0.0
        %537 = vmatprep.subr.mxu0 0.0
        %538 = vmatpush1.msra.mxu0 0.0
        %539 = vmatprep.mubr.f32.mxu0 0.0
        %540 = vmatmul.mubr.f32.gmra.mrb[0].mxu0 %v463
        %v541 = vpop.f32.mrb[0].mxu0
        %v542 = vadd.f32 0.0, %v541
        %v543 = vpop.f32.mrb[0].mxu0
        %v544 = vadd.f32 0.0, %v543
        %545 = vdwg.mxu0
        %546 = vmatprep.subr.mxu0 0.0
        %547 = vmatpush1.msra.mxu0 %v410
        %548 = vmatprep.subr.mxu0 0.0
        %549 = vmatpush1.msra.mxu0 %v413
        %550 = vmatprep.subr.mxu0 0.0
        %551 = vmatpush1.msra.mxu0 %v416
        %552 = vmatprep.subr.mxu0 0.0
        %553 = vmatpush1.msra.mxu0 %v419
        %554 = vmatprep.subr.mxu0 0.0
        %555 = vmatpush1.msra.mxu0 %v422
        %556 = vmatprep.subr.mxu0 0.0
        %557 = vmatpush1.msra.mxu0 %v425
        %558 = vmatprep.subr.mxu0 0.0
        %559 = vmatpush1.msra.mxu0 %v428
        %560 = vmatprep.subr.mxu0 0.0
        %561 = vmatpush1.msra.mxu0 %v431
        %562 = vmatprep.subr.mxu0 0.0
        %563 = vmatpush1.msra.mxu0 %v473
        %564 = vmatprep.subr.mxu0 0.0
        %565 = vmatpush1.msra.mxu0 0.0
        %566 = vmatprep.subr.mxu0 0.0
        %567 = vmatpush1.msra.mxu0 0.0
        %568 = vmatprep.subr.mxu0 0.0
        %569 = vmatpush1.msra.mxu0 0.0
        %570 = vmatprep.subr.mxu0 0.0
        %571 = vmatpush1.msra.mxu0 0.0
        %572 = vmatprep.subr.mxu0 0.0
        %573 = vmatpush1.msra.mxu0 0.0
        %574 = vmatprep.subr.mxu0 0.0
        %575 = vmatpush1.msra.mxu0 0.0
        %576 = vmatprep.subr.mxu0 0.0
        %577 = vmatpush1.msra.mxu0 0.0
        %578 = vmatprep.subr.mxu0 0.0
        %579 = vmatpush1.msra.mxu0 0.0
        %580 = vmatprep.subr.mxu0 0.0
        %581 = vmatpush1.msra.mxu0 0.0
        %582 = vmatprep.subr.mxu0 0.0
        %583 = vmatpush1.msra.mxu0 0.0
        %584 = vmatprep.subr.mxu0 0.0
        %585 = vmatpush1.msra.mxu0 0.0
        %586 = vmatprep.subr.mxu0 0.0
        %587 = vmatpush1.msra.mxu0 0.0
        %588 = vmatprep.subr.mxu0 0.0
        %589 = vmatpush1.msra.mxu0 0.0
        %590 = vmatprep.subr.mxu0 0.0
        %591 = vmatpush1.msra.mxu0 0.0
        %592 = vmatprep.subr.mxu0 0.0
        %593 = vmatpush1.msra.mxu0 0.0
        %594 = vmatprep.subr.mxu0 0.0
        %595 = vmatpush1.msra.mxu0 0.0
        %596 = vmatprep.subr.mxu0 0.0
        %597 = vmatpush1.msra.mxu0 0.0
        %598 = vmatprep.subr.mxu0 0.0
        %599 = vmatpush1.msra.mxu0 0.0
        %600 = vmatprep.subr.mxu0 0.0
        %601 = vmatpush1.msra.mxu0 0.0
        %602 = vmatprep.subr.mxu0 0.0
        %603 = vmatpush1.msra.mxu0 0.0
        %604 = vmatprep.subr.mxu0 0.0
        %605 = vmatpush1.msra.mxu0 0.0
        %606 = vmatprep.subr.mxu0 0.0
        %607 = vmatpush1.msra.mxu0 0.0
        %608 = vmatprep.subr.mxu0 0.0
        %609 = vmatpush1.msra.mxu0 0.0
        %610 = vmatprep.mubr.f32.mxu0 0.0
        %611 = vmatmul.mubr.f32.gmra.mrb[0].mxu0 %v463
        %v612 = vpop.f32.mrb[0].mxu0
        %v613 = vadd.f32 0.0, %v612
        %v614 = vpop.f32.mrb[0].mxu0
        %615 = vdwg.mxu0
        %vm616 = vcmask 122880
        %v617 = vsel %vm616, %v542, -inf
        %618 = vmax.xlane.f32.xlu0 %v617
        %v619 = vpop.xlane.xlu0 %618
        %v620 = vsub.f32 %v542, %v619
        %v621 = vmul.f32 %v620, 1.442695
        %v622 = vpow.pop %v621
        %v623 = vsel %vm616, %v622, 0.0
        %624 = vadd.xlane.f32.xlu0 %v623
        %v625 = vpop.xlane.xlu0 %624
        %v626 = vrcp.pop %v625
        %v627 = vmul.f32 %v622, %v626
        %vm628 = vcmask 130048
        %v630 = vsel %vm628, %v627, 0
        %632 = vmatprep.subr.mxu0 0.0
        %633 = vmatpush1.msra.mxu0 %v406
        %634 = vmatprep.subr.mxu0 0.0
        %635 = vmatpush1.msra.mxu0 %v407
        %636 = vmatprep.subr.mxu0 0.0
        %637 = vmatpush1.msra.mxu0 0.0
        %638 = vmatprep.subr.mxu0 0.0
        %639 = vmatpush1.msra.mxu0 0.0
        %640 = vmatprep.subr.mxu0 0.0
        %641 = vmatpush1.msra.mxu0 0.0
        %642 = vmatprep.subr.mxu0 0.0
        %643 = vmatpush1.msra.mxu0 0.0
        %644 = vmatprep.subr.mxu0 0.0
        %645 = vmatpush1.msra.mxu0 0.0
        %646 = vmatprep.subr.mxu0 0.0
        %647 = vmatpush1.msra.mxu0 0.0
        %648 = vmatprep.subr.mxu0 0.0
        %649 = vmatpush1.msra.mxu0 0.0
        %650 = vmatprep.subr.mxu0 0.0
        %651 = vmatpush1.msra.mxu0 0.0
        %652 = vmatprep.subr.mxu0 0.0
        %653 = vmatpush1.msra.mxu0 0.0
        %654 = vmatprep.subr.mxu0 0.0
        %655 = vmatpush1.msra.mxu0 0.0
        %656 = vmatprep.subr.mxu0 0.0
        %657 = vmatpush1.msra.mxu0 0.0
        %658 = vmatprep.subr.mxu0 0.0
        %659 = vmatpush1.msra.mxu0 0.0
        %660 = vmatprep.subr.mxu0 0.0
        %661 = vmatpush1.msra.mxu0 0.0
        %662 = vmatprep.subr.mxu0 0.0
        %663 = vmatpush1.msra.mxu0 0.0
        %664 = vmatprep.subr.mxu0 0.0
        %665 = vmatpush1.msra.mxu0 0.0
        %666 = vmatprep.subr.mxu0 0.0
        %667 = vmatpush1.msra.mxu0 0.0
        %668 = vmatprep.subr.mxu0 0.0
        %669 = vmatpush1.msra.mxu0 0.0
        %670 = vmatprep.subr.mxu0 0.0
        %671 = vmatpush1.msra.mxu0 0.0
        %672 = vmatprep.subr.mxu0 0.0
        %673 = vmatpush1.msra.mxu0 0.0
        %674 = vmatprep.subr.mxu0 0.0
        %675 = vmatpush1.msra.mxu0 0.0
        %676 = vmatprep.subr.mxu0 0.0
        %677 = vmatpush1.msra.mxu0 0.0
        %678 = vmatprep.subr.mxu0 0.0
        %679 = vmatpush1.msra.mxu0 0.0
        %680 = vmatprep.subr.mxu0 0.0
        %681 = vmatpush1.msra.mxu0 0.0
        %682 = vmatprep.subr.mxu0 0.0
        %683 = vmatpush1.msra.mxu0 0.0
        %684 = vmatprep.subr.mxu0 0.0
        %685 = vmatpush1.msra.mxu0 0.0
        %686 = vmatprep.subr.mxu0 0.0
        %687 = vmatpush1.msra.mxu0 0.0
        %688 = vmatprep.subr.mxu0 0.0
        %689 = vmatpush1.msra.mxu0 0.0
        %690 = vmatprep.subr.mxu0 0.0
        %691 = vmatpush1.msra.mxu0 0.0
        %692 = vmatprep.subr.mxu0 0.0
        %693 = vmatpush1.msra.mxu0 0.0
        %694 = vmatprep.subr.mxu0 0.0
        %695 = vmatpush1.msra.mxu0 0.0
        %696 = vmatprep.mubr.f32.mxu0 0.0
        %697 = vmatmul.mubr.f32.gmra.mrb[0].mxu0 %v630
        %v698 = vpop.f32.mrb[0].mxu0
        %v699 = vadd.f32 0.0, %v698
        %v700 = vpop.f32.mrb[0].mxu0
        %701 = vdwg.mxu0
        %v702 = vadd.f32 %v613, %v699
        %v703 = vmax.f32 %v702, 0.0
        %v704 = vsel %vm457, %v703, 1.0
        %vm705 = vcmask 269312
        %v707 = vsel %vm705, %v704, 0
        %v710 = vsel %vm465, %v439, 0
        %712 = vmatprep.subr.mxu0 0.0
        %713 = vmatpush1.msra.mxu0 %v435
        %714 = vmatprep.subr.mxu0 0.0
        %715 = vmatpush1.msra.mxu0 %v436
        %716 = vmatprep.subr.mxu0 0.0
        %717 = vmatpush1.msra.mxu0 %v437
        %718 = vmatprep.subr.mxu0 0.0
        %719 = vmatpush1.msra.mxu0 %v438
        %720 = vmatprep.subr.mxu0 0.0
        %721 = vmatpush1.msra.mxu0 %v710
        %722 = vmatprep.subr.mxu0 0.0
        %723 = vmatpush1.msra.mxu0 0.0
        %724 = vmatprep.subr.mxu0 0.0
        %725 = vmatpush1.msra.mxu0 0.0
        %726 = vmatprep.subr.mxu0 0.0
        %727 = vmatpush1.msra.mxu0 0.0
        %728 = vmatprep.subr.mxu0 0.0
        %729 = vmatpush1.msra.mxu0 0.0
        %730 = vmatprep.subr.mxu0 0.0
        %731 = vmatpush1.msra.mxu0 0.0
        %732 = vmatprep.subr.mxu0 0.0
        %733 = vmatpush1.msra.mxu0 0.0
        %734 = vmatprep.subr.mxu0 0.0
        %735 = vmatpush1.msra.mxu0 0.0
        %736 = vmatprep.subr.mxu0 0.0
        %737 = vmatpush1.msra.mxu0 0.0
        %738 = vmatprep.subr.mxu0 0.0
        %739 = vmatpush1.msra.mxu0 0.0
        %740 = vmatprep.subr.mxu0 0.0
        %741 = vmatpush1.msra.mxu0 0.0
        %742 = vmatprep.subr.mxu0 0.0
        %743 = vmatpush1.msra.mxu0 0.0
        %744 = vmatprep.subr.mxu0 0.0
        %745 = vmatpush1.msra.mxu0 0.0
        %746 = vmatprep.subr.mxu0 0.0
        %747 = vmatpush1.msra.mxu0 0.0
        %748 = vmatprep.subr.mxu0 0.0
        %749 = vmatpush1.msra.mxu0 0.0
        %750 = vmatprep.subr.mxu0 0.0
        %751 = vmatpush1.msra.mxu0 0.0
        %752 = vmatprep.subr.mxu0 0.0
        %753 = vmatpush1.msra.mxu0 0.0
        %754 = vmatprep.subr.mxu0 0.0
        %755 = vmatpush1.msra.mxu0 0.0
        %756 = vmatprep.subr.mxu0 0.0
        %757 = vmatpush1.msra.mxu0 0.0
        %758 = vmatprep.subr.mxu0 0.0
        %759 = vmatpush1.msra.mxu0 0.0
        %760 = vmatprep.subr.mxu0 0.0
        %761 = vmatpush1.msra.mxu0 0.0
        %762 = vmatprep.subr.mxu0 0.0
        %763 = vmatpush1.msra.mxu0 0.0
        %764 = vmatprep.subr.mxu0 0.0
        %765 = vmatpush1.msra.mxu0 0.0
        %766 = vmatprep.subr.mxu0 0.0
        %767 = vmatpush1.msra.mxu0 0.0
        %768 = vmatprep.subr.mxu0 0.0
        %769 = vmatpush1.msra.mxu0 0.0
        %770 = vmatprep.subr.mxu0 0.0
        %771 = vmatpush1.msra.mxu0 0.0
        %772 = vmatprep.subr.mxu0 0.0
        %773 = vmatpush1.msra.mxu0 0.0
        %774 = vmatprep.subr.mxu0 0.0
        %775 = vmatpush1.msra.mxu0 0.0
        %776 = vmatprep.mubr.f32.mxu0 0.0
        %777 = vmatmul.mubr.f32.gmra.mrb[0].mxu0 %v707
        %v778 = vpop.f32.mrb[0].mxu0
        %v779 = vadd.f32 0.0, %v778
        %v780 = vpop.f32.mrb[0].mxu0
        %781 = vdwg.mxu0
        %v782 = vadd.f32 %v779, %v544
        %v783 = vxor.u32 %v782, 2147483648
        %v784 = vmul.f32 %v783, 1.442695
        %v785 = vpow.pop %v784
        %v786 = vadd.f32 %v785, 1.0
        %v787 = vrcp.pop %v786
        %v788 = vmul.f32 1.0, %v787
        %790 = vrot.lane.b32.xlu0 %v544, 64
        %v791 = vpop.permute.xlu0 %790
        %v793 = vmul.f32 %v788, %v791
        %795 = vrot.lane.b32.xlu0 %v793, 64
        %v796 = vpop.permute.xlu0 %795
        %v798 = vadd.f32 %v779, %v796
        %v799 = vtanh.pop %v798
        %v800 = vsub.f32 1.0, %v788
        %802 = vrot.lane.b32.xlu0 %v799, 96
        %v803 = vpop.permute.xlu0 %802
        %v805 = vmul.f32 %v800, %v803
        %v806 = vmul.f32 %v788, %v455
        %v807 = vadd.f32 %v805, %v806
        %809 = vrot.lane.b32.xlu0 %v807, 96
        %v810 = vpop.permute.xlu0 %809
        %v812 = vsel %vm457, %v810, 1.0
        %v814 = vsel %vm705, %v812, 0
        %v817 = vsel %vm465, %v444, 0
        %819 = vmatprep.subr.mxu0 0.0
        %820 = vmatpush1.msra.mxu0 %v440
        %821 = vmatprep.subr.mxu0 0.0
        %822 = vmatpush1.msra.mxu0 %v441
        %823 = vmatprep.subr.mxu0 0.0
        %824 = vmatpush1.msra.mxu0 %v442
        %825 = vmatprep.subr.mxu0 0.0
        %826 = vmatpush1.msra.mxu0 %v443
        %827 = vmatprep.subr.mxu0 0.0
        %828 = vmatpush1.msra.mxu0 %v817
        %829 = vmatprep.subr.mxu0 0.0
        %830 = vmatpush1.msra.mxu0 0.0
        %831 = vmatprep.subr.mxu0 0.0
        %832 = vmatpush1.msra.mxu0 0.0
        %833 = vmatprep.subr.mxu0 0.0
        %834 = vmatpush1.msra.mxu0 0.0
        %835 = vmatprep.subr.mxu0 0.0
        %836 = vmatpush1.msra.mxu0 0.0
        %837 = vmatprep.subr.mxu0 0.0
        %838 = vmatpush1.msra.mxu0 0.0
        %839 = vmatprep.subr.mxu0 0.0
        %840 = vmatpush1.msra.mxu0 0.0
        %841 = vmatprep.subr.mxu0 0.0
        %842 = vmatpush1.msra.mxu0 0.0
        %843 = vmatprep.subr.mxu0 0.0
        %844 = vmatpush1.msra.mxu0 0.0
        %845 = vmatprep.subr.mxu0 0.0
        %846 = vmatpush1.msra.mxu0 0.0
        %847 = vmatprep.subr.mxu0 0.0
        %848 = vmatpush1.msra.mxu0 0.0
        %849 = vmatprep.subr.mxu0 0.0
        %850 = vmatpush1.msra.mxu0 0.0
        %851 = vmatprep.subr.mxu0 0.0
        %852 = vmatpush1.msra.mxu0 0.0
        %853 = vmatprep.subr.mxu0 0.0
        %854 = vmatpush1.msra.mxu0 0.0
        %855 = vmatprep.subr.mxu0 0.0
        %856 = vmatpush1.msra.mxu0 0.0
        %857 = vmatprep.subr.mxu0 0.0
        %858 = vmatpush1.msra.mxu0 0.0
        %859 = vmatprep.subr.mxu0 0.0
        %860 = vmatpush1.msra.mxu0 0.0
        %861 = vmatprep.subr.mxu0 0.0
        %862 = vmatpush1.msra.mxu0 0.0
        %863 = vmatprep.subr.mxu0 0.0
        %864 = vmatpush1.msra.mxu0 0.0
        %865 = vmatprep.subr.mxu0 0.0
        %866 = vmatpush1.msra.mxu0 0.0
        %867 = vmatprep.subr.mxu0 0.0
        %868 = vmatpush1.msra.mxu0 0.0
        %869 = vmatprep.subr.mxu0 0.0
        %870 = vmatpush1.msra.mxu0 0.0
        %871 = vmatprep.subr.mxu0 0.0
        %872 = vmatpush1.msra.mxu0 0.0
        %873 = vmatprep.subr.mxu0 0.0
        %874 = vmatpush1.msra.mxu0 0.0
        %875 = vmatprep.subr.mxu0 0.0
        %876 = vmatpush1.msra.mxu0 0.0
        %877 = vmatprep.subr.mxu0 0.0
        %878 = vmatpush1.msra.mxu0 0.0
        %879 = vmatprep.subr.mxu0 0.0
        %880 = vmatpush1.msra.mxu0 0.0
        %881 = vmatprep.subr.mxu0 0.0
        %882 = vmatpush1.msra.mxu0 0.0
        %883 = vmatprep.mubr.f32.mxu0 0.0
        %884 = vmatmul.mubr.f32.gmra.mrb[0].mxu0 %v814
        %v885 = vpop.f32.mrb[0].mxu0
        %v886 = vadd.f32 0.0, %v885
        %v887 = vpop.f32.mrb[0].mxu0
        %888 = vdwg.mxu0
        %vm889 = vcmask 319488
        %v890 = vsel %vm889, %v886, -inf
        %891 = vmax.xlane.f32.xlu0 %v890
        %v892 = vpop.xlane.xlu0 %891
        %v893 = vsub.f32 %v886, %v892
        %v894 = vmul.f32 %v893, 1.442695
        %v895 = vpow.pop %v894
        %v896 = vsel %vm889, %v895, 0.0
        %897 = vadd.xlane.f32.xlu0 %v896
        %v898 = vpop.xlane.xlu0 %897
        %v899 = vlog2.pop %v898
        %v900 = vmul.f32 %v899, 0.6931472
        %v901 = vsub.f32 %v893, %v900
        %902 = vrot.lane.b32.xlu0 %v807, 8
        %v903 = vpop.permute.xlu0 %902
        %905 = vrot.lane.b32.xlu0 %v627, 72
        %v906 = vpop.permute.xlu0 %905
        %vm908 = vcmask 326656
        %v909 = vsel %vm908, %v901, %v903
        %vm910 = vcmask 588800
        %v911 = vsel %vm910, %v909, %v906
        %vm912 = vcmask 719872
        %v913 = vsel %vm912, %v911, 0.0
        %s914 = sadd.s32 %s445, 1
        %s915 = sld [smem:[#allocation5 + %s914]]
        %s916 = scalar_lea.vmem %s3, %s915
        %v917 = vld [vmem:[%s916] sm:$0x1]
        %v918 = vsel %vm457, %v917, %v807
        %v919 = vsel %vm459, %v918, 1.0
        %v921 = vsel %vm461, %v919, 0
        %923 = vmatprep.subr.mxu0 %v409
        %924 = vmatpush1.msra.mxu0 %v408
        %925 = vmatprep.subr.mxu0 %v412
        %926 = vmatpush1.msra.mxu0 %v411
        %927 = vmatprep.subr.mxu0 %v415
        %928 = vmatpush1.msra.mxu0 %v414
        %929 = vmatprep.subr.mxu0 %v418
        %930 = vmatpush1.msra.mxu0 %v417
        %931 = vmatprep.subr.mxu0 %v421
        %932 = vmatpush1.msra.mxu0 %v420
        %933 = vmatprep.subr.mxu0 %v424
        %934 = vmatpush1.msra.mxu0 %v423
        %935 = vmatprep.subr.mxu0 %v427
        %936 = vmatpush1.msra.mxu0 %v426
        %937 = vmatprep.subr.mxu0 %v430
        %938 = vmatpush1.msra.mxu0 %v429
        %939 = vmatprep.subr.mxu0 %v470
        %940 = vmatpush1.msra.mxu0 %v467
        %941 = vmatprep.subr.mxu0 0.0
        %942 = vmatpush1.msra.mxu0 0.0
        %943 = vmatprep.subr.mxu0 0.0
        %944 = vmatpush1.msra.mxu0 0.0
        %945 = vmatprep.subr.mxu0 0.0
        %946 = vmatpush1.msra.mxu0 0.0
        %947 = vmatprep.subr.mxu0 0.0
        %948 = vmatpush1.msra.mxu0 0.0
        %949 = vmatprep.subr.mxu0 0.0
        %950 = vmatpush1.msra.mxu0 0.0
        %951 = vmatprep.subr.mxu0 0.0
        %952 = vmatpush1.msra.mxu0 0.0
        %953 = vmatprep.subr.mxu0 0.0
        %954 = vmatpush1.msra.mxu0 0.0
        %955 = vmatprep.subr.mxu0 0.0
        %956 = vmatpush1.msra.mxu0 0.0
        %957 = vmatprep.subr.mxu0 0.0
        %958 = vmatpush1.msra.mxu0 0.0
        %959 = vmatprep.subr.mxu0 0.0
        %960 = vmatpush1.msra.mxu0 0.0
        %961 = vmatprep.subr.mxu0 0.0
        %962 = vmatpush1.msra.mxu0 0.0
        %963 = vmatprep.subr.mxu0 0.0
        %964 = vmatpush1.msra.mxu0 0.0
        %965 = vmatprep.subr.mxu0 0.0
        %966 = vmatpush1.msra.mxu0 0.0
        %967 = vmatprep.subr.mxu0 0.0
        %968 = vmatpush1.msra.mxu0 0.0
        %969 = vmatprep.subr.mxu0 0.0
        %970 = vmatpush1.msra.mxu0 0.0
        %971 = vmatprep.subr.mxu0 0.0
        %972 = vmatpush1.msra.mxu0 0.0
        %973 = vmatprep.subr.mxu0 0.0
        %974 = vmatpush1.msra.mxu0 0.0
        %975 = vmatprep.subr.mxu0 0.0
        %976 = vmatpush1.msra.mxu0 0.0
        %977 = vmatprep.subr.mxu0 0.0
        %978 = vmatpush1.msra.mxu0 0.0
        %979 = vmatprep.subr.mxu0 0.0
        %980 = vmatpush1.msra.mxu0 0.0
        %981 = vmatprep.subr.mxu0 0.0
        %982 = vmatpush1.msra.mxu0 0.0
        %983 = vmatprep.subr.mxu0 0.0
        %984 = vmatpush1.msra.mxu0 0.0
        %985 = vmatprep.subr.mxu0 0.0
        %986 = vmatpush1.msra.mxu0 0.0
        %987 = vmatprep.mubr.f32.mxu0 0.0
        %988 = vmatmul.mubr.f32.gmra.mrb[0].mxu0 %v921
        %v989 = vpop.f32.mrb[0].mxu0
        %v990 = vadd.f32 0.0, %v989
        %v991 = vpop.f32.mrb[0].mxu0
        %v992 = vadd.f32 0.0, %v991
        %993 = vdwg.mxu0
        %994 = vmatprep.subr.mxu0 0.0
        %995 = vmatpush1.msra.mxu0 %v410
        %996 = vmatprep.subr.mxu0 0.0
        %997 = vmatpush1.msra.mxu0 %v413
        %998 = vmatprep.subr.mxu0 0.0
        %999 = vmatpush1.msra.mxu0 %v416
        %1000 = vmatprep.subr.mxu0 0.0
        %1001 = vmatpush1.msra.mxu0 %v419
        %1002 = vmatprep.subr.mxu0 0.0
        %1003 = vmatpush1.msra.mxu0 %v422
        %1004 = vmatprep.subr.mxu0 0.0
        %1005 = vmatpush1.msra.mxu0 %v425
        %1006 = vmatprep.subr.mxu0 0.0
        %1007 = vmatpush1.msra.mxu0 %v428
        %1008 = vmatprep.subr.mxu0 0.0
        %1009 = vmatpush1.msra.mxu0 %v431
        %1010 = vmatprep.subr.mxu0 0.0
        %1011 = vmatpush1.msra.mxu0 %v473
        %1012 = vmatprep.subr.mxu0 0.0
        %1013 = vmatpush1.msra.mxu0 0.0
        %1014 = vmatprep.subr.mxu0 0.0
        %1015 = vmatpush1.msra.mxu0 0.0
        %1016 = vmatprep.subr.mxu0 0.0
        %1017 = vmatpush1.msra.mxu0 0.0
        %1018 = vmatprep.subr.mxu0 0.0
        %1019 = vmatpush1.msra.mxu0 0.0
        %1020 = vmatprep.subr.mxu0 0.0
        %1021 = vmatpush1.msra.mxu0 0.0
        %1022 = vmatprep.subr.mxu0 0.0
        %1023 = vmatpush1.msra.mxu0 0.0
        %1024 = vmatprep.subr.mxu0 0.0
        %1025 = vmatpush1.msra.mxu0 0.0
        %1026 = vmatprep.subr.mxu0 0.0
        %1027 = vmatpush1.msra.mxu0 0.0
        %1028 = vmatprep.subr.mxu0 0.0
        %1029 = vmatpush1.msra.mxu0 0.0
        %1030 = vmatprep.subr.mxu0 0.0
        %1031 = vmatpush1.msra.mxu0 0.0
        %1032 = vmatprep.subr.mxu0 0.0
        %1033 = vmatpush1.msra.mxu0 0.0
        %1034 = vmatprep.subr.mxu0 0.0
        %1035 = vmatpush1.msra.mxu0 0.0
        %1036 = vmatprep.subr.mxu0 0.0
        %1037 = vmatpush1.msra.mxu0 0.0
        %1038 = vmatprep.subr.mxu0 0.0
        %1039 = vmatpush1.msra.mxu0 0.0
        %1040 = vmatprep.subr.mxu0 0.0
        %1041 = vmatpush1.msra.mxu0 0.0
        %1042 = vmatprep.subr.mxu0 0.0
        %1043 = vmatpush1.msra.mxu0 0.0
        %1044 = vmatprep.subr.mxu0 0.0
        %1045 = vmatpush1.msra.mxu0 0.0
        %1046 = vmatprep.subr.mxu0 0.0
        %1047 = vmatpush1.msra.mxu0 0.0
        %1048 = vmatprep.subr.mxu0 0.0
        %1049 = vmatpush1.msra.mxu0 0.0
        %1050 = vmatprep.subr.mxu0 0.0
        %1051 = vmatpush1.msra.mxu0 0.0
        %1052 = vmatprep.subr.mxu0 0.0
        %1053 = vmatpush1.msra.mxu0 0.0
        %1054 = vmatprep.subr.mxu0 0.0
        %1055 = vmatpush1.msra.mxu0 0.0
        %1056 = vmatprep.subr.mxu0 0.0
        %1057 = vmatpush1.msra.mxu0 0.0
        %1058 = vmatprep.mubr.f32.mxu0 0.0
        %1059 = vmatmul.mubr.f32.gmra.mrb[0].mxu0 %v921
        %v1060 = vpop.f32.mrb[0].mxu0
        %v1061 = vadd.f32 0.0, %v1060
        %v1062 = vpop.f32.mrb[0].mxu0
        %1063 = vdwg.mxu0
        %v1064 = vsel %vm616, %v990, -inf
        %1065 = vmax.xlane.f32.xlu0 %v1064
        %v1066 = vpop.xlane.xlu0 %1065
        %v1067 = vsub.f32 %v990, %v1066
        %v1068 = vmul.f32 %v1067, 1.442695
        %v1069 = vpow.pop %v1068
        %v1070 = vsel %vm616, %v1069, 0.0
        %1071 = vadd.xlane.f32.xlu0 %v1070
        %v1072 = vpop.xlane.xlu0 %1071
        %v1073 = vrcp.pop %v1072
        %v1074 = vmul.f32 %v1069, %v1073
        %v1076 = vsel %vm628, %v1074, 0
        %1078 = vmatprep.subr.mxu0 0.0
        %1079 = vmatpush1.msra.mxu0 %v406
        %1080 = vmatprep.subr.mxu0 0.0
        %1081 = vmatpush1.msra.mxu0 %v407
        %1082 = vmatprep.subr.mxu0 0.0
        %1083 = vmatpush1.msra.mxu0 0.0
        %1084 = vmatprep.subr.mxu0 0.0
        %1085 = vmatpush1.msra.mxu0 0.0
        %1086 = vmatprep.subr.mxu0 0.0
        %1087 = vmatpush1.msra.mxu0 0.0
        %1088 = vmatprep.subr.mxu0 0.0
        %1089 = vmatpush1.msra.mxu0 0.0
        %1090 = vmatprep.subr.mxu0 0.0
        %1091 = vmatpush1.msra.mxu0 0.0
        %1092 = vmatprep.subr.mxu0 0.0
        %1093 = vmatpush1.msra.mxu0 0.0
        %1094 = vmatprep.subr.mxu0 0.0
        %1095 = vmatpush1.msra.mxu0 0.0
        %1096 = vmatprep.subr.mxu0 0.0
        %1097 = vmatpush1.msra.mxu0 0.0
        %1098 = vmatprep.subr.mxu0 0.0
        %1099 = vmatpush1.msra.mxu0 0.0
        %1100 = vmatprep.subr.mxu0 0.0
        %1101 = vmatpush1.msra.mxu0 0.0
        %1102 = vmatprep.subr.mxu0 0.0
        %1103 = vmatpush1.msra.mxu0 0.0
        %1104 = vmatprep.subr.mxu0 0.0
        %1105 = vmatpush1.msra.mxu0 0.0
        %1106 = vmatprep.subr.mxu0 0.0
        %1107 = vmatpush1.msra.mxu0 0.0
        %1108 = vmatprep.subr.mxu0 0.0
        %1109 = vmatpush1.msra.mxu0 0.0
        %1110 = vmatprep.subr.mxu0 0.0
        %1111 = vmatpush1.msra.mxu0 0.0
        %1112 = vmatprep.subr.mxu0 0.0
        %1113 = vmatpush1.msra.mxu0 0.0
        %1114 = vmatprep.subr.mxu0 0.0
        %1115 = vmatpush1.msra.mxu0 0.0
        %1116 = vmatprep.subr.mxu0 0.0
        %1117 = vmatpush1.msra.mxu0 0.0
        %1118 = vmatprep.subr.mxu0 0.0
        %1119 = vmatpush1.msra.mxu0 0.0
        %1120 = vmatprep.subr.mxu0 0.0
        %1121 = vmatpush1.msra.mxu0 0.0
        %1122 = vmatprep.subr.mxu0 0.0
        %1123 = vmatpush1.msra.mxu0 0.0
        %1124 = vmatprep.subr.mxu0 0.0
        %1125 = vmatpush1.msra.mxu0 0.0
        %1126 = vmatprep.subr.mxu0 0.0
        %1127 = vmatpush1.msra.mxu0 0.0
        %1128 = vmatprep.subr.mxu0 0.0
        %1129 = vmatpush1.msra.mxu0 0.0
        %1130 = vmatprep.subr.mxu0 0.0
        %1131 = vmatpush1.msra.mxu0 0.0
        %1132 = vmatprep.subr.mxu0 0.0
        %1133 = vmatpush1.msra.mxu0 0.0
        %1134 = vmatprep.subr.mxu0 0.0
        %1135 = vmatpush1.msra.mxu0 0.0
        %1136 = vmatprep.subr.mxu0 0.0
        %1137 = vmatpush1.msra.mxu0 0.0
        %1138 = vmatprep.subr.mxu0 0.0
        %1139 = vmatpush1.msra.mxu0 0.0
        %1140 = vmatprep.subr.mxu0 0.0
        %1141 = vmatpush1.msra.mxu0 0.0
        %1142 = vmatprep.mubr.f32.mxu0 0.0
        %1143 = vmatmul.mubr.f32.gmra.mrb[0].mxu0 %v1076
        %v1144 = vpop.f32.mrb[0].mxu0
        %v1145 = vadd.f32 0.0, %v1144
        %v1146 = vpop.f32.mrb[0].mxu0
        %1147 = vdwg.mxu0
        %v1148 = vadd.f32 %v1061, %v1145
        %v1149 = vmax.f32 %v1148, 0.0
        %v1150 = vsel %vm457, %v1149, 1.0
        %v1152 = vsel %vm705, %v1150, 0
        %1154 = vmatprep.subr.mxu0 0.0
        %1155 = vmatpush1.msra.mxu0 %v435
        %1156 = vmatprep.subr.mxu0 0.0
        %1157 = vmatpush1.msra.mxu0 %v436
        %1158 = vmatprep.subr.mxu0 0.0
        %1159 = vmatpush1.msra.mxu0 %v437
        %1160 = vmatprep.subr.mxu0 0.0
        %1161 = vmatpush1.msra.mxu0 %v438
        %1162 = vmatprep.subr.mxu0 0.0
        %1163 = vmatpush1.msra.mxu0 %v710
        %1164 = vmatprep.subr.mxu0 0.0
        %1165 = vmatpush1.msra.mxu0 0.0
        %1166 = vmatprep.subr.mxu0 0.0
        %1167 = vmatpush1.msra.mxu0 0.0
        %1168 = vmatprep.subr.mxu0 0.0
        %1169 = vmatpush1.msra.mxu0 0.0
        %1170 = vmatprep.subr.mxu0 0.0
        %1171 = vmatpush1.msra.mxu0 0.0
        %1172 = vmatprep.subr.mxu0 0.0
        %1173 = vmatpush1.msra.mxu0 0.0
        %1174 = vmatprep.subr.mxu0 0.0
        %1175 = vmatpush1.msra.mxu0 0.0
        %1176 = vmatprep.subr.mxu0 0.0
        %1177 = vmatpush1.msra.mxu0 0.0
        %1178 = vmatprep.subr.mxu0 0.0
        %1179 = vmatpush1.msra.mxu0 0.0
        %1180 = vmatprep.subr.mxu0 0.0
        %1181 = vmatpush1.msra.mxu0 0.0
        %1182 = vmatprep.subr.mxu0 0.0
        %1183 = vmatpush1.msra.mxu0 0.0
        %1184 = vmatprep.subr.mxu0 0.0
        %1185 = vmatpush1.msra.mxu0 0.0
        %1186 = vmatprep.subr.mxu0 0.0
        %1187 = vmatpush1.msra.mxu0 0.0
        %1188 = vmatprep.subr.mxu0 0.0
        %1189 = vmatpush1.msra.mxu0 0.0
        %1190 = vmatprep.subr.mxu0 0.0
        %1191 = vmatpush1.msra.mxu0 0.0
        %1192 = vmatprep.subr.mxu0 0.0
        %1193 = vmatpush1.msra.mxu0 0.0
        %1194 = vmatprep.subr.mxu0 0.0
        %1195 = vmatpush1.msra.mxu0 0.0
        %1196 = vmatprep.subr.mxu0 0.0
        %1197 = vmatpush1.msra.mxu0 0.0
        %1198 = vmatprep.subr.mxu0 0.0
        %1199 = vmatpush1.msra.mxu0 0.0
        %1200 = vmatprep.subr.mxu0 0.0
        %1201 = vmatpush1.msra.mxu0 0.0
        %1202 = vmatprep.subr.mxu0 0.0
        %1203 = vmatpush1.msra.mxu0 0.0
        %1204 = vmatprep.subr.mxu0 0.0
        %1205 = vmatpush1.msra.mxu0 0.0
        %1206 = vmatprep.subr.mxu0 0.0
        %1207 = vmatpush1.msra.mxu0 0.0
        %1208 = vmatprep.subr.mxu0 0.0
        %1209 = vmatpush1.msra.mxu0 0.0
        %1210 = vmatprep.subr.mxu0 0.0
        %1211 = vmatpush1.msra.mxu0 0.0
        %1212 = vmatprep.subr.mxu0 0.0
        %1213 = vmatpush1.msra.mxu0 0.0
        %1214 = vmatprep.subr.mxu0 0.0
        %1215 = vmatpush1.msra.mxu0 0.0
        %1216 = vmatprep.subr.mxu0 0.0
        %1217 = vmatpush1.msra.mxu0 0.0
        %1218 = vmatprep.mubr.f32.mxu0 0.0
        %1219 = vmatmul.mubr.f32.gmra.mrb[0].mxu0 %v1152
        %v1220 = vpop.f32.mrb[0].mxu0
        %v1221 = vadd.f32 0.0, %v1220
        %v1222 = vpop.f32.mrb[0].mxu0
        %1223 = vdwg.mxu0
        %v1224 = vadd.f32 %v1221, %v992
        %v1225 = vxor.u32 %v1224, 2147483648
        %v1226 = vmul.f32 %v1225, 1.442695
        %v1227 = vpow.pop %v1226
        %v1228 = vadd.f32 %v1227, 1.0
        %v1229 = vrcp.pop %v1228
        %v1230 = vmul.f32 1.0, %v1229
        %1232 = vrot.lane.b32.xlu0 %v992, 64
        %v1233 = vpop.permute.xlu0 %1232
        %v1235 = vmul.f32 %v1230, %v1233
        %1237 = vrot.lane.b32.xlu0 %v1235, 64
        %v1238 = vpop.permute.xlu0 %1237
        %v1240 = vadd.f32 %v1221, %v1238
        %v1241 = vtanh.pop %v1240
        %v1242 = vsub.f32 1.0, %v1230
        %1244 = vrot.lane.b32.xlu0 %v1241, 96
        %v1245 = vpop.permute.xlu0 %1244
        %v1247 = vmul.f32 %v1242, %v1245
        %v1248 = vmul.f32 %v1230, %v807
        %v1249 = vadd.f32 %v1247, %v1248
        %1251 = vrot.lane.b32.xlu0 %v1249, 96
        %v1252 = vpop.permute.xlu0 %1251
        %v1254 = vsel %vm457, %v1252, 1.0
        %v1256 = vsel %vm705, %v1254, 0
        %1258 = vmatprep.subr.mxu0 0.0
        %1259 = vmatpush1.msra.mxu0 %v440
        %1260 = vmatprep.subr.mxu0 0.0
        %1261 = vmatpush1.msra.mxu0 %v441
        %1262 = vmatprep.subr.mxu0 0.0
        %1263 = vmatpush1.msra.mxu0 %v442
        %1264 = vmatprep.subr.mxu0 0.0
        %1265 = vmatpush1.msra.mxu0 %v443
        %1266 = vmatprep.subr.mxu0 0.0
        %1267 = vmatpush1.msra.mxu0 %v817
        %1268 = vmatprep.subr.mxu0 0.0
        %1269 = vmatpush1.msra.mxu0 0.0
        %1270 = vmatprep.subr.mxu0 0.0
        %1271 = vmatpush1.msra.mxu0 0.0
        %1272 = vmatprep.subr.mxu0 0.0
        %1273 = vmatpush1.msra.mxu0 0.0
        %1274 = vmatprep.subr.mxu0 0.0
        %1275 = vmatpush1.msra.mxu0 0.0
        %1276 = vmatprep.subr.mxu0 0.0
        %1277 = vmatpush1.msra.mxu0 0.0
        %1278 = vmatprep.subr.mxu0 0.0
        %1279 = vmatpush1.msra.mxu0 0.0
        %1280 = vmatprep.subr.mxu0 0.0
        %1281 = vmatpush1.msra.mxu0 0.0
        %1282 = vmatprep.subr.mxu0 0.0
        %1283 = vmatpush1.msra.mxu0 0.0
        %1284 = vmatprep.subr.mxu0 0.0
        %1285 = vmatpush1.msra.mxu0 0.0
        %1286 = vmatprep.subr.mxu0 0.0
        %1287 = vmatpush1.msra.mxu0 0.0
        %1288 = vmatprep.subr.mxu0 0.0
        %1289 = vmatpush1.msra.mxu0 0.0
        %1290 = vmatprep.subr.mxu0 0.0
        %1291 = vmatpush1.msra.mxu0 0.0
        %1292 = vmatprep.subr.mxu0 0.0
        %1293 = vmatpush1.msra.mxu0 0.0
        %1294 = vmatprep.subr.mxu0 0.0
        %1295 = vmatpush1.msra.mxu0 0.0
        %1296 = vmatprep.subr.mxu0 0.0
        %1297 = vmatpush1.msra.mxu0 0.0
        %1298 = vmatprep.subr.mxu0 0.0
        %1299 = vmatpush1.msra.mxu0 0.0
        %1300 = vmatprep.subr.mxu0 0.0
        %1301 = vmatpush1.msra.mxu0 0.0
        %1302 = vmatprep.subr.mxu0 0.0
        %1303 = vmatpush1.msra.mxu0 0.0
        %1304 = vmatprep.subr.mxu0 0.0
        %1305 = vmatpush1.msra.mxu0 0.0
        %1306 = vmatprep.subr.mxu0 0.0
        %1307 = vmatpush1.msra.mxu0 0.0
        %1308 = vmatprep.subr.mxu0 0.0
        %1309 = vmatpush1.msra.mxu0 0.0
        %1310 = vmatprep.subr.mxu0 0.0
        %1311 = vmatpush1.msra.mxu0 0.0
        %1312 = vmatprep.subr.mxu0 0.0
        %1313 = vmatpush1.msra.mxu0 0.0
        %1314 = vmatprep.subr.mxu0 0.0
        %1315 = vmatpush1.msra.mxu0 0.0
        %1316 = vmatprep.subr.mxu0 0.0
        %1317 = vmatpush1.msra.mxu0 0.0
        %1318 = vmatprep.subr.mxu0 0.0
        %1319 = vmatpush1.msra.mxu0 0.0
        %1320 = vmatprep.subr.mxu0 0.0
        %1321 = vmatpush1.msra.mxu0 0.0
        %1322 = vmatprep.mubr.f32.mxu0 0.0
        %1323 = vmatmul.mubr.f32.gmra.mrb[0].mxu0 %v1256
        %v1324 = vpop.f32.mrb[0].mxu0
        %v1325 = vadd.f32 0.0, %v1324
        %v1326 = vpop.f32.mrb[0].mxu0
        %1327 = vdwg.mxu0
        %v1328 = vsel %vm889, %v1325, -inf
        %1329 = vmax.xlane.f32.xlu0 %v1328
        %v1330 = vpop.xlane.xlu0 %1329
        %v1331 = vsub.f32 %v1325, %v1330
        %v1332 = vmul.f32 %v1331, 1.442695
        %v1333 = vpow.pop %v1332
        %v1334 = vsel %vm889, %v1333, 0.0
        %1335 = vadd.xlane.f32.xlu0 %v1334
        %v1336 = vpop.xlane.xlu0 %1335
        %v1337 = vlog2.pop %v1336
        %v1338 = vmul.f32 %v1337, 0.6931472
        %v1339 = vsub.f32 %v1331, %v1338
        %1340 = vrot.lane.b32.xlu0 %v1249, 8
        %v1341 = vpop.permute.xlu0 %1340
        %1343 = vrot.lane.b32.xlu0 %v1074, 72
        %v1344 = vpop.permute.xlu0 %1343
        %v1346 = vsel %vm908, %v1339, %v1341
        %v1347 = vsel %vm910, %v1346, %v1344
        %v1348 = vsel %vm912, %v1347, 0.0
        %s1349 = sadd.s32 %s445, 2
        %s1350 = sld [smem:[#allocation5 + %s1349]]
        %s1351 = scalar_lea.vmem %s3, %s1350
        %v1352 = vld [vmem:[%s1351] sm:$0x1]
        %v1353 = vsel %vm457, %v1352, %v1249
        %v1354 = vsel %vm459, %v1353, 1.0
        %v1356 = vsel %vm461, %v1354, 0
        %1358 = vmatprep.subr.mxu0 %v409
        %1359 = vmatpush1.msra.mxu0 %v408
        %1360 = vmatprep.subr.mxu0 %v412
        %1361 = vmatpush1.msra.mxu0 %v411
        %1362 = vmatprep.subr.mxu0 %v415
        %1363 = vmatpush1.msra.mxu0 %v414
        %1364 = vmatprep.subr.mxu0 %v418
        %1365 = vmatpush1.msra.mxu0 %v417
        %1366 = vmatprep.subr.mxu0 %v421
        %1367 = vmatpush1.msra.mxu0 %v420
        %1368 = vmatprep.subr.mxu0 %v424
        %1369 = vmatpush1.msra.mxu0 %v423
        %1370 = vmatprep.subr.mxu0 %v427
        %1371 = vmatpush1.msra.mxu0 %v426
        %1372 = vmatprep.subr.mxu0 %v430
        %1373 = vmatpush1.msra.mxu0 %v429
        %1374 = vmatprep.subr.mxu0 %v470
        %1375 = vmatpush1.msra.mxu0 %v467
        %1376 = vmatprep.subr.mxu0 0.0
        %1377 = vmatpush1.msra.mxu0 0.0
        %1378 = vmatprep.subr.mxu0 0.0
        %1379 = vmatpush1.msra.mxu0 0.0
        %1380 = vmatprep.subr.mxu0 0.0
        %1381 = vmatpush1.msra.mxu0 0.0
        %1382 = vmatprep.subr.mxu0 0.0
        %1383 = vmatpush1.msra.mxu0 0.0
        %1384 = vmatprep.subr.mxu0 0.0
        %1385 = vmatpush1.msra.mxu0 0.0
        %1386 = vmatprep.subr.mxu0 0.0
        %1387 = vmatpush1.msra.mxu0 0.0
        %1388 = vmatprep.subr.mxu0 0.0
        %1389 = vmatpush1.msra.mxu0 0.0
        %1390 = vmatprep.subr.mxu0 0.0
        %1391 = vmatpush1.msra.mxu0 0.0
        %1392 = vmatprep.subr.mxu0 0.0
        %1393 = vmatpush1.msra.mxu0 0.0
        %1394 = vmatprep.subr.mxu0 0.0
        %1395 = vmatpush1.msra.mxu0 0.0
        %1396 = vmatprep.subr.mxu0 0.0
        %1397 = vmatpush1.msra.mxu0 0.0
        %1398 = vmatprep.subr.mxu0 0.0
        %1399 = vmatpush1.msra.mxu0 0.0
        %1400 = vmatprep.subr.mxu0 0.0
        %1401 = vmatpush1.msra.mxu0 0.0
        %1402 = vmatprep.subr.mxu0 0.0
        %1403 = vmatpush1.msra.mxu0 0.0
        %1404 = vmatprep.subr.mxu0 0.0
        %1405 = vmatpush1.msra.mxu0 0.0
        %1406 = vmatprep.subr.mxu0 0.0
        %1407 = vmatpush1.msra.mxu0 0.0
        %1408 = vmatprep.subr.mxu0 0.0
        %1409 = vmatpush1.msra.mxu0 0.0
        %1410 = vmatprep.subr.mxu0 0.0
        %1411 = vmatpush1.msra.mxu0 0.0
        %1412 = vmatprep.subr.mxu0 0.0
        %1413 = vmatpush1.msra.mxu0 0.0
        %1414 = vmatprep.subr.mxu0 0.0
        %1415 = vmatpush1.msra.mxu0 0.0
        %1416 = vmatprep.subr.mxu0 0.0
        %1417 = vmatpush1.msra.mxu0 0.0
        %1418 = vmatprep.subr.mxu0 0.0
        %1419 = vmatpush1.msra.mxu0 0.0
        %1420 = vmatprep.subr.mxu0 0.0
        %1421 = vmatpush1.msra.mxu0 0.0
        %1422 = vmatprep.mubr.f32.mxu0 0.0
        %1423 = vmatmul.mubr.f32.gmra.mrb[0].mxu0 %v1356
        %v1424 = vpop.f32.mrb[0].mxu0
        %v1425 = vadd.f32 0.0, %v1424
        %v1426 = vpop.f32.mrb[0].mxu0
        %v1427 = vadd.f32 0.0, %v1426
        %1428 = vdwg.mxu0
        %1429 = vmatprep.subr.mxu0 0.0
        %1430 = vmatpush1.msra.mxu0 %v410
        %1431 = vmatprep.subr.mxu0 0.0
        %1432 = vmatpush1.msra.mxu0 %v413
        %1433 = vmatprep.subr.mxu0 0.0
        %1434 = vmatpush1.msra.mxu0 %v416
        %1435 = vmatprep.subr.mxu0 0.0
        %1436 = vmatpush1.msra.mxu0 %v419
        %1437 = vmatprep.subr.mxu0 0.0
        %1438 = vmatpush1.msra.mxu0 %v422
        %1439 = vmatprep.subr.mxu0 0.0
        %1440 = vmatpush1.msra.mxu0 %v425
        %1441 = vmatprep.subr.mxu0 0.0
        %1442 = vmatpush1.msra.mxu0 %v428
        %1443 = vmatprep.subr.mxu0 0.0
        %1444 = vmatpush1.msra.mxu0 %v431
        %1445 = vmatprep.subr.mxu0 0.0
        %1446 = vmatpush1.msra.mxu0 %v473
        %1447 = vmatprep.subr.mxu0 0.0
        %1448 = vmatpush1.msra.mxu0 0.0
        %1449 = vmatprep.subr.mxu0 0.0
        %1450 = vmatpush1.msra.mxu0 0.0
        %1451 = vmatprep.subr.mxu0 0.0
        %1452 = vmatpush1.msra.mxu0 0.0
        %1453 = vmatprep.subr.mxu0 0.0
        %1454 = vmatpush1.msra.mxu0 0.0
        %1455 = vmatprep.subr.mxu0 0.0
        %1456 = vmatpush1.msra.mxu0 0.0
        %1457 = vmatprep.subr.mxu0 0.0
        %1458 = vmatpush1.msra.mxu0 0.0
        %1459 = vmatprep.subr.mxu0 0.0
        %1460 = vmatpush1.msra.mxu0 0.0
        %1461 = vmatprep.subr.mxu0 0.0
        %1462 = vmatpush1.msra.mxu0 0.0
        %1463 = vmatprep.subr.mxu0 0.0
        %1464 = vmatpush1.msra.mxu0 0.0
        %1465 = vmatprep.subr.mxu0 0.0
        %1466 = vmatpush1.msra.mxu0 0.0
        %1467 = vmatprep.subr.mxu0 0.0
        %1468 = vmatpush1.msra.mxu0 0.0
        %1469 = vmatprep.subr.mxu0 0.0
        %1470 = vmatpush1.msra.mxu0 0.0
        %1471 = vmatprep.subr.mxu0 0.0
        %1472 = vmatpush1.msra.mxu0 0.0
        %1473 = vmatprep.subr.mxu0 0.0
        %1474 = vmatpush1.msra.mxu0 0.0
        %1475 = vmatprep.subr.mxu0 0.0
        %1476 = vmatpush1.msra.mxu0 0.0
        %1477 = vmatprep.subr.mxu0 0.0
        %1478 = vmatpush1.msra.mxu0 0.0
        %1479 = vmatprep.subr.mxu0 0.0
        %1480 = vmatpush1.msra.mxu0 0.0
        %1481 = vmatprep.subr.mxu0 0.0
        %1482 = vmatpush1.msra.mxu0 0.0
        %1483 = vmatprep.subr.mxu0 0.0
        %1484 = vmatpush1.msra.mxu0 0.0
        %1485 = vmatprep.subr.mxu0 0.0
        %1486 = vmatpush1.msra.mxu0 0.0
        %1487 = vmatprep.subr.mxu0 0.0
        %1488 = vmatpush1.msra.mxu0 0.0
        %1489 = vmatprep.subr.mxu0 0.0
        %1490 = vmatpush1.msra.mxu0 0.0
        %1491 = vmatprep.subr.mxu0 0.0
        %1492 = vmatpush1.msra.mxu0 0.0
        %1493 = vmatprep.mubr.f32.mxu0 0.0
        %1494 = vmatmul.mubr.f32.gmra.mrb[0].mxu0 %v1356
        %v1495 = vpop.f32.mrb[0].mxu0
        %v1496 = vadd.f32 0.0, %v1495
        %v1497 = vpop.f32.mrb[0].mxu0
        %1498 = vdwg.mxu0
        %v1499 = vsel %vm616, %v1425, -inf
        %1500 = vmax.xlane.f32.xlu0 %v1499
        %v1501 = vpop.xlane.xlu0 %1500
        %v1502 = vsub.f32 %v1425, %v1501
        %v1503 = vmul.f32 %v1502, 1.442695
        %v1504 = vpow.pop %v1503
        %v1505 = vsel %vm616, %v1504, 0.0
        %1506 = vadd.xlane.f32.xlu0 %v1505
        %v1507 = vpop.xlane.xlu0 %1506
        %v1508 = vrcp.pop %v1507
        %v1509 = vmul.f32 %v1504, %v1508
        %v1511 = vsel %vm628, %v1509, 0
        %1513 = vmatprep.subr.mxu0 0.0
        %1514 = vmatpush1.msra.mxu0 %v406
        %1515 = vmatprep.subr.mxu0 0.0
        %1516 = vmatpush1.msra.mxu0 %v407
        %1517 = vmatprep.subr.mxu0 0.0
        %1518 = vmatpush1.msra.mxu0 0.0
        %1519 = vmatprep.subr.mxu0 0.0
        %1520 = vmatpush1.msra.mxu0 0.0
        %1521 = vmatprep.subr.mxu0 0.0
        %1522 = vmatpush1.msra.mxu0 0.0
        %1523 = vmatprep.subr.mxu0 0.0
        %1524 = vmatpush1.msra.mxu0 0.0
        %1525 = vmatprep.subr.mxu0 0.0
        %1526 = vmatpush1.msra.mxu0 0.0
        %1527 = vmatprep.subr.mxu0 0.0
        %1528 = vmatpush1.msra.mxu0 0.0
        %1529 = vmatprep.subr.mxu0 0.0
        %1530 = vmatpush1.msra.mxu0 0.0
        %1531 = vmatprep.subr.mxu0 0.0
        %1532 = vmatpush1.msra.mxu0 0.0
        %1533 = vmatprep.subr.mxu0 0.0
        %1534 = vmatpush1.msra.mxu0 0.0
        %1535 = vmatprep.subr.mxu0 0.0
        %1536 = vmatpush1.msra.mxu0 0.0
        %1537 = vmatprep.subr.mxu0 0.0
        %1538 = vmatpush1.msra.mxu0 0.0
        %1539 = vmatprep.subr.mxu0 0.0
        %1540 = vmatpush1.msra.mxu0 0.0
        %1541 = vmatprep.subr.mxu0 0.0
        %1542 = vmatpush1.msra.mxu0 0.0
        %1543 = vmatprep.subr.mxu0 0.0
        %1544 = vmatpush1.msra.mxu0 0.0
        %1545 = vmatprep.subr.mxu0 0.0
        %1546 = vmatpush1.msra.mxu0 0.0
        %1547 = vmatprep.subr.mxu0 0.0
        %1548 = vmatpush1.msra.mxu0 0.0
        %1549 = vmatprep.subr.mxu0 0.0
        %1550 = vmatpush1.msra.mxu0 0.0
        %1551 = vmatprep.subr.mxu0 0.0
        %1552 = vmatpush1.msra.mxu0 0.0
        %1553 = vmatprep.subr.mxu0 0.0
        %1554 = vmatpush1.msra.mxu0 0.0
        %1555 = vmatprep.subr.mxu0 0.0
        %1556 = vmatpush1.msra.mxu0 0.0
        %1557 = vmatprep.subr.mxu0 0.0
        %1558 = vmatpush1.msra.mxu0 0.0
        %1559 = vmatprep.subr.mxu0 0.0
        %1560 = vmatpush1.msra.mxu0 0.0
        %1561 = vmatprep.subr.mxu0 0.0
        %1562 = vmatpush1.msra.mxu0 0.0
        %1563 = vmatprep.subr.mxu0 0.0
        %1564 = vmatpush1.msra.mxu0 0.0
        %1565 = vmatprep.subr.mxu0 0.0
        %1566 = vmatpush1.msra.mxu0 0.0
        %1567 = vmatprep.subr.mxu0 0.0
        %1568 = vmatpush1.msra.mxu0 0.0
        %1569 = vmatprep.subr.mxu0 0.0
        %1570 = vmatpush1.msra.mxu0 0.0
        %1571 = vmatprep.subr.mxu0 0.0
        %1572 = vmatpush1.msra.mxu0 0.0
        %1573 = vmatprep.subr.mxu0 0.0
        %1574 = vmatpush1.msra.mxu0 0.0
        %1575 = vmatprep.subr.mxu0 0.0
        %1576 = vmatpush1.msra.mxu0 0.0
        %1577 = vmatprep.mubr.f32.mxu0 0.0
        %1578 = vmatmul.mubr.f32.gmra.mrb[0].mxu0 %v1511
        %v1579 = vpop.f32.mrb[0].mxu0
        %v1580 = vadd.f32 0.0, %v1579
        %v1581 = vpop.f32.mrb[0].mxu0
        %1582 = vdwg.mxu0
        %v1583 = vadd.f32 %v1496, %v1580
        %v1584 = vmax.f32 %v1583, 0.0
        %v1585 = vsel %vm457, %v1584, 1.0
        %v1587 = vsel %vm705, %v1585, 0
        %1589 = vmatprep.subr.mxu0 0.0
        %1590 = vmatpush1.msra.mxu0 %v435
        %1591 = vmatprep.subr.mxu0 0.0
        %1592 = vmatpush1.msra.mxu0 %v436
        %1593 = vmatprep.subr.mxu0 0.0
        %1594 = vmatpush1.msra.mxu0 %v437
        %1595 = vmatprep.subr.mxu0 0.0
        %1596 = vmatpush1.msra.mxu0 %v438
        %1597 = vmatprep.subr.mxu0 0.0
        %1598 = vmatpush1.msra.mxu0 %v710
        %1599 = vmatprep.subr.mxu0 0.0
        %1600 = vmatpush1.msra.mxu0 0.0
        %1601 = vmatprep.subr.mxu0 0.0
        %1602 = vmatpush1.msra.mxu0 0.0
        %1603 = vmatprep.subr.mxu0 0.0
        %1604 = vmatpush1.msra.mxu0 0.0
        %1605 = vmatprep.subr.mxu0 0.0
        %1606 = vmatpush1.msra.mxu0 0.0
        %1607 = vmatprep.subr.mxu0 0.0
        %1608 = vmatpush1.msra.mxu0 0.0
        %1609 = vmatprep.subr.mxu0 0.0
        %1610 = vmatpush1.msra.mxu0 0.0
        %1611 = vmatprep.subr.mxu0 0.0
        %1612 = vmatpush1.msra.mxu0 0.0
        %1613 = vmatprep.subr.mxu0 0.0
        %1614 = vmatpush1.msra.mxu0 0.0
        %1615 = vmatprep.subr.mxu0 0.0
        %1616 = vmatpush1.msra.mxu0 0.0
        %1617 = vmatprep.subr.mxu0 0.0
        %1618 = vmatpush1.msra.mxu0 0.0
        %1619 = vmatprep.subr.mxu0 0.0
        %1620 = vmatpush1.msra.mxu0 0.0
        %1621 = vmatprep.subr.mxu0 0.0
        %1622 = vmatpush1.msra.mxu0 0.0
        %1623 = vmatprep.subr.mxu0 0.0
        %1624 = vmatpush1.msra.mxu0 0.0
        %1625 = vmatprep.subr.mxu0 0.0
        %1626 = vmatpush1.msra.mxu0 0.0
        %1627 = vmatprep.subr.mxu0 0.0
        %1628 = vmatpush1.msra.mxu0 0.0
        %1629 = vmatprep.subr.mxu0 0.0
        %1630 = vmatpush1.msra.mxu0 0.0
        %1631 = vmatprep.subr.mxu0 0.0
        %1632 = vmatpush1.msra.mxu0 0.0
        %1633 = vmatprep.subr.mxu0 0.0
        %1634 = vmatpush1.msra.mxu0 0.0
        %1635 = vmatprep.subr.mxu0 0.0
        %1636 = vmatpush1.msra.mxu0 0.0
        %1637 = vmatprep.subr.mxu0 0.0
        %1638 = vmatpush1.msra.mxu0 0.0
        %1639 = vmatprep.subr.mxu0 0.0
        %1640 = vmatpush1.msra.mxu0 0.0
        %1641 = vmatprep.subr.mxu0 0.0
        %1642 = vmatpush1.msra.mxu0 0.0
        %1643 = vmatprep.subr.mxu0 0.0
        %1644 = vmatpush1.msra.mxu0 0.0
        %1645 = vmatprep.subr.mxu0 0.0
        %1646 = vmatpush1.msra.mxu0 0.0
        %1647 = vmatprep.subr.mxu0 0.0
        %1648 = vmatpush1.msra.mxu0 0.0
        %1649 = vmatprep.subr.mxu0 0.0
        %1650 = vmatpush1.msra.mxu0 0.0
        %1651 = vmatprep.subr.mxu0 0.0
        %1652 = vmatpush1.msra.mxu0 0.0
        %1653 = vmatprep.mubr.f32.mxu0 0.0
        %1654 = vmatmul.mubr.f32.gmra.mrb[0].mxu0 %v1587
        %v1655 = vpop.f32.mrb[0].mxu0
        %v1656 = vadd.f32 0.0, %v1655
        %v1657 = vpop.f32.mrb[0].mxu0
        %1658 = vdwg.mxu0
        %v1659 = vadd.f32 %v1656, %v1427
        %v1660 = vxor.u32 %v1659, 2147483648
        %v1661 = vmul.f32 %v1660, 1.442695
        %v1662 = vpow.pop %v1661
        %v1663 = vadd.f32 %v1662, 1.0
        %v1664 = vrcp.pop %v1663
        %v1665 = vmul.f32 1.0, %v1664
        %1667 = vrot.lane.b32.xlu0 %v1427, 64
        %v1668 = vpop.permute.xlu0 %1667
        %v1670 = vmul.f32 %v1665, %v1668
        %1672 = vrot.lane.b32.xlu0 %v1670, 64
        %v1673 = vpop.permute.xlu0 %1672
        %v1675 = vadd.f32 %v1656, %v1673
        %v1676 = vtanh.pop %v1675
        %v1677 = vsub.f32 1.0, %v1665
        %1679 = vrot.lane.b32.xlu0 %v1676, 96
        %v1680 = vpop.permute.xlu0 %1679
        %v1682 = vmul.f32 %v1677, %v1680
        %v1683 = vmul.f32 %v1665, %v1249
        %v1684 = vadd.f32 %v1682, %v1683
        %1686 = vrot.lane.b32.xlu0 %v1684, 96
        %v1687 = vpop.permute.xlu0 %1686
        %v1689 = vsel %vm457, %v1687, 1.0
        %v1691 = vsel %vm705, %v1689, 0
        %1693 = vmatprep.subr.mxu0 0.0
        %1694 = vmatpush1.msra.mxu0 %v440
        %1695 = vmatprep.subr.mxu0 0.0
        %1696 = vmatpush1.msra.mxu0 %v441
        %1697 = vmatprep.subr.mxu0 0.0
        %1698 = vmatpush1.msra.mxu0 %v442
        %1699 = vmatprep.subr.mxu0 0.0
        %1700 = vmatpush1.msra.mxu0 %v443
        %1701 = vmatprep.subr.mxu0 0.0
        %1702 = vmatpush1.msra.mxu0 %v817
        %1703 = vmatprep.subr.mxu0 0.0
        %1704 = vmatpush1.msra.mxu0 0.0
        %1705 = vmatprep.subr.mxu0 0.0
        %1706 = vmatpush1.msra.mxu0 0.0
        %1707 = vmatprep.subr.mxu0 0.0
        %1708 = vmatpush1.msra.mxu0 0.0
        %1709 = vmatprep.subr.mxu0 0.0
        %1710 = vmatpush1.msra.mxu0 0.0
        %1711 = vmatprep.subr.mxu0 0.0
        %1712 = vmatpush1.msra.mxu0 0.0
        %1713 = vmatprep.subr.mxu0 0.0
        %1714 = vmatpush1.msra.mxu0 0.0
        %1715 = vmatprep.subr.mxu0 0.0
        %1716 = vmatpush1.msra.mxu0 0.0
        %1717 = vmatprep.subr.mxu0 0.0
        %1718 = vmatpush1.msra.mxu0 0.0
        %1719 = vmatprep.subr.mxu0 0.0
        %1720 = vmatpush1.msra.mxu0 0.0
        %1721 = vmatprep.subr.mxu0 0.0
        %1722 = vmatpush1.msra.mxu0 0.0
        %1723 = vmatprep.subr.mxu0 0.0
        %1724 = vmatpush1.msra.mxu0 0.0
        %1725 = vmatprep.subr.mxu0 0.0
        %1726 = vmatpush1.msra.mxu0 0.0
        %1727 = vmatprep.subr.mxu0 0.0
        %1728 = vmatpush1.msra.mxu0 0.0
        %1729 = vmatprep.subr.mxu0 0.0
        %1730 = vmatpush1.msra.mxu0 0.0
        %1731 = vmatprep.subr.mxu0 0.0
        %1732 = vmatpush1.msra.mxu0 0.0
        %1733 = vmatprep.subr.mxu0 0.0
        %1734 = vmatpush1.msra.mxu0 0.0
        %1735 = vmatprep.subr.mxu0 0.0
        %1736 = vmatpush1.msra.mxu0 0.0
        %1737 = vmatprep.subr.mxu0 0.0
        %1738 = vmatpush1.msra.mxu0 0.0
        %1739 = vmatprep.subr.mxu0 0.0
        %1740 = vmatpush1.msra.mxu0 0.0
        %1741 = vmatprep.subr.mxu0 0.0
        %1742 = vmatpush1.msra.mxu0 0.0
        %1743 = vmatprep.subr.mxu0 0.0
        %1744 = vmatpush1.msra.mxu0 0.0
        %1745 = vmatprep.subr.mxu0 0.0
        %1746 = vmatpush1.msra.mxu0 0.0
        %1747 = vmatprep.subr.mxu0 0.0
        %1748 = vmatpush1.msra.mxu0 0.0
        %1749 = vmatprep.subr.mxu0 0.0
        %1750 = vmatpush1.msra.mxu0 0.0
        %1751 = vmatprep.subr.mxu0 0.0
        %1752 = vmatpush1.msra.mxu0 0.0
        %1753 = vmatprep.subr.mxu0 0.0
        %1754 = vmatpush1.msra.mxu0 0.0
        %1755 = vmatprep.subr.mxu0 0.0
        %1756 = vmatpush1.msra.mxu0 0.0
        %1757 = vmatprep.mubr.f32.mxu0 0.0
        %1758 = vmatmul.mubr.f32.gmra.mrb[0].mxu0 %v1691
        %v1759 = vpop.f32.mrb[0].mxu0
        %v1760 = vadd.f32 0.0, %v1759
        %v1761 = vpop.f32.mrb[0].mxu0
        %1762 = vdwg.mxu0
        %v1763 = vsel %vm889, %v1760, -inf
        %1764 = vmax.xlane.f32.xlu0 %v1763
        %v1765 = vpop.xlane.xlu0 %1764
        %v1766 = vsub.f32 %v1760, %v1765
        %v1767 = vmul.f32 %v1766, 1.442695
        %v1768 = vpow.pop %v1767
        %v1769 = vsel %vm889, %v1768, 0.0
        %1770 = vadd.xlane.f32.xlu0 %v1769
        %v1771 = vpop.xlane.xlu0 %1770
        %v1772 = vlog2.pop %v1771
        %v1773 = vmul.f32 %v1772, 0.6931472
        %v1774 = vsub.f32 %v1766, %v1773
        %1775 = vrot.lane.b32.xlu0 %v1684, 8
        %v1776 = vpop.permute.xlu0 %1775
        %1778 = vrot.lane.b32.xlu0 %v1509, 72
        %v1779 = vpop.permute.xlu0 %1778
        %v1781 = vsel %vm908, %v1774, %v1776
        %v1782 = vsel %vm910, %v1781, %v1779
        %v1783 = vsel %vm912, %v1782, 0.0
        %s1784 = sadd.s32 %s445, 3
        %s1785 = sld [smem:[#allocation5 + %s1784]]
        %s1786 = scalar_lea.vmem %s3, %s1785
        %v1787 = vld [vmem:[%s1786] sm:$0x1]
        %v1788 = vsel %vm457, %v1787, %v1684
        %v1789 = vsel %vm459, %v1788, 1.0
        %v1791 = vsel %vm461, %v1789, 0
        %1793 = vmatprep.subr.mxu0 %v409
        %1794 = vmatpush1.msra.mxu0 %v408
        %1795 = vmatprep.subr.mxu0 %v412
        %1796 = vmatpush1.msra.mxu0 %v411
        %1797 = vmatprep.subr.mxu0 %v415
        %1798 = vmatpush1.msra.mxu0 %v414
        %1799 = vmatprep.subr.mxu0 %v418
        %1800 = vmatpush1.msra.mxu0 %v417
        %1801 = vmatprep.subr.mxu0 %v421
        %1802 = vmatpush1.msra.mxu0 %v420
        %1803 = vmatprep.subr.mxu0 %v424
        %1804 = vmatpush1.msra.mxu0 %v423
        %1805 = vmatprep.subr.mxu0 %v427
        %1806 = vmatpush1.msra.mxu0 %v426
        %1807 = vmatprep.subr.mxu0 %v430
        %1808 = vmatpush1.msra.mxu0 %v429
        %1809 = vmatprep.subr.mxu0 %v470
        %1810 = vmatpush1.msra.mxu0 %v467
        %1811 = vmatprep.subr.mxu0 0.0
        %1812 = vmatpush1.msra.mxu0 0.0
        %1813 = vmatprep.subr.mxu0 0.0
        %1814 = vmatpush1.msra.mxu0 0.0
        %1815 = vmatprep.subr.mxu0 0.0
        %1816 = vmatpush1.msra.mxu0 0.0
        %1817 = vmatprep.subr.mxu0 0.0
        %1818 = vmatpush1.msra.mxu0 0.0
        %1819 = vmatprep.subr.mxu0 0.0
        %1820 = vmatpush1.msra.mxu0 0.0
        %1821 = vmatprep.subr.mxu0 0.0
        %1822 = vmatpush1.msra.mxu0 0.0
        %1823 = vmatprep.subr.mxu0 0.0
        %1824 = vmatpush1.msra.mxu0 0.0
        %1825 = vmatprep.subr.mxu0 0.0
        %1826 = vmatpush1.msra.mxu0 0.0
        %1827 = vmatprep.subr.mxu0 0.0
        %1828 = vmatpush1.msra.mxu0 0.0
        %1829 = vmatprep.subr.mxu0 0.0
        %1830 = vmatpush1.msra.mxu0 0.0
        %1831 = vmatprep.subr.mxu0 0.0
        %1832 = vmatpush1.msra.mxu0 0.0
        %1833 = vmatprep.subr.mxu0 0.0
        %1834 = vmatpush1.msra.mxu0 0.0
        %1835 = vmatprep.subr.mxu0 0.0
        %1836 = vmatpush1.msra.mxu0 0.0
        %1837 = vmatprep.subr.mxu0 0.0
        %1838 = vmatpush1.msra.mxu0 0.0
        %1839 = vmatprep.subr.mxu0 0.0
        %1840 = vmatpush1.msra.mxu0 0.0
        %1841 = vmatprep.subr.mxu0 0.0
        %1842 = vmatpush1.msra.mxu0 0.0
        %1843 = vmatprep.subr.mxu0 0.0
        %1844 = vmatpush1.msra.mxu0 0.0
        %1845 = vmatprep.subr.mxu0 0.0
        %1846 = vmatpush1.msra.mxu0 0.0
        %1847 = vmatprep.subr.mxu0 0.0
        %1848 = vmatpush1.msra.mxu0 0.0
        %1849 = vmatprep.subr.mxu0 0.0
        %1850 = vmatpush1.msra.mxu0 0.0
        %1851 = vmatprep.subr.mxu0 0.0
        %1852 = vmatpush1.msra.mxu0 0.0
        %1853 = vmatprep.subr.mxu0 0.0
        %1854 = vmatpush1.msra.mxu0 0.0
        %1855 = vmatprep.subr.mxu0 0.0
        %1856 = vmatpush1.msra.mxu0 0.0
        %1857 = vmatprep.mubr.f32.mxu0 0.0
        %1858 = vmatmul.mubr.f32.gmra.mrb[0].mxu0 %v1791
        %v1859 = vpop.f32.mrb[0].mxu0
        %v1860 = vadd.f32 0.0, %v1859
        %v1861 = vpop.f32.mrb[0].mxu0
        %v1862 = vadd.f32 0.0, %v1861
        %1863 = vdwg.mxu0
        %1864 = vmatprep.subr.mxu0 0.0
        %1865 = vmatpush1.msra.mxu0 %v410
        %1866 = vmatprep.subr.mxu0 0.0
        %1867 = vmatpush1.msra.mxu0 %v413
        %1868 = vmatprep.subr.mxu0 0.0
        %1869 = vmatpush1.msra.mxu0 %v416
        %1870 = vmatprep.subr.mxu0 0.0
        %1871 = vmatpush1.msra.mxu0 %v419
        %1872 = vmatprep.subr.mxu0 0.0
        %1873 = vmatpush1.msra.mxu0 %v422
        %1874 = vmatprep.subr.mxu0 0.0
        %1875 = vmatpush1.msra.mxu0 %v425
        %1876 = vmatprep.subr.mxu0 0.0
        %1877 = vmatpush1.msra.mxu0 %v428
        %1878 = vmatprep.subr.mxu0 0.0
        %1879 = vmatpush1.msra.mxu0 %v431
        %1880 = vmatprep.subr.mxu0 0.0
        %1881 = vmatpush1.msra.mxu0 %v473
        %1882 = vmatprep.subr.mxu0 0.0
        %1883 = vmatpush1.msra.mxu0 0.0
        %1884 = vmatprep.subr.mxu0 0.0
        %1885 = vmatpush1.msra.mxu0 0.0
        %1886 = vmatprep.subr.mxu0 0.0
        %1887 = vmatpush1.msra.mxu0 0.0
        %1888 = vmatprep.subr.mxu0 0.0
        %1889 = vmatpush1.msra.mxu0 0.0
        %1890 = vmatprep.subr.mxu0 0.0
        %1891 = vmatpush1.msra.mxu0 0.0
        %1892 = vmatprep.subr.mxu0 0.0
        %1893 = vmatpush1.msra.mxu0 0.0
        %1894 = vmatprep.subr.mxu0 0.0
        %1895 = vmatpush1.msra.mxu0 0.0
        %1896 = vmatprep.subr.mxu0 0.0
        %1897 = vmatpush1.msra.mxu0 0.0
        %1898 = vmatprep.subr.mxu0 0.0
        %1899 = vmatpush1.msra.mxu0 0.0
        %1900 = vmatprep.subr.mxu0 0.0
        %1901 = vmatpush1.msra.mxu0 0.0
        %1902 = vmatprep.subr.mxu0 0.0
        %1903 = vmatpush1.msra.mxu0 0.0
        %1904 = vmatprep.subr.mxu0 0.0
        %1905 = vmatpush1.msra.mxu0 0.0
        %1906 = vmatprep.subr.mxu0 0.0
        %1907 = vmatpush1.msra.mxu0 0.0
        %1908 = vmatprep.subr.mxu0 0.0
        %1909 = vmatpush1.msra.mxu0 0.0
        %1910 = vmatprep.subr.mxu0 0.0
        %1911 = vmatpush1.msra.mxu0 0.0
        %1912 = vmatprep.subr.mxu0 0.0
        %1913 = vmatpush1.msra.mxu0 0.0
        %1914 = vmatprep.subr.mxu0 0.0
        %1915 = vmatpush1.msra.mxu0 0.0
        %1916 = vmatprep.subr.mxu0 0.0
        %1917 = vmatpush1.msra.mxu0 0.0
        %1918 = vmatprep.subr.mxu0 0.0
        %1919 = vmatpush1.msra.mxu0 0.0
        %1920 = vmatprep.subr.mxu0 0.0
        %1921 = vmatpush1.msra.mxu0 0.0
        %1922 = vmatprep.subr.mxu0 0.0
        %1923 = vmatpush1.msra.mxu0 0.0
        %1924 = vmatprep.subr.mxu0 0.0
        %1925 = vmatpush1.msra.mxu0 0.0
        %1926 = vmatprep.subr.mxu0 0.0
        %1927 = vmatpush1.msra.mxu0 0.0
        %1928 = vmatprep.mubr.f32.mxu0 0.0
        %1929 = vmatmul.mubr.f32.gmra.mrb[0].mxu0 %v1791
        %v1930 = vpop.f32.mrb[0].mxu0
        %v1931 = vadd.f32 0.0, %v1930
        %v1932 = vpop.f32.mrb[0].mxu0
        %1933 = vdwg.mxu0
        %v1934 = vsel %vm616, %v1860, -inf
        %1935 = vmax.xlane.f32.xlu0 %v1934
        %v1936 = vpop.xlane.xlu0 %1935
        %v1937 = vsub.f32 %v1860, %v1936
        %v1938 = vmul.f32 %v1937, 1.442695
        %v1939 = vpow.pop %v1938
        %v1940 = vsel %vm616, %v1939, 0.0
        %1941 = vadd.xlane.f32.xlu0 %v1940
        %v1942 = vpop.xlane.xlu0 %1941
        %v1943 = vrcp.pop %v1942
        %v1944 = vmul.f32 %v1939, %v1943
        %v1946 = vsel %vm628, %v1944, 0
        %1948 = vmatprep.subr.mxu0 0.0
        %1949 = vmatpush1.msra.mxu0 %v406
        %1950 = vmatprep.subr.mxu0 0.0
        %1951 = vmatpush1.msra.mxu0 %v407
        %1952 = vmatprep.subr.mxu0 0.0
        %1953 = vmatpush1.msra.mxu0 0.0
        %1954 = vmatprep.subr.mxu0 0.0
        %1955 = vmatpush1.msra.mxu0 0.0
        %1956 = vmatprep.subr.mxu0 0.0
        %1957 = vmatpush1.msra.mxu0 0.0
        %1958 = vmatprep.subr.mxu0 0.0
        %1959 = vmatpush1.msra.mxu0 0.0
        %1960 = vmatprep.subr.mxu0 0.0
        %1961 = vmatpush1.msra.mxu0 0.0
        %1962 = vmatprep.subr.mxu0 0.0
        %1963 = vmatpush1.msra.mxu0 0.0
        %1964 = vmatprep.subr.mxu0 0.0
        %1965 = vmatpush1.msra.mxu0 0.0
        %1966 = vmatprep.subr.mxu0 0.0
        %1967 = vmatpush1.msra.mxu0 0.0
        %1968 = vmatprep.subr.mxu0 0.0
        %1969 = vmatpush1.msra.mxu0 0.0
        %1970 = vmatprep.subr.mxu0 0.0
        %1971 = vmatpush1.msra.mxu0 0.0
        %1972 = vmatprep.subr.mxu0 0.0
        %1973 = vmatpush1.msra.mxu0 0.0
        %1974 = vmatprep.subr.mxu0 0.0
        %1975 = vmatpush1.msra.mxu0 0.0
        %1976 = vmatprep.subr.mxu0 0.0
        %1977 = vmatpush1.msra.mxu0 0.0
        %1978 = vmatprep.subr.mxu0 0.0
        %1979 = vmatpush1.msra.mxu0 0.0
        %1980 = vmatprep.subr.mxu0 0.0
        %1981 = vmatpush1.msra.mxu0 0.0
        %1982 = vmatprep.subr.mxu0 0.0
        %1983 = vmatpush1.msra.mxu0 0.0
        %1984 = vmatprep.subr.mxu0 0.0
        %1985 = vmatpush1.msra.mxu0 0.0
        %1986 = vmatprep.subr.mxu0 0.0
        %1987 = vmatpush1.msra.mxu0 0.0
        %1988 = vmatprep.subr.mxu0 0.0
        %1989 = vmatpush1.msra.mxu0 0.0
        %1990 = vmatprep.subr.mxu0 0.0
        %1991 = vmatpush1.msra.mxu0 0.0
        %1992 = vmatprep.subr.mxu0 0.0
        %1993 = vmatpush1.msra.mxu0 0.0
        %1994 = vmatprep.subr.mxu0 0.0
        %1995 = vmatpush1.msra.mxu0 0.0
        %1996 = vmatprep.subr.mxu0 0.0
        %1997 = vmatpush1.msra.mxu0 0.0
        %1998 = vmatprep.subr.mxu0 0.0
        %1999 = vmatpush1.msra.mxu0 0.0
        %2000 = vmatprep.subr.mxu0 0.0
        %2001 = vmatpush1.msra.mxu0 0.0
        %2002 = vmatprep.subr.mxu0 0.0
        %2003 = vmatpush1.msra.mxu0 0.0
        %2004 = vmatprep.subr.mxu0 0.0
        %2005 = vmatpush1.msra.mxu0 0.0
        %2006 = vmatprep.subr.mxu0 0.0
        %2007 = vmatpush1.msra.mxu0 0.0
        %2008 = vmatprep.subr.mxu0 0.0
        %2009 = vmatpush1.msra.mxu0 0.0
        %2010 = vmatprep.subr.mxu0 0.0
        %2011 = vmatpush1.msra.mxu0 0.0
        %2012 = vmatprep.mubr.f32.mxu0 0.0
        %2013 = vmatmul.mubr.f32.gmra.mrb[0].mxu0 %v1946
        %v2014 = vpop.f32.mrb[0].mxu0
        %v2015 = vadd.f32 0.0, %v2014
        %v2016 = vpop.f32.mrb[0].mxu0
        %2017 = vdwg.mxu0
        %v2018 = vadd.f32 %v1931, %v2015
        %v2019 = vmax.f32 %v2018, 0.0
        %v2020 = vsel %vm457, %v2019, 1.0
        %v2022 = vsel %vm705, %v2020, 0
        %2024 = vmatprep.subr.mxu0 0.0
        %2025 = vmatpush1.msra.mxu0 %v435
        %2026 = vmatprep.subr.mxu0 0.0
        %2027 = vmatpush1.msra.mxu0 %v436
        %2028 = vmatprep.subr.mxu0 0.0
        %2029 = vmatpush1.msra.mxu0 %v437
        %2030 = vmatprep.subr.mxu0 0.0
        %2031 = vmatpush1.msra.mxu0 %v438
        %2032 = vmatprep.subr.mxu0 0.0
        %2033 = vmatpush1.msra.mxu0 %v710
        %2034 = vmatprep.subr.mxu0 0.0
        %2035 = vmatpush1.msra.mxu0 0.0
        %2036 = vmatprep.subr.mxu0 0.0
        %2037 = vmatpush1.msra.mxu0 0.0
        %2038 = vmatprep.subr.mxu0 0.0
        %2039 = vmatpush1.msra.mxu0 0.0
        %2040 = vmatprep.subr.mxu0 0.0
        %2041 = vmatpush1.msra.mxu0 0.0
        %2042 = vmatprep.subr.mxu0 0.0
        %2043 = vmatpush1.msra.mxu0 0.0
        %2044 = vmatprep.subr.mxu0 0.0
        %2045 = vmatpush1.msra.mxu0 0.0
        %2046 = vmatprep.subr.mxu0 0.0
        %2047 = vmatpush1.msra.mxu0 0.0
        %2048 = vmatprep.subr.mxu0 0.0
        %2049 = vmatpush1.msra.mxu0 0.0
        %2050 = vmatprep.subr.mxu0 0.0
        %2051 = vmatpush1.msra.mxu0 0.0
        %2052 = vmatprep.subr.mxu0 0.0
        %2053 = vmatpush1.msra.mxu0 0.0
        %2054 = vmatprep.subr.mxu0 0.0
        %2055 = vmatpush1.msra.mxu0 0.0
        %2056 = vmatprep.subr.mxu0 0.0
        %2057 = vmatpush1.msra.mxu0 0.0
        %2058 = vmatprep.subr.mxu0 0.0
        %2059 = vmatpush1.msra.mxu0 0.0
        %2060 = vmatprep.subr.mxu0 0.0
        %2061 = vmatpush1.msra.mxu0 0.0
        %2062 = vmatprep.subr.mxu0 0.0
        %2063 = vmatpush1.msra.mxu0 0.0
        %2064 = vmatprep.subr.mxu0 0.0
        %2065 = vmatpush1.msra.mxu0 0.0
        %2066 = vmatprep.subr.mxu0 0.0
        %2067 = vmatpush1.msra.mxu0 0.0
        %2068 = vmatprep.subr.mxu0 0.0
        %2069 = vmatpush1.msra.mxu0 0.0
        %2070 = vmatprep.subr.mxu0 0.0
        %2071 = vmatpush1.msra.mxu0 0.0
        %2072 = vmatprep.subr.mxu0 0.0
        %2073 = vmatpush1.msra.mxu0 0.0
        %2074 = vmatprep.subr.mxu0 0.0
        %2075 = vmatpush1.msra.mxu0 0.0
        %2076 = vmatprep.subr.mxu0 0.0
        %2077 = vmatpush1.msra.mxu0 0.0
        %2078 = vmatprep.subr.mxu0 0.0
        %2079 = vmatpush1.msra.mxu0 0.0
        %2080 = vmatprep.subr.mxu0 0.0
        %2081 = vmatpush1.msra.mxu0 0.0
        %2082 = vmatprep.subr.mxu0 0.0
        %2083 = vmatpush1.msra.mxu0 0.0
        %2084 = vmatprep.subr.mxu0 0.0
        %2085 = vmatpush1.msra.mxu0 0.0
        %2086 = vmatprep.subr.mxu0 0.0
        %2087 = vmatpush1.msra.mxu0 0.0
        %2088 = vmatprep.mubr.f32.mxu0 0.0
        %2089 = vmatmul.mubr.f32.gmra.mrb[0].mxu0 %v2022
        %v2090 = vpop.f32.mrb[0].mxu0
        %v2091 = vadd.f32 0.0, %v2090
        %v2092 = vpop.f32.mrb[0].mxu0
        %2093 = vdwg.mxu0
        %v2094 = vadd.f32 %v2091, %v1862
        %v2095 = vxor.u32 %v2094, 2147483648
        %v2096 = vmul.f32 %v2095, 1.442695
        %v2097 = vpow.pop %v2096
        %v2098 = vadd.f32 %v2097, 1.0
        %v2099 = vrcp.pop %v2098
        %v2100 = vmul.f32 1.0, %v2099
        %2102 = vrot.lane.b32.xlu0 %v1862, 64
        %v2103 = vpop.permute.xlu0 %2102
        %v2105 = vmul.f32 %v2100, %v2103
        %2107 = vrot.lane.b32.xlu0 %v2105, 64
        %v2108 = vpop.permute.xlu0 %2107
        %v2110 = vadd.f32 %v2091, %v2108
        %v2111 = vtanh.pop %v2110
        %v2112 = vsub.f32 1.0, %v2100
        %2114 = vrot.lane.b32.xlu0 %v2111, 96
        %v2115 = vpop.permute.xlu0 %2114
        %v2117 = vmul.f32 %v2112, %v2115
        %v2118 = vmul.f32 %v2100, %v1684
        %v2119 = vadd.f32 %v2117, %v2118
        %2121 = vrot.lane.b32.xlu0 %v2119, 96
        %v2122 = vpop.permute.xlu0 %2121
        %v2124 = vsel %vm457, %v2122, 1.0
        %v2126 = vsel %vm705, %v2124, 0
        %2128 = vmatprep.subr.mxu0 0.0
        %2129 = vmatpush1.msra.mxu0 %v440
        %2130 = vmatprep.subr.mxu0 0.0
        %2131 = vmatpush1.msra.mxu0 %v441
        %2132 = vmatprep.subr.mxu0 0.0
        %2133 = vmatpush1.msra.mxu0 %v442
        %2134 = vmatprep.subr.mxu0 0.0
        %2135 = vmatpush1.msra.mxu0 %v443
        %2136 = vmatprep.subr.mxu0 0.0
        %2137 = vmatpush1.msra.mxu0 %v817
        %2138 = vmatprep.subr.mxu0 0.0
        %2139 = vmatpush1.msra.mxu0 0.0
        %2140 = vmatprep.subr.mxu0 0.0
        %2141 = vmatpush1.msra.mxu0 0.0
        %2142 = vmatprep.subr.mxu0 0.0
        %2143 = vmatpush1.msra.mxu0 0.0
        %2144 = vmatprep.subr.mxu0 0.0
        %2145 = vmatpush1.msra.mxu0 0.0
        %2146 = vmatprep.subr.mxu0 0.0
        %2147 = vmatpush1.msra.mxu0 0.0
        %2148 = vmatprep.subr.mxu0 0.0
        %2149 = vmatpush1.msra.mxu0 0.0
        %2150 = vmatprep.subr.mxu0 0.0
        %2151 = vmatpush1.msra.mxu0 0.0
        %2152 = vmatprep.subr.mxu0 0.0
        %2153 = vmatpush1.msra.mxu0 0.0
        %2154 = vmatprep.subr.mxu0 0.0
        %2155 = vmatpush1.msra.mxu0 0.0
        %2156 = vmatprep.subr.mxu0 0.0
        %2157 = vmatpush1.msra.mxu0 0.0
        %2158 = vmatprep.subr.mxu0 0.0
        %2159 = vmatpush1.msra.mxu0 0.0
        %2160 = vmatprep.subr.mxu0 0.0
        %2161 = vmatpush1.msra.mxu0 0.0
        %2162 = vmatprep.subr.mxu0 0.0
        %2163 = vmatpush1.msra.mxu0 0.0
        %2164 = vmatprep.subr.mxu0 0.0
        %2165 = vmatpush1.msra.mxu0 0.0
        %2166 = vmatprep.subr.mxu0 0.0
        %2167 = vmatpush1.msra.mxu0 0.0
        %2168 = vmatprep.subr.mxu0 0.0
        %2169 = vmatpush1.msra.mxu0 0.0
        %2170 = vmatprep.subr.mxu0 0.0
        %2171 = vmatpush1.msra.mxu0 0.0
        %2172 = vmatprep.subr.mxu0 0.0
        %2173 = vmatpush1.msra.mxu0 0.0
        %2174 = vmatprep.subr.mxu0 0.0
        %2175 = vmatpush1.msra.mxu0 0.0
        %2176 = vmatprep.subr.mxu0 0.0
        %2177 = vmatpush1.msra.mxu0 0.0
        %2178 = vmatprep.subr.mxu0 0.0
        %2179 = vmatpush1.msra.mxu0 0.0
        %2180 = vmatprep.subr.mxu0 0.0
        %2181 = vmatpush1.msra.mxu0 0.0
        %2182 = vmatprep.subr.mxu0 0.0
        %2183 = vmatpush1.msra.mxu0 0.0
        %2184 = vmatprep.subr.mxu0 0.0
        %2185 = vmatpush1.msra.mxu0 0.0
        %2186 = vmatprep.subr.mxu0 0.0
        %2187 = vmatpush1.msra.mxu0 0.0
        %2188 = vmatprep.subr.mxu0 0.0
        %2189 = vmatpush1.msra.mxu0 0.0
        %2190 = vmatprep.subr.mxu0 0.0
        %2191 = vmatpush1.msra.mxu0 0.0
        %2192 = vmatprep.mubr.f32.mxu0 0.0
        %2193 = vmatmul.mubr.f32.gmra.mrb[0].mxu0 %v2126
        %v2194 = vpop.f32.mrb[0].mxu0
        %v2195 = vadd.f32 0.0, %v2194
        %v2196 = vpop.f32.mrb[0].mxu0
        %2197 = vdwg.mxu0
        %v2198 = vsel %vm889, %v2195, -inf
        %2199 = vmax.xlane.f32.xlu0 %v2198
        %v2200 = vpop.xlane.xlu0 %2199
        %v2201 = vsub.f32 %v2195, %v2200
        %v2202 = vmul.f32 %v2201, 1.442695
        %v2203 = vpow.pop %v2202
        %v2204 = vsel %vm889, %v2203, 0.0
        %2205 = vadd.xlane.f32.xlu0 %v2204
        %v2206 = vpop.xlane.xlu0 %2205
        %v2207 = vlog2.pop %v2206
        %v2208 = vmul.f32 %v2207, 0.6931472
        %v2209 = vsub.f32 %v2201, %v2208
        %2210 = vrot.lane.b32.xlu0 %v2119, 8
        %v2211 = vpop.permute.xlu0 %2210
        %2213 = vrot.lane.b32.xlu0 %v1944, 72
        %v2214 = vpop.permute.xlu0 %2213
        %v2216 = vsel %vm908, %v2209, %v2211
        %v2217 = vsel %vm910, %v2216, %v2214
        %v2218 = vsel %vm912, %v2217, 0.0
        %s2219 = sadd.s32 %s445, 4
        %s2220 = sld [smem:[#allocation5 + %s2219]]
        %s2221 = scalar_lea.vmem %s3, %s2220
        %v2222 = vld [vmem:[%s2221] sm:$0x1]
        %v2223 = vsel %vm457, %v2222, %v2119
        %v2224 = vsel %vm459, %v2223, 1.0
        %v2226 = vsel %vm461, %v2224, 0
        %2228 = vmatprep.subr.mxu0 %v409
        %2229 = vmatpush1.msra.mxu0 %v408
        %2230 = vmatprep.subr.mxu0 %v412
        %2231 = vmatpush1.msra.mxu0 %v411
        %2232 = vmatprep.subr.mxu0 %v415
        %2233 = vmatpush1.msra.mxu0 %v414
        %2234 = vmatprep.subr.mxu0 %v418
        %2235 = vmatpush1.msra.mxu0 %v417
        %2236 = vmatprep.subr.mxu0 %v421
        %2237 = vmatpush1.msra.mxu0 %v420
        %2238 = vmatprep.subr.mxu0 %v424
        %2239 = vmatpush1.msra.mxu0 %v423
        %2240 = vmatprep.subr.mxu0 %v427
        %2241 = vmatpush1.msra.mxu0 %v426
        %2242 = vmatprep.subr.mxu0 %v430
        %2243 = vmatpush1.msra.mxu0 %v429
        %2244 = vmatprep.subr.mxu0 %v470
        %2245 = vmatpush1.msra.mxu0 %v467
        %2246 = vmatprep.subr.mxu0 0.0
        %2247 = vmatpush1.msra.mxu0 0.0
        %2248 = vmatprep.subr.mxu0 0.0
        %2249 = vmatpush1.msra.mxu0 0.0
        %2250 = vmatprep.subr.mxu0 0.0
        %2251 = vmatpush1.msra.mxu0 0.0
        %2252 = vmatprep.subr.mxu0 0.0
        %2253 = vmatpush1.msra.mxu0 0.0
        %2254 = vmatprep.subr.mxu0 0.0
        %2255 = vmatpush1.msra.mxu0 0.0
        %2256 = vmatprep.subr.mxu0 0.0
        %2257 = vmatpush1.msra.mxu0 0.0
        %2258 = vmatprep.subr.mxu0 0.0
        %2259 = vmatpush1.msra.mxu0 0.0
        %2260 = vmatprep.subr.mxu0 0.0
        %2261 = vmatpush1.msra.mxu0 0.0
        %2262 = vmatprep.subr.mxu0 0.0
        %2263 = vmatpush1.msra.mxu0 0.0
        %2264 = vmatprep.subr.mxu0 0.0
        %2265 = vmatpush1.msra.mxu0 0.0
        %2266 = vmatprep.subr.mxu0 0.0
        %2267 = vmatpush1.msra.mxu0 0.0
        %2268 = vmatprep.subr.mxu0 0.0
        %2269 = vmatpush1.msra.mxu0 0.0
        %2270 = vmatprep.subr.mxu0 0.0
        %2271 = vmatpush1.msra.mxu0 0.0
        %2272 = vmatprep.subr.mxu0 0.0
        %2273 = vmatpush1.msra.mxu0 0.0
        %2274 = vmatprep.subr.mxu0 0.0
        %2275 = vmatpush1.msra.mxu0 0.0
        %2276 = vmatprep.subr.mxu0 0.0
        %2277 = vmatpush1.msra.mxu0 0.0
        %2278 = vmatprep.subr.mxu0 0.0
        %2279 = vmatpush1.msra.mxu0 0.0
        %2280 = vmatprep.subr.mxu0 0.0
        %2281 = vmatpush1.msra.mxu0 0.0
        %2282 = vmatprep.subr.mxu0 0.0
        %2283 = vmatpush1.msra.mxu0 0.0
        %2284 = vmatprep.subr.mxu0 0.0
        %2285 = vmatpush1.msra.mxu0 0.0
        %2286 = vmatprep.subr.mxu0 0.0
        %2287 = vmatpush1.msra.mxu0 0.0
        %2288 = vmatprep.subr.mxu0 0.0
        %2289 = vmatpush1.msra.mxu0 0.0
        %2290 = vmatprep.subr.mxu0 0.0
        %2291 = vmatpush1.msra.mxu0 0.0
        %2292 = vmatprep.mubr.f32.mxu0 0.0
        %2293 = vmatmul.mubr.f32.gmra.mrb[0].mxu0 %v2226
        %v2294 = vpop.f32.mrb[0].mxu0
        %v2295 = vadd.f32 0.0, %v2294
        %v2296 = vpop.f32.mrb[0].mxu0
        %v2297 = vadd.f32 0.0, %v2296
        %2298 = vdwg.mxu0
        %2299 = vmatprep.subr.mxu0 0.0
        %2300 = vmatpush1.msra.mxu0 %v410
        %2301 = vmatprep.subr.mxu0 0.0
        %2302 = vmatpush1.msra.mxu0 %v413
        %2303 = vmatprep.subr.mxu0 0.0
        %2304 = vmatpush1.msra.mxu0 %v416
        %2305 = vmatprep.subr.mxu0 0.0
        %2306 = vmatpush1.msra.mxu0 %v419
        %2307 = vmatprep.subr.mxu0 0.0
        %2308 = vmatpush1.msra.mxu0 %v422
        %2309 = vmatprep.subr.mxu0 0.0
        %2310 = vmatpush1.msra.mxu0 %v425
        %2311 = vmatprep.subr.mxu0 0.0
        %2312 = vmatpush1.msra.mxu0 %v428
        %2313 = vmatprep.subr.mxu0 0.0
        %2314 = vmatpush1.msra.mxu0 %v431
        %2315 = vmatprep.subr.mxu0 0.0
        %2316 = vmatpush1.msra.mxu0 %v473
        %2317 = vmatprep.subr.mxu0 0.0
        %2318 = vmatpush1.msra.mxu0 0.0
        %2319 = vmatprep.subr.mxu0 0.0
        %2320 = vmatpush1.msra.mxu0 0.0
        %2321 = vmatprep.subr.mxu0 0.0
        %2322 = vmatpush1.msra.mxu0 0.0
        %2323 = vmatprep.subr.mxu0 0.0
        %2324 = vmatpush1.msra.mxu0 0.0
        %2325 = vmatprep.subr.mxu0 0.0
        %2326 = vmatpush1.msra.mxu0 0.0
        %2327 = vmatprep.subr.mxu0 0.0
        %2328 = vmatpush1.msra.mxu0 0.0
        %2329 = vmatprep.subr.mxu0 0.0
        %2330 = vmatpush1.msra.mxu0 0.0
        %2331 = vmatprep.subr.mxu0 0.0
        %2332 = vmatpush1.msra.mxu0 0.0
        %2333 = vmatprep.subr.mxu0 0.0
        %2334 = vmatpush1.msra.mxu0 0.0
        %2335 = vmatprep.subr.mxu0 0.0
        %2336 = vmatpush1.msra.mxu0 0.0
        %2337 = vmatprep.subr.mxu0 0.0
        %2338 = vmatpush1.msra.mxu0 0.0
        %2339 = vmatprep.subr.mxu0 0.0
        %2340 = vmatpush1.msra.mxu0 0.0
        %2341 = vmatprep.subr.mxu0 0.0
        %2342 = vmatpush1.msra.mxu0 0.0
        %2343 = vmatprep.subr.mxu0 0.0
        %2344 = vmatpush1.msra.mxu0 0.0
        %2345 = vmatprep.subr.mxu0 0.0
        %2346 = vmatpush1.msra.mxu0 0.0
        %2347 = vmatprep.subr.mxu0 0.0
        %2348 = vmatpush1.msra.mxu0 0.0
        %2349 = vmatprep.subr.mxu0 0.0
        %2350 = vmatpush1.msra.mxu0 0.0
        %2351 = vmatprep.subr.mxu0 0.0
        %2352 = vmatpush1.msra.mxu0 0.0
        %2353 = vmatprep.subr.mxu0 0.0
        %2354 = vmatpush1.msra.mxu0 0.0
        %2355 = vmatprep.subr.mxu0 0.0
        %2356 = vmatpush1.msra.mxu0 0.0
        %2357 = vmatprep.subr.mxu0 0.0
        %2358 = vmatpush1.msra.mxu0 0.0
        %2359 = vmatprep.subr.mxu0 0.0
        %2360 = vmatpush1.msra.mxu0 0.0
        %2361 = vmatprep.subr.mxu0 0.0
        %2362 = vmatpush1.msra.mxu0 0.0
        %2363 = vmatprep.mubr.f32.mxu0 0.0
        %2364 = vmatmul.mubr.f32.gmra.mrb[0].mxu0 %v2226
        %v2365 = vpop.f32.mrb[0].mxu0
        %v2366 = vadd.f32 0.0, %v2365
        %v2367 = vpop.f32.mrb[0].mxu0
        %2368 = vdwg.mxu0
        %v2369 = vsel %vm616, %v2295, -inf
        %2370 = vmax.xlane.f32.xlu0 %v2369
        %v2371 = vpop.xlane.xlu0 %2370
        %v2372 = vsub.f32 %v2295, %v2371
        %v2373 = vmul.f32 %v2372, 1.442695
        %v2374 = vpow.pop %v2373
        %v2375 = vsel %vm616, %v2374, 0.0
        %2376 = vadd.xlane.f32.xlu0 %v2375
        %v2377 = vpop.xlane.xlu0 %2376
        %v2378 = vrcp.pop %v2377
        %v2379 = vmul.f32 %v2374, %v2378
        %v2381 = vsel %vm628, %v2379, 0
        %2383 = vmatprep.subr.mxu0 0.0
        %2384 = vmatpush1.msra.mxu0 %v406
        %2385 = vmatprep.subr.mxu0 0.0
        %2386 = vmatpush1.msra.mxu0 %v407
        %2387 = vmatprep.subr.mxu0 0.0
        %2388 = vmatpush1.msra.mxu0 0.0
        %2389 = vmatprep.subr.mxu0 0.0
        %2390 = vmatpush1.msra.mxu0 0.0
        %2391 = vmatprep.subr.mxu0 0.0
        %2392 = vmatpush1.msra.mxu0 0.0
        %2393 = vmatprep.subr.mxu0 0.0
        %2394 = vmatpush1.msra.mxu0 0.0
        %2395 = vmatprep.subr.mxu0 0.0
        %2396 = vmatpush1.msra.mxu0 0.0
        %2397 = vmatprep.subr.mxu0 0.0
        %2398 = vmatpush1.msra.mxu0 0.0
        %2399 = vmatprep.subr.mxu0 0.0
        %2400 = vmatpush1.msra.mxu0 0.0
        %2401 = vmatprep.subr.mxu0 0.0
        %2402 = vmatpush1.msra.mxu0 0.0
        %2403 = vmatprep.subr.mxu0 0.0
        %2404 = vmatpush1.msra.mxu0 0.0
        %2405 = vmatprep.subr.mxu0 0.0
        %2406 = vmatpush1.msra.mxu0 0.0
        %2407 = vmatprep.subr.mxu0 0.0
        %2408 = vmatpush1.msra.mxu0 0.0
        %2409 = vmatprep.subr.mxu0 0.0
        %2410 = vmatpush1.msra.mxu0 0.0
        %2411 = vmatprep.subr.mxu0 0.0
        %2412 = vmatpush1.msra.mxu0 0.0
        %2413 = vmatprep.subr.mxu0 0.0
        %2414 = vmatpush1.msra.mxu0 0.0
        %2415 = vmatprep.subr.mxu0 0.0
        %2416 = vmatpush1.msra.mxu0 0.0
        %2417 = vmatprep.subr.mxu0 0.0
        %2418 = vmatpush1.msra.mxu0 0.0
        %2419 = vmatprep.subr.mxu0 0.0
        %2420 = vmatpush1.msra.mxu0 0.0
        %2421 = vmatprep.subr.mxu0 0.0
        %2422 = vmatpush1.msra.mxu0 0.0
        %2423 = vmatprep.subr.mxu0 0.0
        %2424 = vmatpush1.msra.mxu0 0.0
        %2425 = vmatprep.subr.mxu0 0.0
        %2426 = vmatpush1.msra.mxu0 0.0
        %2427 = vmatprep.subr.mxu0 0.0
        %2428 = vmatpush1.msra.mxu0 0.0
        %2429 = vmatprep.subr.mxu0 0.0
        %2430 = vmatpush1.msra.mxu0 0.0
        %2431 = vmatprep.subr.mxu0 0.0
        %2432 = vmatpush1.msra.mxu0 0.0
        %2433 = vmatprep.subr.mxu0 0.0
        %2434 = vmatpush1.msra.mxu0 0.0
        %2435 = vmatprep.subr.mxu0 0.0
        %2436 = vmatpush1.msra.mxu0 0.0
        %2437 = vmatprep.subr.mxu0 0.0
        %2438 = vmatpush1.msra.mxu0 0.0
        %2439 = vmatprep.subr.mxu0 0.0
        %2440 = vmatpush1.msra.mxu0 0.0
        %2441 = vmatprep.subr.mxu0 0.0
        %2442 = vmatpush1.msra.mxu0 0.0
        %2443 = vmatprep.subr.mxu0 0.0
        %2444 = vmatpush1.msra.mxu0 0.0
        %2445 = vmatprep.subr.mxu0 0.0
        %2446 = vmatpush1.msra.mxu0 0.0
        %2447 = vmatprep.mubr.f32.mxu0 0.0
        %2448 = vmatmul.mubr.f32.gmra.mrb[0].mxu0 %v2381
        %v2449 = vpop.f32.mrb[0].mxu0
        %v2450 = vadd.f32 0.0, %v2449
        %v2451 = vpop.f32.mrb[0].mxu0
        %2452 = vdwg.mxu0
        %v2453 = vadd.f32 %v2366, %v2450
        %v2454 = vmax.f32 %v2453, 0.0
        %v2455 = vsel %vm457, %v2454, 1.0
        %v2457 = vsel %vm705, %v2455, 0
        %2459 = vmatprep.subr.mxu0 0.0
        %2460 = vmatpush1.msra.mxu0 %v435
        %2461 = vmatprep.subr.mxu0 0.0
        %2462 = vmatpush1.msra.mxu0 %v436
        %2463 = vmatprep.subr.mxu0 0.0
        %2464 = vmatpush1.msra.mxu0 %v437
        %2465 = vmatprep.subr.mxu0 0.0
        %2466 = vmatpush1.msra.mxu0 %v438
        %2467 = vmatprep.subr.mxu0 0.0
        %2468 = vmatpush1.msra.mxu0 %v710
        %2469 = vmatprep.subr.mxu0 0.0
        %2470 = vmatpush1.msra.mxu0 0.0
        %2471 = vmatprep.subr.mxu0 0.0
        %2472 = vmatpush1.msra.mxu0 0.0
        %2473 = vmatprep.subr.mxu0 0.0
        %2474 = vmatpush1.msra.mxu0 0.0
        %2475 = vmatprep.subr.mxu0 0.0
        %2476 = vmatpush1.msra.mxu0 0.0
        %2477 = vmatprep.subr.mxu0 0.0
        %2478 = vmatpush1.msra.mxu0 0.0
        %2479 = vmatprep.subr.mxu0 0.0
        %2480 = vmatpush1.msra.mxu0 0.0
        %2481 = vmatprep.subr.mxu0 0.0
        %2482 = vmatpush1.msra.mxu0 0.0
        %2483 = vmatprep.subr.mxu0 0.0
        %2484 = vmatpush1.msra.mxu0 0.0
        %2485 = vmatprep.subr.mxu0 0.0
        %2486 = vmatpush1.msra.mxu0 0.0
        %2487 = vmatprep.subr.mxu0 0.0
        %2488 = vmatpush1.msra.mxu0 0.0
        %2489 = vmatprep.subr.mxu0 0.0
        %2490 = vmatpush1.msra.mxu0 0.0
        %2491 = vmatprep.subr.mxu0 0.0
        %2492 = vmatpush1.msra.mxu0 0.0
        %2493 = vmatprep.subr.mxu0 0.0
        %2494 = vmatpush1.msra.mxu0 0.0
        %2495 = vmatprep.subr.mxu0 0.0
        %2496 = vmatpush1.msra.mxu0 0.0
        %2497 = vmatprep.subr.mxu0 0.0
        %2498 = vmatpush1.msra.mxu0 0.0
        %2499 = vmatprep.subr.mxu0 0.0
        %2500 = vmatpush1.msra.mxu0 0.0
        %2501 = vmatprep.subr.mxu0 0.0
        %2502 = vmatpush1.msra.mxu0 0.0
        %2503 = vmatprep.subr.mxu0 0.0
        %2504 = vmatpush1.msra.mxu0 0.0
        %2505 = vmatprep.subr.mxu0 0.0
        %2506 = vmatpush1.msra.mxu0 0.0
        %2507 = vmatprep.subr.mxu0 0.0
        %2508 = vmatpush1.msra.mxu0 0.0
        %2509 = vmatprep.subr.mxu0 0.0
        %2510 = vmatpush1.msra.mxu0 0.0
        %2511 = vmatprep.subr.mxu0 0.0
        %2512 = vmatpush1.msra.mxu0 0.0
        %2513 = vmatprep.subr.mxu0 0.0
        %2514 = vmatpush1.msra.mxu0 0.0
        %2515 = vmatprep.subr.mxu0 0.0
        %2516 = vmatpush1.msra.mxu0 0.0
        %2517 = vmatprep.subr.mxu0 0.0
        %2518 = vmatpush1.msra.mxu0 0.0
        %2519 = vmatprep.subr.mxu0 0.0
        %2520 = vmatpush1.msra.mxu0 0.0
        %2521 = vmatprep.subr.mxu0 0.0
        %2522 = vmatpush1.msra.mxu0 0.0
        %2523 = vmatprep.mubr.f32.mxu0 0.0
        %2524 = vmatmul.mubr.f32.gmra.mrb[0].mxu0 %v2457
        %v2525 = vpop.f32.mrb[0].mxu0
        %v2526 = vadd.f32 0.0, %v2525
        %v2527 = vpop.f32.mrb[0].mxu0
        %2528 = vdwg.mxu0
        %v2529 = vadd.f32 %v2526, %v2297
        %v2530 = vxor.u32 %v2529, 2147483648
        %v2531 = vmul.f32 %v2530, 1.442695
        %v2532 = vpow.pop %v2531
        %v2533 = vadd.f32 %v2532, 1.0
        %v2534 = vrcp.pop %v2533
        %v2535 = vmul.f32 1.0, %v2534
        %2537 = vrot.lane.b32.xlu0 %v2297, 64
        %v2538 = vpop.permute.xlu0 %2537
        %v2540 = vmul.f32 %v2535, %v2538
        %2542 = vrot.lane.b32.xlu0 %v2540, 64
        %v2543 = vpop.permute.xlu0 %2542
        %v2545 = vadd.f32 %v2526, %v2543
        %v2546 = vtanh.pop %v2545
        %v2547 = vsub.f32 1.0, %v2535
        %2549 = vrot.lane.b32.xlu0 %v2546, 96
        %v2550 = vpop.permute.xlu0 %2549
        %v2552 = vmul.f32 %v2547, %v2550
        %v2553 = vmul.f32 %v2535, %v2119
        %v2554 = vadd.f32 %v2552, %v2553
        %2556 = vrot.lane.b32.xlu0 %v2554, 96
        %v2557 = vpop.permute.xlu0 %2556
        %v2559 = vsel %vm457, %v2557, 1.0
        %v2561 = vsel %vm705, %v2559, 0
        %2563 = vmatprep.subr.mxu0 0.0
        %2564 = vmatpush1.msra.mxu0 %v440
        %2565 = vmatprep.subr.mxu0 0.0
        %2566 = vmatpush1.msra.mxu0 %v441
        %2567 = vmatprep.subr.mxu0 0.0
        %2568 = vmatpush1.msra.mxu0 %v442
        %2569 = vmatprep.subr.mxu0 0.0
        %2570 = vmatpush1.msra.mxu0 %v443
        %2571 = vmatprep.subr.mxu0 0.0
        %2572 = vmatpush1.msra.mxu0 %v817
        %2573 = vmatprep.subr.mxu0 0.0
        %2574 = vmatpush1.msra.mxu0 0.0
        %2575 = vmatprep.subr.mxu0 0.0
        %2576 = vmatpush1.msra.mxu0 0.0
        %2577 = vmatprep.subr.mxu0 0.0
        %2578 = vmatpush1.msra.mxu0 0.0
        %2579 = vmatprep.subr.mxu0 0.0
        %2580 = vmatpush1.msra.mxu0 0.0
        %2581 = vmatprep.subr.mxu0 0.0
        %2582 = vmatpush1.msra.mxu0 0.0
        %2583 = vmatprep.subr.mxu0 0.0
        %2584 = vmatpush1.msra.mxu0 0.0
        %2585 = vmatprep.subr.mxu0 0.0
        %2586 = vmatpush1.msra.mxu0 0.0
        %2587 = vmatprep.subr.mxu0 0.0
        %2588 = vmatpush1.msra.mxu0 0.0
        %2589 = vmatprep.subr.mxu0 0.0
        %2590 = vmatpush1.msra.mxu0 0.0
        %2591 = vmatprep.subr.mxu0 0.0
        %2592 = vmatpush1.msra.mxu0 0.0
        %2593 = vmatprep.subr.mxu0 0.0
        %2594 = vmatpush1.msra.mxu0 0.0
        %2595 = vmatprep.subr.mxu0 0.0
        %2596 = vmatpush1.msra.mxu0 0.0
        %2597 = vmatprep.subr.mxu0 0.0
        %2598 = vmatpush1.msra.mxu0 0.0
        %2599 = vmatprep.subr.mxu0 0.0
        %2600 = vmatpush1.msra.mxu0 0.0
        %2601 = vmatprep.subr.mxu0 0.0
        %2602 = vmatpush1.msra.mxu0 0.0
        %2603 = vmatprep.subr.mxu0 0.0
        %2604 = vmatpush1.msra.mxu0 0.0
        %2605 = vmatprep.subr.mxu0 0.0
        %2606 = vmatpush1.msra.mxu0 0.0
        %2607 = vmatprep.subr.mxu0 0.0
        %2608 = vmatpush1.msra.mxu0 0.0
        %2609 = vmatprep.subr.mxu0 0.0
        %2610 = vmatpush1.msra.mxu0 0.0
        %2611 = vmatprep.subr.mxu0 0.0
        %2612 = vmatpush1.msra.mxu0 0.0
        %2613 = vmatprep.subr.mxu0 0.0
        %2614 = vmatpush1.msra.mxu0 0.0
        %2615 = vmatprep.subr.mxu0 0.0
        %2616 = vmatpush1.msra.mxu0 0.0
        %2617 = vmatprep.subr.mxu0 0.0
        %2618 = vmatpush1.msra.mxu0 0.0
        %2619 = vmatprep.subr.mxu0 0.0
        %2620 = vmatpush1.msra.mxu0 0.0
        %2621 = vmatprep.subr.mxu0 0.0
        %2622 = vmatpush1.msra.mxu0 0.0
        %2623 = vmatprep.subr.mxu0 0.0
        %2624 = vmatpush1.msra.mxu0 0.0
        %2625 = vmatprep.subr.mxu0 0.0
        %2626 = vmatpush1.msra.mxu0 0.0
        %2627 = vmatprep.mubr.f32.mxu0 0.0
        %2628 = vmatmul.mubr.f32.gmra.mrb[0].mxu0 %v2561
        %v2629 = vpop.f32.mrb[0].mxu0
        %v2630 = vadd.f32 0.0, %v2629
        %v2631 = vpop.f32.mrb[0].mxu0
        %2632 = vdwg.mxu0
        %v2633 = vsel %vm889, %v2630, -inf
        %2634 = vmax.xlane.f32.xlu0 %v2633
        %v2635 = vpop.xlane.xlu0 %2634
        %v2636 = vsub.f32 %v2630, %v2635
        %v2637 = vmul.f32 %v2636, 1.442695
        %v2638 = vpow.pop %v2637
        %v2639 = vsel %vm889, %v2638, 0.0
        %2640 = vadd.xlane.f32.xlu0 %v2639
        %v2641 = vpop.xlane.xlu0 %2640
        %v2642 = vlog2.pop %v2641
        %v2643 = vmul.f32 %v2642, 0.6931472
        %v2644 = vsub.f32 %v2636, %v2643
        %2645 = vrot.lane.b32.xlu0 %v2554, 8
        %v2646 = vpop.permute.xlu0 %2645
        %2648 = vrot.lane.b32.xlu0 %v2379, 72
        %v2649 = vpop.permute.xlu0 %2648
        %v2651 = vsel %vm908, %v2644, %v2646
        %v2652 = vsel %vm910, %v2651, %v2649
        %v2653 = vsel %vm912, %v2652, 0.0
        %s2654 = sadd.s32 %s445, 5
        %s2655 = sld [smem:[#allocation5 + %s2654]]
        %s2656 = scalar_lea.vmem %s3, %s2655
        %v2657 = vld [vmem:[%s2656] sm:$0x1]
        %v2658 = vsel %vm457, %v2657, %v2554
        %v2659 = vsel %vm459, %v2658, 1.0
        %v2661 = vsel %vm461, %v2659, 0
        %2663 = vmatprep.subr.mxu0 %v409
        %2664 = vmatpush1.msra.mxu0 %v408
        %2665 = vmatprep.subr.mxu0 %v412
        %2666 = vmatpush1.msra.mxu0 %v411
        %2667 = vmatprep.subr.mxu0 %v415
        %2668 = vmatpush1.msra.mxu0 %v414
        %2669 = vmatprep.subr.mxu0 %v418
        %2670 = vmatpush1.msra.mxu0 %v417
        %2671 = vmatprep.subr.mxu0 %v421
        %2672 = vmatpush1.msra.mxu0 %v420
        %2673 = vmatprep.subr.mxu0 %v424
        %2674 = vmatpush1.msra.mxu0 %v423
        %2675 = vmatprep.subr.mxu0 %v427
        %2676 = vmatpush1.msra.mxu0 %v426
        %2677 = vmatprep.subr.mxu0 %v430
        %2678 = vmatpush1.msra.mxu0 %v429
        %2679 = vmatprep.subr.mxu0 %v470
        %2680 = vmatpush1.msra.mxu0 %v467
        %2681 = vmatprep.subr.mxu0 0.0
        %2682 = vmatpush1.msra.mxu0 0.0
        %2683 = vmatprep.subr.mxu0 0.0
        %2684 = vmatpush1.msra.mxu0 0.0
        %2685 = vmatprep.subr.mxu0 0.0
        %2686 = vmatpush1.msra.mxu0 0.0
        %2687 = vmatprep.subr.mxu0 0.0
        %2688 = vmatpush1.msra.mxu0 0.0
        %2689 = vmatprep.subr.mxu0 0.0
        %2690 = vmatpush1.msra.mxu0 0.0
        %2691 = vmatprep.subr.mxu0 0.0
        %2692 = vmatpush1.msra.mxu0 0.0
        %2693 = vmatprep.subr.mxu0 0.0
        %2694 = vmatpush1.msra.mxu0 0.0
        %2695 = vmatprep.subr.mxu0 0.0
        %2696 = vmatpush1.msra.mxu0 0.0
        %2697 = vmatprep.subr.mxu0 0.0
        %2698 = vmatpush1.msra.mxu0 0.0
        %2699 = vmatprep.subr.mxu0 0.0
        %2700 = vmatpush1.msra.mxu0 0.0
        %2701 = vmatprep.subr.mxu0 0.0
        %2702 = vmatpush1.msra.mxu0 0.0
        %2703 = vmatprep.subr.mxu0 0.0
        %2704 = vmatpush1.msra.mxu0 0.0
        %2705 = vmatprep.subr.mxu0 0.0
        %2706 = vmatpush1.msra.mxu0 0.0
        %2707 = vmatprep.subr.mxu0 0.0
        %2708 = vmatpush1.msra.mxu0 0.0
        %2709 = vmatprep.subr.mxu0 0.0
        %2710 = vmatpush1.msra.mxu0 0.0
        %2711 = vmatprep.subr.mxu0 0.0
        %2712 = vmatpush1.msra.mxu0 0.0
        %2713 = vmatprep.subr.mxu0 0.0
        %2714 = vmatpush1.msra.mxu0 0.0
        %2715 = vmatprep.subr.mxu0 0.0
        %2716 = vmatpush1.msra.mxu0 0.0
        %2717 = vmatprep.subr.mxu0 0.0
        %2718 = vmatpush1.msra.mxu0 0.0
        %2719 = vmatprep.subr.mxu0 0.0
        %2720 = vmatpush1.msra.mxu0 0.0
        %2721 = vmatprep.subr.mxu0 0.0
        %2722 = vmatpush1.msra.mxu0 0.0
        %2723 = vmatprep.subr.mxu0 0.0
        %2724 = vmatpush1.msra.mxu0 0.0
        %2725 = vmatprep.subr.mxu0 0.0
        %2726 = vmatpush1.msra.mxu0 0.0
        %2727 = vmatprep.mubr.f32.mxu0 0.0
        %2728 = vmatmul.mubr.f32.gmra.mrb[0].mxu0 %v2661
        %v2729 = vpop.f32.mrb[0].mxu0
        %v2730 = vadd.f32 0.0, %v2729
        %v2731 = vpop.f32.mrb[0].mxu0
        %v2732 = vadd.f32 0.0, %v2731
        %2733 = vdwg.mxu0
        %2734 = vmatprep.subr.mxu0 0.0
        %2735 = vmatpush1.msra.mxu0 %v410
        %2736 = vmatprep.subr.mxu0 0.0
        %2737 = vmatpush1.msra.mxu0 %v413
        %2738 = vmatprep.subr.mxu0 0.0
        %2739 = vmatpush1.msra.mxu0 %v416
        %2740 = vmatprep.subr.mxu0 0.0
        %2741 = vmatpush1.msra.mxu0 %v419
        %2742 = vmatprep.subr.mxu0 0.0
        %2743 = vmatpush1.msra.mxu0 %v422
        %2744 = vmatprep.subr.mxu0 0.0
        %2745 = vmatpush1.msra.mxu0 %v425
        %2746 = vmatprep.subr.mxu0 0.0
        %2747 = vmatpush1.msra.mxu0 %v428
        %2748 = vmatprep.subr.mxu0 0.0
        %2749 = vmatpush1.msra.mxu0 %v431
        %2750 = vmatprep.subr.mxu0 0.0
        %2751 = vmatpush1.msra.mxu0 %v473
        %2752 = vmatprep.subr.mxu0 0.0
        %2753 = vmatpush1.msra.mxu0 0.0
        %2754 = vmatprep.subr.mxu0 0.0
        %2755 = vmatpush1.msra.mxu0 0.0
        %2756 = vmatprep.subr.mxu0 0.0
        %2757 = vmatpush1.msra.mxu0 0.0
        %2758 = vmatprep.subr.mxu0 0.0
        %2759 = vmatpush1.msra.mxu0 0.0
        %2760 = vmatprep.subr.mxu0 0.0
        %2761 = vmatpush1.msra.mxu0 0.0
        %2762 = vmatprep.subr.mxu0 0.0
        %2763 = vmatpush1.msra.mxu0 0.0
        %2764 = vmatprep.subr.mxu0 0.0
        %2765 = vmatpush1.msra.mxu0 0.0
        %2766 = vmatprep.subr.mxu0 0.0
        %2767 = vmatpush1.msra.mxu0 0.0
        %2768 = vmatprep.subr.mxu0 0.0
        %2769 = vmatpush1.msra.mxu0 0.0
        %2770 = vmatprep.subr.mxu0 0.0
        %2771 = vmatpush1.msra.mxu0 0.0
        %2772 = vmatprep.subr.mxu0 0.0
        %2773 = vmatpush1.msra.mxu0 0.0
        %2774 = vmatprep.subr.mxu0 0.0
        %2775 = vmatpush1.msra.mxu0 0.0
        %2776 = vmatprep.subr.mxu0 0.0
        %2777 = vmatpush1.msra.mxu0 0.0
        %2778 = vmatprep.subr.mxu0 0.0
        %2779 = vmatpush1.msra.mxu0 0.0
        %2780 = vmatprep.subr.mxu0 0.0
        %2781 = vmatpush1.msra.mxu0 0.0
        %2782 = vmatprep.subr.mxu0 0.0
        %2783 = vmatpush1.msra.mxu0 0.0
        %2784 = vmatprep.subr.mxu0 0.0
        %2785 = vmatpush1.msra.mxu0 0.0
        %2786 = vmatprep.subr.mxu0 0.0
        %2787 = vmatpush1.msra.mxu0 0.0
        %2788 = vmatprep.subr.mxu0 0.0
        %2789 = vmatpush1.msra.mxu0 0.0
        %2790 = vmatprep.subr.mxu0 0.0
        %2791 = vmatpush1.msra.mxu0 0.0
        %2792 = vmatprep.subr.mxu0 0.0
        %2793 = vmatpush1.msra.mxu0 0.0
        %2794 = vmatprep.subr.mxu0 0.0
        %2795 = vmatpush1.msra.mxu0 0.0
        %2796 = vmatprep.subr.mxu0 0.0
        %2797 = vmatpush1.msra.mxu0 0.0
        %2798 = vmatprep.mubr.f32.mxu0 0.0
        %2799 = vmatmul.mubr.f32.gmra.mrb[0].mxu0 %v2661
        %v2800 = vpop.f32.mrb[0].mxu0
        %v2801 = vadd.f32 0.0, %v2800
        %v2802 = vpop.f32.mrb[0].mxu0
        %2803 = vdwg.mxu0
        %v2804 = vsel %vm616, %v2730, -inf
        %2805 = vmax.xlane.f32.xlu0 %v2804
        %v2806 = vpop.xlane.xlu0 %2805
        %v2807 = vsub.f32 %v2730, %v2806
        %v2808 = vmul.f32 %v2807, 1.442695
        %v2809 = vpow.pop %v2808
        %v2810 = vsel %vm616, %v2809, 0.0
        %2811 = vadd.xlane.f32.xlu0 %v2810
        %v2812 = vpop.xlane.xlu0 %2811
        %v2813 = vrcp.pop %v2812
        %v2814 = vmul.f32 %v2809, %v2813
        %v2816 = vsel %vm628, %v2814, 0
        %2818 = vmatprep.subr.mxu0 0.0
        %2819 = vmatpush1.msra.mxu0 %v406
        %2820 = vmatprep.subr.mxu0 0.0
        %2821 = vmatpush1.msra.mxu0 %v407
        %2822 = vmatprep.subr.mxu0 0.0
        %2823 = vmatpush1.msra.mxu0 0.0
        %2824 = vmatprep.subr.mxu0 0.0
        %2825 = vmatpush1.msra.mxu0 0.0
        %2826 = vmatprep.subr.mxu0 0.0
        %2827 = vmatpush1.msra.mxu0 0.0
        %2828 = vmatprep.subr.mxu0 0.0
        %2829 = vmatpush1.msra.mxu0 0.0
        %2830 = vmatprep.subr.mxu0 0.0
        %2831 = vmatpush1.msra.mxu0 0.0
        %2832 = vmatprep.subr.mxu0 0.0
        %2833 = vmatpush1.msra.mxu0 0.0
        %2834 = vmatprep.subr.mxu0 0.0
        %2835 = vmatpush1.msra.mxu0 0.0
        %2836 = vmatprep.subr.mxu0 0.0
        %2837 = vmatpush1.msra.mxu0 0.0
        %2838 = vmatprep.subr.mxu0 0.0
        %2839 = vmatpush1.msra.mxu0 0.0
        %2840 = vmatprep.subr.mxu0 0.0
        %2841 = vmatpush1.msra.mxu0 0.0
        %2842 = vmatprep.subr.mxu0 0.0
        %2843 = vmatpush1.msra.mxu0 0.0
        %2844 = vmatprep.subr.mxu0 0.0
        %2845 = vmatpush1.msra.mxu0 0.0
        %2846 = vmatprep.subr.mxu0 0.0
        %2847 = vmatpush1.msra.mxu0 0.0
        %2848 = vmatprep.subr.mxu0 0.0
        %2849 = vmatpush1.msra.mxu0 0.0
        %2850 = vmatprep.subr.mxu0 0.0
        %2851 = vmatpush1.msra.mxu0 0.0
        %2852 = vmatprep.subr.mxu0 0.0
        %2853 = vmatpush1.msra.mxu0 0.0
        %2854 = vmatprep.subr.mxu0 0.0
        %2855 = vmatpush1.msra.mxu0 0.0
        %2856 = vmatprep.subr.mxu0 0.0
        %2857 = vmatpush1.msra.mxu0 0.0
        %2858 = vmatprep.subr.mxu0 0.0
        %2859 = vmatpush1.msra.mxu0 0.0
        %2860 = vmatprep.subr.mxu0 0.0
        %2861 = vmatpush1.msra.mxu0 0.0
        %2862 = vmatprep.subr.mxu0 0.0
        %2863 = vmatpush1.msra.mxu0 0.0
        %2864 = vmatprep.subr.mxu0 0.0
        %2865 = vmatpush1.msra.mxu0 0.0
        %2866 = vmatprep.subr.mxu0 0.0
        %2867 = vmatpush1.msra.mxu0 0.0
        %2868 = vmatprep.subr.mxu0 0.0
        %2869 = vmatpush1.msra.mxu0 0.0
        %2870 = vmatprep.subr.mxu0 0.0
        %2871 = vmatpush1.msra.mxu0 0.0
        %2872 = vmatprep.subr.mxu0 0.0
        %2873 = vmatpush1.msra.mxu0 0.0
        %2874 = vmatprep.subr.mxu0 0.0
        %2875 = vmatpush1.msra.mxu0 0.0
        %2876 = vmatprep.subr.mxu0 0.0
        %2877 = vmatpush1.msra.mxu0 0.0
        %2878 = vmatprep.subr.mxu0 0.0
        %2879 = vmatpush1.msra.mxu0 0.0
        %2880 = vmatprep.subr.mxu0 0.0
        %2881 = vmatpush1.msra.mxu0 0.0
        %2882 = vmatprep.mubr.f32.mxu0 0.0
        %2883 = vmatmul.mubr.f32.gmra.mrb[0].mxu0 %v2816
        %v2884 = vpop.f32.mrb[0].mxu0
        %v2885 = vadd.f32 0.0, %v2884
        %v2886 = vpop.f32.mrb[0].mxu0
        %2887 = vdwg.mxu0
        %v2888 = vadd.f32 %v2801, %v2885
        %v2889 = vmax.f32 %v2888, 0.0
        %v2890 = vsel %vm457, %v2889, 1.0
        %v2892 = vsel %vm705, %v2890, 0
        %2894 = vmatprep.subr.mxu0 0.0
        %2895 = vmatpush1.msra.mxu0 %v435
        %2896 = vmatprep.subr.mxu0 0.0
        %2897 = vmatpush1.msra.mxu0 %v436
        %2898 = vmatprep.subr.mxu0 0.0
        %2899 = vmatpush1.msra.mxu0 %v437
        %2900 = vmatprep.subr.mxu0 0.0
        %2901 = vmatpush1.msra.mxu0 %v438
        %2902 = vmatprep.subr.mxu0 0.0
        %2903 = vmatpush1.msra.mxu0 %v710
        %2904 = vmatprep.subr.mxu0 0.0
        %2905 = vmatpush1.msra.mxu0 0.0
        %2906 = vmatprep.subr.mxu0 0.0
        %2907 = vmatpush1.msra.mxu0 0.0
        %2908 = vmatprep.subr.mxu0 0.0
        %2909 = vmatpush1.msra.mxu0 0.0
        %2910 = vmatprep.subr.mxu0 0.0
        %2911 = vmatpush1.msra.mxu0 0.0
        %2912 = vmatprep.subr.mxu0 0.0
        %2913 = vmatpush1.msra.mxu0 0.0
        %2914 = vmatprep.subr.mxu0 0.0
        %2915 = vmatpush1.msra.mxu0 0.0
        %2916 = vmatprep.subr.mxu0 0.0
        %2917 = vmatpush1.msra.mxu0 0.0
        %2918 = vmatprep.subr.mxu0 0.0
        %2919 = vmatpush1.msra.mxu0 0.0
        %2920 = vmatprep.subr.mxu0 0.0
        %2921 = vmatpush1.msra.mxu0 0.0
        %2922 = vmatprep.subr.mxu0 0.0
        %2923 = vmatpush1.msra.mxu0 0.0
        %2924 = vmatprep.subr.mxu0 0.0
        %2925 = vmatpush1.msra.mxu0 0.0
        %2926 = vmatprep.subr.mxu0 0.0
        %2927 = vmatpush1.msra.mxu0 0.0
        %2928 = vmatprep.subr.mxu0 0.0
        %2929 = vmatpush1.msra.mxu0 0.0
        %2930 = vmatprep.subr.mxu0 0.0
        %2931 = vmatpush1.msra.mxu0 0.0
        %2932 = vmatprep.subr.mxu0 0.0
        %2933 = vmatpush1.msra.mxu0 0.0
        %2934 = vmatprep.subr.mxu0 0.0
        %2935 = vmatpush1.msra.mxu0 0.0
        %2936 = vmatprep.subr.mxu0 0.0
        %2937 = vmatpush1.msra.mxu0 0.0
        %2938 = vmatprep.subr.mxu0 0.0
        %2939 = vmatpush1.msra.mxu0 0.0
        %2940 = vmatprep.subr.mxu0 0.0
        %2941 = vmatpush1.msra.mxu0 0.0
        %2942 = vmatprep.subr.mxu0 0.0
        %2943 = vmatpush1.msra.mxu0 0.0
        %2944 = vmatprep.subr.mxu0 0.0
        %2945 = vmatpush1.msra.mxu0 0.0
        %2946 = vmatprep.subr.mxu0 0.0
        %2947 = vmatpush1.msra.mxu0 0.0
        %2948 = vmatprep.subr.mxu0 0.0
        %2949 = vmatpush1.msra.mxu0 0.0
        %2950 = vmatprep.subr.mxu0 0.0
        %2951 = vmatpush1.msra.mxu0 0.0
        %2952 = vmatprep.subr.mxu0 0.0
        %2953 = vmatpush1.msra.mxu0 0.0
        %2954 = vmatprep.subr.mxu0 0.0
        %2955 = vmatpush1.msra.mxu0 0.0
        %2956 = vmatprep.subr.mxu0 0.0
        %2957 = vmatpush1.msra.mxu0 0.0
        %2958 = vmatprep.mubr.f32.mxu0 0.0
        %2959 = vmatmul.mubr.f32.gmra.mrb[0].mxu0 %v2892
        %v2960 = vpop.f32.mrb[0].mxu0
        %v2961 = vadd.f32 0.0, %v2960
        %v2962 = vpop.f32.mrb[0].mxu0
        %2963 = vdwg.mxu0
        %v2964 = vadd.f32 %v2961, %v2732
        %v2965 = vxor.u32 %v2964, 2147483648
        %v2966 = vmul.f32 %v2965, 1.442695
        %v2967 = vpow.pop %v2966
        %v2968 = vadd.f32 %v2967, 1.0
        %v2969 = vrcp.pop %v2968
        %v2970 = vmul.f32 1.0, %v2969
        %2972 = vrot.lane.b32.xlu0 %v2732, 64
        %v2973 = vpop.permute.xlu0 %2972
        %v2975 = vmul.f32 %v2970, %v2973
        %2977 = vrot.lane.b32.xlu0 %v2975, 64
        %v2978 = vpop.permute.xlu0 %2977
        %v2980 = vadd.f32 %v2961, %v2978
        %v2981 = vtanh.pop %v2980
        %v2982 = vsub.f32 1.0, %v2970
        %2984 = vrot.lane.b32.xlu0 %v2981, 96
        %v2985 = vpop.permute.xlu0 %2984
        %v2987 = vmul.f32 %v2982, %v2985
        %v2988 = vmul.f32 %v2970, %v2554
        %v2989 = vadd.f32 %v2987, %v2988
        %2991 = vrot.lane.b32.xlu0 %v2989, 96
        %v2992 = vpop.permute.xlu0 %2991
        %v2994 = vsel %vm457, %v2992, 1.0
        %v2996 = vsel %vm705, %v2994, 0
        %2998 = vmatprep.subr.mxu0 0.0
        %2999 = vmatpush1.msra.mxu0 %v440
        %3000 = vmatprep.subr.mxu0 0.0
        %3001 = vmatpush1.msra.mxu0 %v441
        %3002 = vmatprep.subr.mxu0 0.0
        %3003 = vmatpush1.msra.mxu0 %v442
        %3004 = vmatprep.subr.mxu0 0.0
        %3005 = vmatpush1.msra.mxu0 %v443
        %3006 = vmatprep.subr.mxu0 0.0
        %3007 = vmatpush1.msra.mxu0 %v817
        %3008 = vmatprep.subr.mxu0 0.0
        %3009 = vmatpush1.msra.mxu0 0.0
        %3010 = vmatprep.subr.mxu0 0.0
        %3011 = vmatpush1.msra.mxu0 0.0
        %3012 = vmatprep.subr.mxu0 0.0
        %3013 = vmatpush1.msra.mxu0 0.0
        %3014 = vmatprep.subr.mxu0 0.0
        %3015 = vmatpush1.msra.mxu0 0.0
        %3016 = vmatprep.subr.mxu0 0.0
        %3017 = vmatpush1.msra.mxu0 0.0
        %3018 = vmatprep.subr.mxu0 0.0
        %3019 = vmatpush1.msra.mxu0 0.0
        %3020 = vmatprep.subr.mxu0 0.0
        %3021 = vmatpush1.msra.mxu0 0.0
        %3022 = vmatprep.subr.mxu0 0.0
        %3023 = vmatpush1.msra.mxu0 0.0
        %3024 = vmatprep.subr.mxu0 0.0
        %3025 = vmatpush1.msra.mxu0 0.0
        %3026 = vmatprep.subr.mxu0 0.0
        %3027 = vmatpush1.msra.mxu0 0.0
        %3028 = vmatprep.subr.mxu0 0.0
        %3029 = vmatpush1.msra.mxu0 0.0
        %3030 = vmatprep.subr.mxu0 0.0
        %3031 = vmatpush1.msra.mxu0 0.0
        %3032 = vmatprep.subr.mxu0 0.0
        %3033 = vmatpush1.msra.mxu0 0.0
        %3034 = vmatprep.subr.mxu0 0.0
        %3035 = vmatpush1.msra.mxu0 0.0
        %3036 = vmatprep.subr.mxu0 0.0
        %3037 = vmatpush1.msra.mxu0 0.0
        %3038 = vmatprep.subr.mxu0 0.0
        %3039 = vmatpush1.msra.mxu0 0.0
        %3040 = vmatprep.subr.mxu0 0.0
        %3041 = vmatpush1.msra.mxu0 0.0
        %3042 = vmatprep.subr.mxu0 0.0
        %3043 = vmatpush1.msra.mxu0 0.0
        %3044 = vmatprep.subr.mxu0 0.0
        %3045 = vmatpush1.msra.mxu0 0.0
        %3046 = vmatprep.subr.mxu0 0.0
        %3047 = vmatpush1.msra.mxu0 0.0
        %3048 = vmatprep.subr.mxu0 0.0
        %3049 = vmatpush1.msra.mxu0 0.0
        %3050 = vmatprep.subr.mxu0 0.0
        %3051 = vmatpush1.msra.mxu0 0.0
        %3052 = vmatprep.subr.mxu0 0.0
        %3053 = vmatpush1.msra.mxu0 0.0
        %3054 = vmatprep.subr.mxu0 0.0
        %3055 = vmatpush1.msra.mxu0 0.0
        %3056 = vmatprep.subr.mxu0 0.0
        %3057 = vmatpush1.msra.mxu0 0.0
        %3058 = vmatprep.subr.mxu0 0.0
        %3059 = vmatpush1.msra.mxu0 0.0
        %3060 = vmatprep.subr.mxu0 0.0
        %3061 = vmatpush1.msra.mxu0 0.0
        %3062 = vmatprep.mubr.f32.mxu0 0.0
        %3063 = vmatmul.mubr.f32.gmra.mrb[0].mxu0 %v2996
        %v3064 = vpop.f32.mrb[0].mxu0
        %v3065 = vadd.f32 0.0, %v3064
        %v3066 = vpop.f32.mrb[0].mxu0
        %3067 = vdwg.mxu0
        %v3068 = vsel %vm889, %v3065, -inf
        %3069 = vmax.xlane.f32.xlu0 %v3068
        %v3070 = vpop.xlane.xlu0 %3069
        %v3071 = vsub.f32 %v3065, %v3070
        %v3072 = vmul.f32 %v3071, 1.442695
        %v3073 = vpow.pop %v3072
        %v3074 = vsel %vm889, %v3073, 0.0
        %3075 = vadd.xlane.f32.xlu0 %v3074
        %v3076 = vpop.xlane.xlu0 %3075
        %v3077 = vlog2.pop %v3076
        %v3078 = vmul.f32 %v3077, 0.6931472
        %v3079 = vsub.f32 %v3071, %v3078
        %3080 = vrot.lane.b32.xlu0 %v2989, 8
        %v3081 = vpop.permute.xlu0 %3080
        %3083 = vrot.lane.b32.xlu0 %v2814, 72
        %v3084 = vpop.permute.xlu0 %3083
        %v3086 = vsel %vm908, %v3079, %v3081
        %v3087 = vsel %vm910, %v3086, %v3084
        %v3088 = vsel %vm912, %v3087, 0.0
        %s3089 = sadd.s32 %s445, 6
        %s3090 = sld [smem:[#allocation5 + %s3089]]
        %s3091 = scalar_lea.vmem %s3, %s3090
        %v3092 = vld [vmem:[%s3091] sm:$0x1]
        %v3093 = vsel %vm457, %v3092, %v2989
        %v3094 = vsel %vm459, %v3093, 1.0
        %v3096 = vsel %vm461, %v3094, 0
        %3098 = vmatprep.subr.mxu0 %v409
        %3099 = vmatpush1.msra.mxu0 %v408
        %3100 = vmatprep.subr.mxu0 %v412
        %3101 = vmatpush1.msra.mxu0 %v411
        %3102 = vmatprep.subr.mxu0 %v415
        %3103 = vmatpush1.msra.mxu0 %v414
        %3104 = vmatprep.subr.mxu0 %v418
        %3105 = vmatpush1.msra.mxu0 %v417
        %3106 = vmatprep.subr.mxu0 %v421
        %3107 = vmatpush1.msra.mxu0 %v420
        %3108 = vmatprep.subr.mxu0 %v424
        %3109 = vmatpush1.msra.mxu0 %v423
        %3110 = vmatprep.subr.mxu0 %v427
        %3111 = vmatpush1.msra.mxu0 %v426
        %3112 = vmatprep.subr.mxu0 %v430
        %3113 = vmatpush1.msra.mxu0 %v429
        %3114 = vmatprep.subr.mxu0 %v470
        %3115 = vmatpush1.msra.mxu0 %v467
        %3116 = vmatprep.subr.mxu0 0.0
        %3117 = vmatpush1.msra.mxu0 0.0
        %3118 = vmatprep.subr.mxu0 0.0
        %3119 = vmatpush1.msra.mxu0 0.0
        %3120 = vmatprep.subr.mxu0 0.0
        %3121 = vmatpush1.msra.mxu0 0.0
        %3122 = vmatprep.subr.mxu0 0.0
        %3123 = vmatpush1.msra.mxu0 0.0
        %3124 = vmatprep.subr.mxu0 0.0
        %3125 = vmatpush1.msra.mxu0 0.0
        %3126 = vmatprep.subr.mxu0 0.0
        %3127 = vmatpush1.msra.mxu0 0.0
        %3128 = vmatprep.subr.mxu0 0.0
        %3129 = vmatpush1.msra.mxu0 0.0
        %3130 = vmatprep.subr.mxu0 0.0
        %3131 = vmatpush1.msra.mxu0 0.0
        %3132 = vmatprep.subr.mxu0 0.0
        %3133 = vmatpush1.msra.mxu0 0.0
        %3134 = vmatprep.subr.mxu0 0.0
        %3135 = vmatpush1.msra.mxu0 0.0
        %3136 = vmatprep.subr.mxu0 0.0
        %3137 = vmatpush1.msra.mxu0 0.0
        %3138 = vmatprep.subr.mxu0 0.0
        %3139 = vmatpush1.msra.mxu0 0.0
        %3140 = vmatprep.subr.mxu0 0.0
        %3141 = vmatpush1.msra.mxu0 0.0
        %3142 = vmatprep.subr.mxu0 0.0
        %3143 = vmatpush1.msra.mxu0 0.0
        %3144 = vmatprep.subr.mxu0 0.0
        %3145 = vmatpush1.msra.mxu0 0.0
        %3146 = vmatprep.subr.mxu0 0.0
        %3147 = vmatpush1.msra.mxu0 0.0
        %3148 = vmatprep.subr.mxu0 0.0
        %3149 = vmatpush1.msra.mxu0 0.0
        %3150 = vmatprep.subr.mxu0 0.0
        %3151 = vmatpush1.msra.mxu0 0.0
        %3152 = vmatprep.subr.mxu0 0.0
        %3153 = vmatpush1.msra.mxu0 0.0
        %3154 = vmatprep.subr.mxu0 0.0
        %3155 = vmatpush1.msra.mxu0 0.0
        %3156 = vmatprep.subr.mxu0 0.0
        %3157 = vmatpush1.msra.mxu0 0.0
        %3158 = vmatprep.subr.mxu0 0.0
        %3159 = vmatpush1.msra.mxu0 0.0
        %3160 = vmatprep.subr.mxu0 0.0
        %3161 = vmatpush1.msra.mxu0 0.0
        %3162 = vmatprep.mubr.f32.mxu0 0.0
        %3163 = vmatmul.mubr.f32.gmra.mrb[0].mxu0 %v3096
        %v3164 = vpop.f32.mrb[0].mxu0
        %v3165 = vadd.f32 0.0, %v3164
        %v3166 = vpop.f32.mrb[0].mxu0
        %v3167 = vadd.f32 0.0, %v3166
        %3168 = vdwg.mxu0
        %3169 = vmatprep.subr.mxu0 0.0
        %3170 = vmatpush1.msra.mxu0 %v410
        %3171 = vmatprep.subr.mxu0 0.0
        %3172 = vmatpush1.msra.mxu0 %v413
        %3173 = vmatprep.subr.mxu0 0.0
        %3174 = vmatpush1.msra.mxu0 %v416
        %3175 = vmatprep.subr.mxu0 0.0
        %3176 = vmatpush1.msra.mxu0 %v419
        %3177 = vmatprep.subr.mxu0 0.0
        %3178 = vmatpush1.msra.mxu0 %v422
        %3179 = vmatprep.subr.mxu0 0.0
        %3180 = vmatpush1.msra.mxu0 %v425
        %3181 = vmatprep.subr.mxu0 0.0
        %3182 = vmatpush1.msra.mxu0 %v428
        %3183 = vmatprep.subr.mxu0 0.0
        %3184 = vmatpush1.msra.mxu0 %v431
        %3185 = vmatprep.subr.mxu0 0.0
        %3186 = vmatpush1.msra.mxu0 %v473
        %3187 = vmatprep.subr.mxu0 0.0
        %3188 = vmatpush1.msra.mxu0 0.0
        %3189 = vmatprep.subr.mxu0 0.0
        %3190 = vmatpush1.msra.mxu0 0.0
        %3191 = vmatprep.subr.mxu0 0.0
        %3192 = vmatpush1.msra.mxu0 0.0
        %3193 = vmatprep.subr.mxu0 0.0
        %3194 = vmatpush1.msra.mxu0 0.0
        %3195 = vmatprep.subr.mxu0 0.0
        %3196 = vmatpush1.msra.mxu0 0.0
        %3197 = vmatprep.subr.mxu0 0.0
        %3198 = vmatpush1.msra.mxu0 0.0
        %3199 = vmatprep.subr.mxu0 0.0
        %3200 = vmatpush1.msra.mxu0 0.0
        %3201 = vmatprep.subr.mxu0 0.0
        %3202 = vmatpush1.msra.mxu0 0.0
        %3203 = vmatprep.subr.mxu0 0.0
        %3204 = vmatpush1.msra.mxu0 0.0
        %3205 = vmatprep.subr.mxu0 0.0
        %3206 = vmatpush1.msra.mxu0 0.0
        %3207 = vmatprep.subr.mxu0 0.0
        %3208 = vmatpush1.msra.mxu0 0.0
        %3209 = vmatprep.subr.mxu0 0.0
        %3210 = vmatpush1.msra.mxu0 0.0
        %3211 = vmatprep.subr.mxu0 0.0
        %3212 = vmatpush1.msra.mxu0 0.0
        %3213 = vmatprep.subr.mxu0 0.0
        %3214 = vmatpush1.msra.mxu0 0.0
        %3215 = vmatprep.subr.mxu0 0.0
        %3216 = vmatpush1.msra.mxu0 0.0
        %3217 = vmatprep.subr.mxu0 0.0
        %3218 = vmatpush1.msra.mxu0 0.0
        %3219 = vmatprep.subr.mxu0 0.0
        %3220 = vmatpush1.msra.mxu0 0.0
        %3221 = vmatprep.subr.mxu0 0.0
        %3222 = vmatpush1.msra.mxu0 0.0
        %3223 = vmatprep.subr.mxu0 0.0
        %3224 = vmatpush1.msra.mxu0 0.0
        %3225 = vmatprep.subr.mxu0 0.0
        %3226 = vmatpush1.msra.mxu0 0.0
        %3227 = vmatprep.subr.mxu0 0.0
        %3228 = vmatpush1.msra.mxu0 0.0
        %3229 = vmatprep.subr.mxu0 0.0
        %3230 = vmatpush1.msra.mxu0 0.0
        %3231 = vmatprep.subr.mxu0 0.0
        %3232 = vmatpush1.msra.mxu0 0.0
        %3233 = vmatprep.mubr.f32.mxu0 0.0
        %3234 = vmatmul.mubr.f32.gmra.mrb[0].mxu0 %v3096
        %v3235 = vpop.f32.mrb[0].mxu0
        %v3236 = vadd.f32 0.0, %v3235
        %v3237 = vpop.f32.mrb[0].mxu0
        %3238 = vdwg.mxu0
        %v3239 = vsel %vm616, %v3165, -inf
        %3240 = vmax.xlane.f32.xlu0 %v3239
        %v3241 = vpop.xlane.xlu0 %3240
        %v3242 = vsub.f32 %v3165, %v3241
        %v3243 = vmul.f32 %v3242, 1.442695
        %v3244 = vpow.pop %v3243
        %v3245 = vsel %vm616, %v3244, 0.0
        %3246 = vadd.xlane.f32.xlu0 %v3245
        %v3247 = vpop.xlane.xlu0 %3246
        %v3248 = vrcp.pop %v3247
        %v3249 = vmul.f32 %v3244, %v3248
        %v3251 = vsel %vm628, %v3249, 0
        %3253 = vmatprep.subr.mxu0 0.0
        %3254 = vmatpush1.msra.mxu0 %v406
        %3255 = vmatprep.subr.mxu0 0.0
        %3256 = vmatpush1.msra.mxu0 %v407
        %3257 = vmatprep.subr.mxu0 0.0
        %3258 = vmatpush1.msra.mxu0 0.0
        %3259 = vmatprep.subr.mxu0 0.0
        %3260 = vmatpush1.msra.mxu0 0.0
        %3261 = vmatprep.subr.mxu0 0.0
        %3262 = vmatpush1.msra.mxu0 0.0
        %3263 = vmatprep.subr.mxu0 0.0
        %3264 = vmatpush1.msra.mxu0 0.0
        %3265 = vmatprep.subr.mxu0 0.0
        %3266 = vmatpush1.msra.mxu0 0.0
        %3267 = vmatprep.subr.mxu0 0.0
        %3268 = vmatpush1.msra.mxu0 0.0
        %3269 = vmatprep.subr.mxu0 0.0
        %3270 = vmatpush1.msra.mxu0 0.0
        %3271 = vmatprep.subr.mxu0 0.0
        %3272 = vmatpush1.msra.mxu0 0.0
        %3273 = vmatprep.subr.mxu0 0.0
        %3274 = vmatpush1.msra.mxu0 0.0
        %3275 = vmatprep.subr.mxu0 0.0
        %3276 = vmatpush1.msra.mxu0 0.0
        %3277 = vmatprep.subr.mxu0 0.0
        %3278 = vmatpush1.msra.mxu0 0.0
        %3279 = vmatprep.subr.mxu0 0.0
        %3280 = vmatpush1.msra.mxu0 0.0
        %3281 = vmatprep.subr.mxu0 0.0
        %3282 = vmatpush1.msra.mxu0 0.0
        %3283 = vmatprep.subr.mxu0 0.0
        %3284 = vmatpush1.msra.mxu0 0.0
        %3285 = vmatprep.subr.mxu0 0.0
        %3286 = vmatpush1.msra.mxu0 0.0
        %3287 = vmatprep.subr.mxu0 0.0
        %3288 = vmatpush1.msra.mxu0 0.0
        %3289 = vmatprep.subr.mxu0 0.0
        %3290 = vmatpush1.msra.mxu0 0.0
        %3291 = vmatprep.subr.mxu0 0.0
        %3292 = vmatpush1.msra.mxu0 0.0
        %3293 = vmatprep.subr.mxu0 0.0
        %3294 = vmatpush1.msra.mxu0 0.0
        %3295 = vmatprep.subr.mxu0 0.0
        %3296 = vmatpush1.msra.mxu0 0.0
        %3297 = vmatprep.subr.mxu0 0.0
        %3298 = vmatpush1.msra.mxu0 0.0
        %3299 = vmatprep.subr.mxu0 0.0
        %3300 = vmatpush1.msra.mxu0 0.0
        %3301 = vmatprep.subr.mxu0 0.0
        %3302 = vmatpush1.msra.mxu0 0.0
        %3303 = vmatprep.subr.mxu0 0.0
        %3304 = vmatpush1.msra.mxu0 0.0
        %3305 = vmatprep.subr.mxu0 0.0
        %3306 = vmatpush1.msra.mxu0 0.0
        %3307 = vmatprep.subr.mxu0 0.0
        %3308 = vmatpush1.msra.mxu0 0.0
        %3309 = vmatprep.subr.mxu0 0.0
        %3310 = vmatpush1.msra.mxu0 0.0
        %3311 = vmatprep.subr.mxu0 0.0
        %3312 = vmatpush1.msra.mxu0 0.0
        %3313 = vmatprep.subr.mxu0 0.0
        %3314 = vmatpush1.msra.mxu0 0.0
        %3315 = vmatprep.subr.mxu0 0.0
        %3316 = vmatpush1.msra.mxu0 0.0
        %3317 = vmatprep.mubr.f32.mxu0 0.0
        %3318 = vmatmul.mubr.f32.gmra.mrb[0].mxu0 %v3251
        %v3319 = vpop.f32.mrb[0].mxu0
        %v3320 = vadd.f32 0.0, %v3319
        %v3321 = vpop.f32.mrb[0].mxu0
        %3322 = vdwg.mxu0
        %v3323 = vadd.f32 %v3236, %v3320
        %v3324 = vmax.f32 %v3323, 0.0
        %v3325 = vsel %vm457, %v3324, 1.0
        %v3327 = vsel %vm705, %v3325, 0
        %3329 = vmatprep.subr.mxu0 0.0
        %3330 = vmatpush1.msra.mxu0 %v435
        %3331 = vmatprep.subr.mxu0 0.0
        %3332 = vmatpush1.msra.mxu0 %v436
        %3333 = vmatprep.subr.mxu0 0.0
        %3334 = vmatpush1.msra.mxu0 %v437
        %3335 = vmatprep.subr.mxu0 0.0
        %3336 = vmatpush1.msra.mxu0 %v438
        %3337 = vmatprep.subr.mxu0 0.0
        %3338 = vmatpush1.msra.mxu0 %v710
        %3339 = vmatprep.subr.mxu0 0.0
        %3340 = vmatpush1.msra.mxu0 0.0
        %3341 = vmatprep.subr.mxu0 0.0
        %3342 = vmatpush1.msra.mxu0 0.0
        %3343 = vmatprep.subr.mxu0 0.0
        %3344 = vmatpush1.msra.mxu0 0.0
        %3345 = vmatprep.subr.mxu0 0.0
        %3346 = vmatpush1.msra.mxu0 0.0
        %3347 = vmatprep.subr.mxu0 0.0
        %3348 = vmatpush1.msra.mxu0 0.0
        %3349 = vmatprep.subr.mxu0 0.0
        %3350 = vmatpush1.msra.mxu0 0.0
        %3351 = vmatprep.subr.mxu0 0.0
        %3352 = vmatpush1.msra.mxu0 0.0
        %3353 = vmatprep.subr.mxu0 0.0
        %3354 = vmatpush1.msra.mxu0 0.0
        %3355 = vmatprep.subr.mxu0 0.0
        %3356 = vmatpush1.msra.mxu0 0.0
        %3357 = vmatprep.subr.mxu0 0.0
        %3358 = vmatpush1.msra.mxu0 0.0
        %3359 = vmatprep.subr.mxu0 0.0
        %3360 = vmatpush1.msra.mxu0 0.0
        %3361 = vmatprep.subr.mxu0 0.0
        %3362 = vmatpush1.msra.mxu0 0.0
        %3363 = vmatprep.subr.mxu0 0.0
        %3364 = vmatpush1.msra.mxu0 0.0
        %3365 = vmatprep.subr.mxu0 0.0
        %3366 = vmatpush1.msra.mxu0 0.0
        %3367 = vmatprep.subr.mxu0 0.0
        %3368 = vmatpush1.msra.mxu0 0.0
        %3369 = vmatprep.subr.mxu0 0.0
        %3370 = vmatpush1.msra.mxu0 0.0
        %3371 = vmatprep.subr.mxu0 0.0
        %3372 = vmatpush1.msra.mxu0 0.0
        %3373 = vmatprep.subr.mxu0 0.0
        %3374 = vmatpush1.msra.mxu0 0.0
        %3375 = vmatprep.subr.mxu0 0.0
        %3376 = vmatpush1.msra.mxu0 0.0
        %3377 = vmatprep.subr.mxu0 0.0
        %3378 = vmatpush1.msra.mxu0 0.0
        %3379 = vmatprep.subr.mxu0 0.0
        %3380 = vmatpush1.msra.mxu0 0.0
        %3381 = vmatprep.subr.mxu0 0.0
        %3382 = vmatpush1.msra.mxu0 0.0
        %3383 = vmatprep.subr.mxu0 0.0
        %3384 = vmatpush1.msra.mxu0 0.0
        %3385 = vmatprep.subr.mxu0 0.0
        %3386 = vmatpush1.msra.mxu0 0.0
        %3387 = vmatprep.subr.mxu0 0.0
        %3388 = vmatpush1.msra.mxu0 0.0
        %3389 = vmatprep.subr.mxu0 0.0
        %3390 = vmatpush1.msra.mxu0 0.0
        %3391 = vmatprep.subr.mxu0 0.0
        %3392 = vmatpush1.msra.mxu0 0.0
        %3393 = vmatprep.mubr.f32.mxu0 0.0
        %3394 = vmatmul.mubr.f32.gmra.mrb[0].mxu0 %v3327
        %v3395 = vpop.f32.mrb[0].mxu0
        %v3396 = vadd.f32 0.0, %v3395
        %v3397 = vpop.f32.mrb[0].mxu0
        %3398 = vdwg.mxu0
        %v3399 = vadd.f32 %v3396, %v3167
        %v3400 = vxor.u32 %v3399, 2147483648
        %v3401 = vmul.f32 %v3400, 1.442695
        %v3402 = vpow.pop %v3401
        %v3403 = vadd.f32 %v3402, 1.0
        %v3404 = vrcp.pop %v3403
        %v3405 = vmul.f32 1.0, %v3404
        %3407 = vrot.lane.b32.xlu0 %v3167, 64
        %v3408 = vpop.permute.xlu0 %3407
        %v3410 = vmul.f32 %v3405, %v3408
        %3412 = vrot.lane.b32.xlu0 %v3410, 64
        %v3413 = vpop.permute.xlu0 %3412
        %v3415 = vadd.f32 %v3396, %v3413
        %v3416 = vtanh.pop %v3415
        %v3417 = vsub.f32 1.0, %v3405
        %3419 = vrot.lane.b32.xlu0 %v3416, 96
        %v3420 = vpop.permute.xlu0 %3419
        %v3422 = vmul.f32 %v3417, %v3420
        %v3423 = vmul.f32 %v3405, %v2989
        %v3424 = vadd.f32 %v3422, %v3423
        %3426 = vrot.lane.b32.xlu0 %v3424, 96
        %v3427 = vpop.permute.xlu0 %3426
        %v3429 = vsel %vm457, %v3427, 1.0
        %v3431 = vsel %vm705, %v3429, 0
        %3433 = vmatprep.subr.mxu0 0.0
        %3434 = vmatpush1.msra.mxu0 %v440
        %3435 = vmatprep.subr.mxu0 0.0
        %3436 = vmatpush1.msra.mxu0 %v441
        %3437 = vmatprep.subr.mxu0 0.0
        %3438 = vmatpush1.msra.mxu0 %v442
        %3439 = vmatprep.subr.mxu0 0.0
        %3440 = vmatpush1.msra.mxu0 %v443
        %3441 = vmatprep.subr.mxu0 0.0
        %3442 = vmatpush1.msra.mxu0 %v817
        %3443 = vmatprep.subr.mxu0 0.0
        %3444 = vmatpush1.msra.mxu0 0.0
        %3445 = vmatprep.subr.mxu0 0.0
        %3446 = vmatpush1.msra.mxu0 0.0
        %3447 = vmatprep.subr.mxu0 0.0
        %3448 = vmatpush1.msra.mxu0 0.0
        %3449 = vmatprep.subr.mxu0 0.0
        %3450 = vmatpush1.msra.mxu0 0.0
        %3451 = vmatprep.subr.mxu0 0.0
        %3452 = vmatpush1.msra.mxu0 0.0
        %3453 = vmatprep.subr.mxu0 0.0
        %3454 = vmatpush1.msra.mxu0 0.0
        %3455 = vmatprep.subr.mxu0 0.0
        %3456 = vmatpush1.msra.mxu0 0.0
        %3457 = vmatprep.subr.mxu0 0.0
        %3458 = vmatpush1.msra.mxu0 0.0
        %3459 = vmatprep.subr.mxu0 0.0
        %3460 = vmatpush1.msra.mxu0 0.0
        %3461 = vmatprep.subr.mxu0 0.0
        %3462 = vmatpush1.msra.mxu0 0.0
        %3463 = vmatprep.subr.mxu0 0.0
        %3464 = vmatpush1.msra.mxu0 0.0
        %3465 = vmatprep.subr.mxu0 0.0
        %3466 = vmatpush1.msra.mxu0 0.0
        %3467 = vmatprep.subr.mxu0 0.0
        %3468 = vmatpush1.msra.mxu0 0.0
        %3469 = vmatprep.subr.mxu0 0.0
        %3470 = vmatpush1.msra.mxu0 0.0
        %3471 = vmatprep.subr.mxu0 0.0
        %3472 = vmatpush1.msra.mxu0 0.0
        %3473 = vmatprep.subr.mxu0 0.0
        %3474 = vmatpush1.msra.mxu0 0.0
        %3475 = vmatprep.subr.mxu0 0.0
        %3476 = vmatpush1.msra.mxu0 0.0
        %3477 = vmatprep.subr.mxu0 0.0
        %3478 = vmatpush1.msra.mxu0 0.0
        %3479 = vmatprep.subr.mxu0 0.0
        %3480 = vmatpush1.msra.mxu0 0.0
        %3481 = vmatprep.subr.mxu0 0.0
        %3482 = vmatpush1.msra.mxu0 0.0
        %3483 = vmatprep.subr.mxu0 0.0
        %3484 = vmatpush1.msra.mxu0 0.0
        %3485 = vmatprep.subr.mxu0 0.0
        %3486 = vmatpush1.msra.mxu0 0.0
        %3487 = vmatprep.subr.mxu0 0.0
        %3488 = vmatpush1.msra.mxu0 0.0
        %3489 = vmatprep.subr.mxu0 0.0
        %3490 = vmatpush1.msra.mxu0 0.0
        %3491 = vmatprep.subr.mxu0 0.0
        %3492 = vmatpush1.msra.mxu0 0.0
        %3493 = vmatprep.subr.mxu0 0.0
        %3494 = vmatpush1.msra.mxu0 0.0
        %3495 = vmatprep.subr.mxu0 0.0
        %3496 = vmatpush1.msra.mxu0 0.0
        %3497 = vmatprep.mubr.f32.mxu0 0.0
        %3498 = vmatmul.mubr.f32.gmra.mrb[0].mxu0 %v3431
        %v3499 = vpop.f32.mrb[0].mxu0
        %v3500 = vadd.f32 0.0, %v3499
        %v3501 = vpop.f32.mrb[0].mxu0
        %3502 = vdwg.mxu0
        %v3503 = vsel %vm889, %v3500, -inf
        %3504 = vmax.xlane.f32.xlu0 %v3503
        %v3505 = vpop.xlane.xlu0 %3504
        %v3506 = vsub.f32 %v3500, %v3505
        %v3507 = vmul.f32 %v3506, 1.442695
        %v3508 = vpow.pop %v3507
        %v3509 = vsel %vm889, %v3508, 0.0
        %3510 = vadd.xlane.f32.xlu0 %v3509
        %v3511 = vpop.xlane.xlu0 %3510
        %v3512 = vlog2.pop %v3511
        %v3513 = vmul.f32 %v3512, 0.6931472
        %v3514 = vsub.f32 %v3506, %v3513
        %3515 = vrot.lane.b32.xlu0 %v3424, 8
        %v3516 = vpop.permute.xlu0 %3515
        %3518 = vrot.lane.b32.xlu0 %v3249, 72
        %v3519 = vpop.permute.xlu0 %3518
        %v3521 = vsel %vm908, %v3514, %v3516
        %v3522 = vsel %vm910, %v3521, %v3519
        %v3523 = vsel %vm912, %v3522, 0.0
        %s3524 = sadd.s32 %s445, 7
        %s3525 = sld [smem:[#allocation5 + %s3524]]
        %s3526 = scalar_lea.vmem %s3, %s3525
        %v3527 = vld [vmem:[%s3526] sm:$0x1]
        %v3528 = vsel %vm457, %v3527, %v3424
        %v3529 = vsel %vm459, %v3528, 1.0
        %v3531 = vsel %vm461, %v3529, 0
        %3533 = vmatprep.subr.mxu0 %v409
        %3534 = vmatpush1.msra.mxu0 %v408
        %3535 = vmatprep.subr.mxu0 %v412
        %3536 = vmatpush1.msra.mxu0 %v411
        %3537 = vmatprep.subr.mxu0 %v415
        %3538 = vmatpush1.msra.mxu0 %v414
        %3539 = vmatprep.subr.mxu0 %v418
        %3540 = vmatpush1.msra.mxu0 %v417
        %3541 = vmatprep.subr.mxu0 %v421
        %3542 = vmatpush1.msra.mxu0 %v420
        %3543 = vmatprep.subr.mxu0 %v424
        %3544 = vmatpush1.msra.mxu0 %v423
        %3545 = vmatprep.subr.mxu0 %v427
        %3546 = vmatpush1.msra.mxu0 %v426
        %3547 = vmatprep.subr.mxu0 %v430
        %3548 = vmatpush1.msra.mxu0 %v429
        %3549 = vmatprep.subr.mxu0 %v470
        %3550 = vmatpush1.msra.mxu0 %v467
        %3551 = vmatprep.subr.mxu0 0.0
        %3552 = vmatpush1.msra.mxu0 0.0
        %3553 = vmatprep.subr.mxu0 0.0
        %3554 = vmatpush1.msra.mxu0 0.0
        %3555 = vmatprep.subr.mxu0 0.0
        %3556 = vmatpush1.msra.mxu0 0.0
        %3557 = vmatprep.subr.mxu0 0.0
        %3558 = vmatpush1.msra.mxu0 0.0
        %3559 = vmatprep.subr.mxu0 0.0
        %3560 = vmatpush1.msra.mxu0 0.0
        %3561 = vmatprep.subr.mxu0 0.0
        %3562 = vmatpush1.msra.mxu0 0.0
        %3563 = vmatprep.subr.mxu0 0.0
        %3564 = vmatpush1.msra.mxu0 0.0
        %3565 = vmatprep.subr.mxu0 0.0
        %3566 = vmatpush1.msra.mxu0 0.0
        %3567 = vmatprep.subr.mxu0 0.0
        %3568 = vmatpush1.msra.mxu0 0.0
        %3569 = vmatprep.subr.mxu0 0.0
        %3570 = vmatpush1.msra.mxu0 0.0
        %3571 = vmatprep.subr.mxu0 0.0
        %3572 = vmatpush1.msra.mxu0 0.0
        %3573 = vmatprep.subr.mxu0 0.0
        %3574 = vmatpush1.msra.mxu0 0.0
        %3575 = vmatprep.subr.mxu0 0.0
        %3576 = vmatpush1.msra.mxu0 0.0
        %3577 = vmatprep.subr.mxu0 0.0
        %3578 = vmatpush1.msra.mxu0 0.0
        %3579 = vmatprep.subr.mxu0 0.0
        %3580 = vmatpush1.msra.mxu0 0.0
        %3581 = vmatprep.subr.mxu0 0.0
        %3582 = vmatpush1.msra.mxu0 0.0
        %3583 = vmatprep.subr.mxu0 0.0
        %3584 = vmatpush1.msra.mxu0 0.0
        %3585 = vmatprep.subr.mxu0 0.0
        %3586 = vmatpush1.msra.mxu0 0.0
        %3587 = vmatprep.subr.mxu0 0.0
        %3588 = vmatpush1.msra.mxu0 0.0
        %3589 = vmatprep.subr.mxu0 0.0
        %3590 = vmatpush1.msra.mxu0 0.0
        %3591 = vmatprep.subr.mxu0 0.0
        %3592 = vmatpush1.msra.mxu0 0.0
        %3593 = vmatprep.subr.mxu0 0.0
        %3594 = vmatpush1.msra.mxu0 0.0
        %3595 = vmatprep.subr.mxu0 0.0
        %3596 = vmatpush1.msra.mxu0 0.0
        %3597 = vmatprep.mubr.f32.mxu0 0.0
        %3598 = vmatmul.mubr.f32.gmra.mrb[0].mxu0 %v3531
        %v3599 = vpop.f32.mrb[0].mxu0
        %v3600 = vadd.f32 0.0, %v3599
        %v3601 = vpop.f32.mrb[0].mxu0
        %v3602 = vadd.f32 0.0, %v3601
        %3603 = vdwg.mxu0
        %3604 = vmatprep.subr.mxu0 0.0
        %3605 = vmatpush1.msra.mxu0 %v410
        %3606 = vmatprep.subr.mxu0 0.0
        %3607 = vmatpush1.msra.mxu0 %v413
        %3608 = vmatprep.subr.mxu0 0.0
        %3609 = vmatpush1.msra.mxu0 %v416
        %3610 = vmatprep.subr.mxu0 0.0
        %3611 = vmatpush1.msra.mxu0 %v419
        %3612 = vmatprep.subr.mxu0 0.0
        %3613 = vmatpush1.msra.mxu0 %v422
        %3614 = vmatprep.subr.mxu0 0.0
        %3615 = vmatpush1.msra.mxu0 %v425
        %3616 = vmatprep.subr.mxu0 0.0
        %3617 = vmatpush1.msra.mxu0 %v428
        %3618 = vmatprep.subr.mxu0 0.0
        %3619 = vmatpush1.msra.mxu0 %v431
        %3620 = vmatprep.subr.mxu0 0.0
        %3621 = vmatpush1.msra.mxu0 %v473
        %3622 = vmatprep.subr.mxu0 0.0
        %3623 = vmatpush1.msra.mxu0 0.0
        %3624 = vmatprep.subr.mxu0 0.0
        %3625 = vmatpush1.msra.mxu0 0.0
        %3626 = vmatprep.subr.mxu0 0.0
        %3627 = vmatpush1.msra.mxu0 0.0
        %3628 = vmatprep.subr.mxu0 0.0
        %3629 = vmatpush1.msra.mxu0 0.0
        %3630 = vmatprep.subr.mxu0 0.0
        %3631 = vmatpush1.msra.mxu0 0.0
        %3632 = vmatprep.subr.mxu0 0.0
        %3633 = vmatpush1.msra.mxu0 0.0
        %3634 = vmatprep.subr.mxu0 0.0
        %3635 = vmatpush1.msra.mxu0 0.0
        %3636 = vmatprep.subr.mxu0 0.0
        %3637 = vmatpush1.msra.mxu0 0.0
        %3638 = vmatprep.subr.mxu0 0.0
        %3639 = vmatpush1.msra.mxu0 0.0
        %3640 = vmatprep.subr.mxu0 0.0
        %3641 = vmatpush1.msra.mxu0 0.0
        %3642 = vmatprep.subr.mxu0 0.0
        %3643 = vmatpush1.msra.mxu0 0.0
        %3644 = vmatprep.subr.mxu0 0.0
        %3645 = vmatpush1.msra.mxu0 0.0
        %3646 = vmatprep.subr.mxu0 0.0
        %3647 = vmatpush1.msra.mxu0 0.0
        %3648 = vmatprep.subr.mxu0 0.0
        %3649 = vmatpush1.msra.mxu0 0.0
        %3650 = vmatprep.subr.mxu0 0.0
        %3651 = vmatpush1.msra.mxu0 0.0
        %3652 = vmatprep.subr.mxu0 0.0
        %3653 = vmatpush1.msra.mxu0 0.0
        %3654 = vmatprep.subr.mxu0 0.0
        %3655 = vmatpush1.msra.mxu0 0.0
        %3656 = vmatprep.subr.mxu0 0.0
        %3657 = vmatpush1.msra.mxu0 0.0
        %3658 = vmatprep.subr.mxu0 0.0
        %3659 = vmatpush1.msra.mxu0 0.0
        %3660 = vmatprep.subr.mxu0 0.0
        %3661 = vmatpush1.msra.mxu0 0.0
        %3662 = vmatprep.subr.mxu0 0.0
        %3663 = vmatpush1.msra.mxu0 0.0
        %3664 = vmatprep.subr.mxu0 0.0
        %3665 = vmatpush1.msra.mxu0 0.0
        %3666 = vmatprep.subr.mxu0 0.0
        %3667 = vmatpush1.msra.mxu0 0.0
        %3668 = vmatprep.mubr.f32.mxu0 0.0
        %3669 = vmatmul.mubr.f32.gmra.mrb[0].mxu0 %v3531
        %v3670 = vpop.f32.mrb[0].mxu0
        %v3671 = vadd.f32 0.0, %v3670
        %v3672 = vpop.f32.mrb[0].mxu0
        %3673 = vdwg.mxu0
        %v3674 = vsel %vm616, %v3600, -inf
        %3675 = vmax.xlane.f32.xlu0 %v3674
        %v3676 = vpop.xlane.xlu0 %3675
        %v3677 = vsub.f32 %v3600, %v3676
        %v3678 = vmul.f32 %v3677, 1.442695
        %v3679 = vpow.pop %v3678
        %v3680 = vsel %vm616, %v3679, 0.0
        %3681 = vadd.xlane.f32.xlu0 %v3680
        %v3682 = vpop.xlane.xlu0 %3681
        %v3683 = vrcp.pop %v3682
        %v3684 = vmul.f32 %v3679, %v3683
        %v3686 = vsel %vm628, %v3684, 0
        %3688 = vmatprep.subr.mxu0 0.0
        %3689 = vmatpush1.msra.mxu0 %v406
        %3690 = vmatprep.subr.mxu0 0.0
        %3691 = vmatpush1.msra.mxu0 %v407
        %3692 = vmatprep.subr.mxu0 0.0
        %3693 = vmatpush1.msra.mxu0 0.0
        %3694 = vmatprep.subr.mxu0 0.0
        %3695 = vmatpush1.msra.mxu0 0.0
        %3696 = vmatprep.subr.mxu0 0.0
        %3697 = vmatpush1.msra.mxu0 0.0
        %3698 = vmatprep.subr.mxu0 0.0
        %3699 = vmatpush1.msra.mxu0 0.0
        %3700 = vmatprep.subr.mxu0 0.0
        %3701 = vmatpush1.msra.mxu0 0.0
        %3702 = vmatprep.subr.mxu0 0.0
        %3703 = vmatpush1.msra.mxu0 0.0
        %3704 = vmatprep.subr.mxu0 0.0
        %3705 = vmatpush1.msra.mxu0 0.0
        %3706 = vmatprep.subr.mxu0 0.0
        %3707 = vmatpush1.msra.mxu0 0.0
        %3708 = vmatprep.subr.mxu0 0.0
        %3709 = vmatpush1.msra.mxu0 0.0
        %3710 = vmatprep.subr.mxu0 0.0
        %3711 = vmatpush1.msra.mxu0 0.0
        %3712 = vmatprep.subr.mxu0 0.0
        %3713 = vmatpush1.msra.mxu0 0.0
        %3714 = vmatprep.subr.mxu0 0.0
        %3715 = vmatpush1.msra.mxu0 0.0
        %3716 = vmatprep.subr.mxu0 0.0
        %3717 = vmatpush1.msra.mxu0 0.0
        %3718 = vmatprep.subr.mxu0 0.0
        %3719 = vmatpush1.msra.mxu0 0.0
        %3720 = vmatprep.subr.mxu0 0.0
        %3721 = vmatpush1.msra.mxu0 0.0
        %3722 = vmatprep.subr.mxu0 0.0
        %3723 = vmatpush1.msra.mxu0 0.0
        %3724 = vmatprep.subr.mxu0 0.0
        %3725 = vmatpush1.msra.mxu0 0.0
        %3726 = vmatprep.subr.mxu0 0.0
        %3727 = vmatpush1.msra.mxu0 0.0
        %3728 = vmatprep.subr.mxu0 0.0
        %3729 = vmatpush1.msra.mxu0 0.0
        %3730 = vmatprep.subr.mxu0 0.0
        %3731 = vmatpush1.msra.mxu0 0.0
        %3732 = vmatprep.subr.mxu0 0.0
        %3733 = vmatpush1.msra.mxu0 0.0
        %3734 = vmatprep.subr.mxu0 0.0
        %3735 = vmatpush1.msra.mxu0 0.0
        %3736 = vmatprep.subr.mxu0 0.0
        %3737 = vmatpush1.msra.mxu0 0.0
        %3738 = vmatprep.subr.mxu0 0.0
        %3739 = vmatpush1.msra.mxu0 0.0
        %3740 = vmatprep.subr.mxu0 0.0
        %3741 = vmatpush1.msra.mxu0 0.0
        %3742 = vmatprep.subr.mxu0 0.0
        %3743 = vmatpush1.msra.mxu0 0.0
        %3744 = vmatprep.subr.mxu0 0.0
        %3745 = vmatpush1.msra.mxu0 0.0
        %3746 = vmatprep.subr.mxu0 0.0
        %3747 = vmatpush1.msra.mxu0 0.0
        %3748 = vmatprep.subr.mxu0 0.0
        %3749 = vmatpush1.msra.mxu0 0.0
        %3750 = vmatprep.subr.mxu0 0.0
        %3751 = vmatpush1.msra.mxu0 0.0
        %3752 = vmatprep.mubr.f32.mxu0 0.0
        %3753 = vmatmul.mubr.f32.gmra.mrb[0].mxu0 %v3686
        %v3754 = vpop.f32.mrb[0].mxu0
        %v3755 = vadd.f32 0.0, %v3754
        %v3756 = vpop.f32.mrb[0].mxu0
        %3757 = vdwg.mxu0
        %v3758 = vadd.f32 %v3671, %v3755
        %v3759 = vmax.f32 %v3758, 0.0
        %v3760 = vsel %vm457, %v3759, 1.0
        %v3762 = vsel %vm705, %v3760, 0
        %3764 = vmatprep.subr.mxu0 0.0
        %3765 = vmatpush1.msra.mxu0 %v435
        %3766 = vmatprep.subr.mxu0 0.0
        %3767 = vmatpush1.msra.mxu0 %v436
        %3768 = vmatprep.subr.mxu0 0.0
        %3769 = vmatpush1.msra.mxu0 %v437
        %3770 = vmatprep.subr.mxu0 0.0
        %3771 = vmatpush1.msra.mxu0 %v438
        %3772 = vmatprep.subr.mxu0 0.0
        %3773 = vmatpush1.msra.mxu0 %v710
        %3774 = vmatprep.subr.mxu0 0.0
        %3775 = vmatpush1.msra.mxu0 0.0
        %3776 = vmatprep.subr.mxu0 0.0
        %3777 = vmatpush1.msra.mxu0 0.0
        %3778 = vmatprep.subr.mxu0 0.0
        %3779 = vmatpush1.msra.mxu0 0.0
        %3780 = vmatprep.subr.mxu0 0.0
        %3781 = vmatpush1.msra.mxu0 0.0
        %3782 = vmatprep.subr.mxu0 0.0
        %3783 = vmatpush1.msra.mxu0 0.0
        %3784 = vmatprep.subr.mxu0 0.0
        %3785 = vmatpush1.msra.mxu0 0.0
        %3786 = vmatprep.subr.mxu0 0.0
        %3787 = vmatpush1.msra.mxu0 0.0
        %3788 = vmatprep.subr.mxu0 0.0
        %3789 = vmatpush1.msra.mxu0 0.0
        %3790 = vmatprep.subr.mxu0 0.0
        %3791 = vmatpush1.msra.mxu0 0.0
        %3792 = vmatprep.subr.mxu0 0.0
        %3793 = vmatpush1.msra.mxu0 0.0
        %3794 = vmatprep.subr.mxu0 0.0
        %3795 = vmatpush1.msra.mxu0 0.0
        %3796 = vmatprep.subr.mxu0 0.0
        %3797 = vmatpush1.msra.mxu0 0.0
        %3798 = vmatprep.subr.mxu0 0.0
        %3799 = vmatpush1.msra.mxu0 0.0
        %3800 = vmatprep.subr.mxu0 0.0
        %3801 = vmatpush1.msra.mxu0 0.0
        %3802 = vmatprep.subr.mxu0 0.0
        %3803 = vmatpush1.msra.mxu0 0.0
        %3804 = vmatprep.subr.mxu0 0.0
        %3805 = vmatpush1.msra.mxu0 0.0
        %3806 = vmatprep.subr.mxu0 0.0
        %3807 = vmatpush1.msra.mxu0 0.0
        %3808 = vmatprep.subr.mxu0 0.0
        %3809 = vmatpush1.msra.mxu0 0.0
        %3810 = vmatprep.subr.mxu0 0.0
        %3811 = vmatpush1.msra.mxu0 0.0
        %3812 = vmatprep.subr.mxu0 0.0
        %3813 = vmatpush1.msra.mxu0 0.0
        %3814 = vmatprep.subr.mxu0 0.0
        %3815 = vmatpush1.msra.mxu0 0.0
        %3816 = vmatprep.subr.mxu0 0.0
        %3817 = vmatpush1.msra.mxu0 0.0
        %3818 = vmatprep.subr.mxu0 0.0
        %3819 = vmatpush1.msra.mxu0 0.0
        %3820 = vmatprep.subr.mxu0 0.0
        %3821 = vmatpush1.msra.mxu0 0.0
        %3822 = vmatprep.subr.mxu0 0.0
        %3823 = vmatpush1.msra.mxu0 0.0
        %3824 = vmatprep.subr.mxu0 0.0
        %3825 = vmatpush1.msra.mxu0 0.0
        %3826 = vmatprep.subr.mxu0 0.0
        %3827 = vmatpush1.msra.mxu0 0.0
        %3828 = vmatprep.mubr.f32.mxu0 0.0
        %3829 = vmatmul.mubr.f32.gmra.mrb[0].mxu0 %v3762
        %v3830 = vpop.f32.mrb[0].mxu0
        %v3831 = vadd.f32 0.0, %v3830
        %v3832 = vpop.f32.mrb[0].mxu0
        %3833 = vdwg.mxu0
        %v3834 = vadd.f32 %v3831, %v3602
        %v3835 = vxor.u32 %v3834, 2147483648
        %v3836 = vmul.f32 %v3835, 1.442695
        %v3837 = vpow.pop %v3836
        %v3838 = vadd.f32 %v3837, 1.0
        %v3839 = vrcp.pop %v3838
        %v3840 = vmul.f32 1.0, %v3839
        %3842 = vrot.lane.b32.xlu0 %v3602, 64
        %v3843 = vpop.permute.xlu0 %3842
        %v3845 = vmul.f32 %v3840, %v3843
        %3847 = vrot.lane.b32.xlu0 %v3845, 64
        %v3848 = vpop.permute.xlu0 %3847
        %v3850 = vadd.f32 %v3831, %v3848
        %v3851 = vtanh.pop %v3850
        %v3852 = vsub.f32 1.0, %v3840
        %3854 = vrot.lane.b32.xlu0 %v3851, 96
        %v3855 = vpop.permute.xlu0 %3854
        %v3857 = vmul.f32 %v3852, %v3855
        %v3858 = vmul.f32 %v3840, %v3424
        %v3859 = vadd.f32 %v3857, %v3858
        %3861 = vrot.lane.b32.xlu0 %v3859, 96
        %v3862 = vpop.permute.xlu0 %3861
        %v3864 = vsel %vm457, %v3862, 1.0
        %v3866 = vsel %vm705, %v3864, 0
        %3868 = vmatprep.subr.mxu0 0.0
        %3869 = vmatpush1.msra.mxu0 %v440
        %3870 = vmatprep.subr.mxu0 0.0
        %3871 = vmatpush1.msra.mxu0 %v441
        %3872 = vmatprep.subr.mxu0 0.0
        %3873 = vmatpush1.msra.mxu0 %v442
        %3874 = vmatprep.subr.mxu0 0.0
        %3875 = vmatpush1.msra.mxu0 %v443
        %3876 = vmatprep.subr.mxu0 0.0
        %3877 = vmatpush1.msra.mxu0 %v817
        %3878 = vmatprep.subr.mxu0 0.0
        %3879 = vmatpush1.msra.mxu0 0.0
        %3880 = vmatprep.subr.mxu0 0.0
        %3881 = vmatpush1.msra.mxu0 0.0
        %3882 = vmatprep.subr.mxu0 0.0
        %3883 = vmatpush1.msra.mxu0 0.0
        %3884 = vmatprep.subr.mxu0 0.0
        %3885 = vmatpush1.msra.mxu0 0.0
        %3886 = vmatprep.subr.mxu0 0.0
        %3887 = vmatpush1.msra.mxu0 0.0
        %3888 = vmatprep.subr.mxu0 0.0
        %3889 = vmatpush1.msra.mxu0 0.0
        %3890 = vmatprep.subr.mxu0 0.0
        %3891 = vmatpush1.msra.mxu0 0.0
        %3892 = vmatprep.subr.mxu0 0.0
        %3893 = vmatpush1.msra.mxu0 0.0
        %3894 = vmatprep.subr.mxu0 0.0
        %3895 = vmatpush1.msra.mxu0 0.0
        %3896 = vmatprep.subr.mxu0 0.0
        %3897 = vmatpush1.msra.mxu0 0.0
        %3898 = vmatprep.subr.mxu0 0.0
        %3899 = vmatpush1.msra.mxu0 0.0
        %3900 = vmatprep.subr.mxu0 0.0
        %3901 = vmatpush1.msra.mxu0 0.0
        %3902 = vmatprep.subr.mxu0 0.0
        %3903 = vmatpush1.msra.mxu0 0.0
        %3904 = vmatprep.subr.mxu0 0.0
        %3905 = vmatpush1.msra.mxu0 0.0
        %3906 = vmatprep.subr.mxu0 0.0
        %3907 = vmatpush1.msra.mxu0 0.0
        %3908 = vmatprep.subr.mxu0 0.0
        %3909 = vmatpush1.msra.mxu0 0.0
        %3910 = vmatprep.subr.mxu0 0.0
        %3911 = vmatpush1.msra.mxu0 0.0
        %3912 = vmatprep.subr.mxu0 0.0
        %3913 = vmatpush1.msra.mxu0 0.0
        %3914 = vmatprep.subr.mxu0 0.0
        %3915 = vmatpush1.msra.mxu0 0.0
        %3916 = vmatprep.subr.mxu0 0.0
        %3917 = vmatpush1.msra.mxu0 0.0
        %3918 = vmatprep.subr.mxu0 0.0
        %3919 = vmatpush1.msra.mxu0 0.0
        %3920 = vmatprep.subr.mxu0 0.0
        %3921 = vmatpush1.msra.mxu0 0.0
        %3922 = vmatprep.subr.mxu0 0.0
        %3923 = vmatpush1.msra.mxu0 0.0
        %3924 = vmatprep.subr.mxu0 0.0
        %3925 = vmatpush1.msra.mxu0 0.0
        %3926 = vmatprep.subr.mxu0 0.0
        %3927 = vmatpush1.msra.mxu0 0.0
        %3928 = vmatprep.subr.mxu0 0.0
        %3929 = vmatpush1.msra.mxu0 0.0
        %3930 = vmatprep.subr.mxu0 0.0
        %3931 = vmatpush1.msra.mxu0 0.0
        %3932 = vmatprep.mubr.f32.mxu0 0.0
        %3933 = vmatmul.mubr.f32.gmra.mrb[0].mxu0 %v3866
        %v3934 = vpop.f32.mrb[0].mxu0
        %v3935 = vadd.f32 0.0, %v3934
        %v3936 = vpop.f32.mrb[0].mxu0
        %3937 = vdwg.mxu0
        %v3938 = vsel %vm889, %v3935, -inf
        %3939 = vmax.xlane.f32.xlu0 %v3938
        %v3940 = vpop.xlane.xlu0 %3939
        %v3941 = vsub.f32 %v3935, %v3940
        %v3942 = vmul.f32 %v3941, 1.442695
        %v3943 = vpow.pop %v3942
        %v3944 = vsel %vm889, %v3943, 0.0
        %3945 = vadd.xlane.f32.xlu0 %v3944
        %v3946 = vpop.xlane.xlu0 %3945
        %v3947 = vlog2.pop %v3946
        %v3948 = vmul.f32 %v3947, 0.6931472
        %v3949 = vsub.f32 %v3941, %v3948
        %3950 = vrot.lane.b32.xlu0 %v3859, 8
        %v3951 = vpop.permute.xlu0 %3950
        %3953 = vrot.lane.b32.xlu0 %v3684, 72
        %v3954 = vpop.permute.xlu0 %3953
        %v3956 = vsel %vm908, %v3949, %v3951
        %v3957 = vsel %vm910, %v3956, %v3954
        %v3958 = vsel %vm912, %v3957, 0.0
        %vm3959 = vcmask 253952
        %3960 = vst.msk [vmem:[#allocation2] sm:$0x1] %vm3959, %v3862
        %v3962 = vrot.slane %v1348, 7
        %v3965 = vrot.slane %v1783, 6
        %v3968 = vrot.slane %v2218, 5
        %v3971 = vrot.slane %v2653, 4
        %v3974 = vrot.slane %v3088, 3
        %v3977 = vrot.slane %v3523, 2
        %v3980 = vrot.slane %v3958, 1
        %v3982 = vsel %vm465, %v913, %v3962
        %vm3983 = vcmask 1041408
        %v3984 = vsel %vm3983, %v3982, %v3965
        %vm3985 = vcmask 1042432
        %v3986 = vsel %vm3985, %v3984, %v3968
        %vm3987 = vcmask 1043456
        %v3988 = vsel %vm3987, %v3986, %v3971
        %vm3989 = vcmask 1044480
        %v3990 = vsel %vm3989, %v3988, %v3974
        %vm3991 = vcmask 1045504
        %v3992 = vsel %vm3991, %v3990, %v3977
        %vm3993 = vcmask 1046528
        %v3994 = vsel %vm3993, %v3992, %v3980
        %3995 = vst [vmem:[%s307] sm:$0xff] %v3994
        %p3996 = scmp.lt.s32.totalorder %s27, 1
        %s3997 = scalar_select %p3996, %s27, 1
        %s3998 = smul.addr %s3997, 8
        %s3999 = scalar_lea.vmem %s8, %s3998
        // Predicated region
        $region65: #{attn_decoder_decode.1} parent=47 // pred_check
          %p4000 = pneg %p192
        $region66: #{attn_decoder_decode.1} parent=47 // pred_check_branch
          %4002 = sbr.rel (%p4000) target = $region68
        $region67: #{attn_decoder_decode.1} parent=47 // pred_region
          _
        $region68: #{attn_decoder_decode.1} parent=47 // pred_fallthru
          _
      $region48: #{attn_decoder_decode.1} parent=5 // pred_fallthru
        _
      %p4003 = scmp.le.s32.totalorder 2, %s22
      // Predicated region
      $region69: #{attn_decoder_decode.1} parent=5 // pred_check
        %p4004 = pneg %p4003
      $region70: #{attn_decoder_decode.1} parent=5 // pred_check_branch
        %4006 = sbr.rel (%p4004) target = $region72
      $region71: #{attn_decoder_decode.1} parent=5 // pred_region
        %s4007 = ssub.s32 %s22, 2
        // Predicated region
        $region73: #{attn_decoder_decode.1} parent=71 // pred_check
          %p4008 = pneg %p198
        $region74: #{attn_decoder_decode.1} parent=71 // pred_check_branch
          %4010 = sbr.rel (%p4008) target = $region76
        $region75: #{attn_decoder_decode.1} parent=71 // pred_region
          %p4011 = scmp.lt.s32.totalorder %s28, 1
          %s4012 = scalar_select %p4011, %s28, 1
          %s4013 = smul.addr %s4012, 8
          %s4014 = scalar_lea.vmem %s8, %s4013
        $region76: #{attn_decoder_decode.1} parent=71 // pred_fallthru
          _
      $region72: #{attn_decoder_decode.1} parent=5 // pred_fallthru
        _
    $region6: #{attn_decoder_decode.1} parent=1 // loop_footer
      %s26 = sadd.s32 1, %s22
    $region7: #{attn_decoder_decode.1} parent=1 // loop_footer_branch
      %21 = sbr.rel target = $region3
    $region8: #{attn_decoder_decode.1} parent=1 // loop_exit
      _
    %4015 = vsyncpa [#allocation7], 1
    %s4016 = scalar_lea.sflag [#allocation7], 1
    %4017 = vsyncpa %s4016, 1
    %4018 = vsyncpa [#allocation9], 1

</llo_original>
